<compile_context>
chip_gen: v7x
topology: tpu7x:2x2x1
jax: 0.10.0
libtpu: 0.0.40
codegen_flags: <defaults>
</compile_context>

<pallas_src>
import functools

import jax
import jax.numpy as jnp
from jax import lax
from jax.experimental import pallas as pl
from jax.experimental.pallas import tpu as pltpu

KSIZE = 4      # 'C4-...'
STRIDE = 2     # '...-2'
EPS = 1e-5     # PyTorch BatchNorm2d default
SLOPE = 0.2    # leakyrelu-0.2
LANE = 128


def _round_up(x, m):
    return (x + m - 1) // m * m


# ----------------------------------------------------------------------------
# Pallas kernel 1: conv (as matmul) + BatchNorm (training batch stats, bias
# folded away) + LeakyReLU, fully fused on one VMEM-resident tile.
# ----------------------------------------------------------------------------
def _conv_bn_lrelu_kernel(x_ref, w_ref, gamma_ref, beta_ref, o_ref, *, eps, slope):
    # bf16 operands -> MXU with f32 accumulation.
    acc = jnp.dot(x_ref[...], w_ref[...], preferred_element_type=jnp.float32)
    # Training-mode BatchNorm2d statistics over all rows (= N*H_out*W_out).
    # Conv bias is omitted: it cancels exactly under mean subtraction.
    mean = jnp.mean(acc, axis=0, keepdims=True)
    var = jnp.mean(jnp.square(acc - mean), axis=0, keepdims=True)  # biased var (PyTorch)
    z = (acc - mean) * lax.rsqrt(var + eps) * gamma_ref[...] + beta_ref[...]
    o_ref[...] = jnp.where(z > 0, z, slope * z).astype(o_ref.dtype)


# ----------------------------------------------------------------------------
# Pallas kernel 2: final conv (as matmul) + bias, f32 output.
# ----------------------------------------------------------------------------
def _conv_bias_kernel(x_ref, w_ref, b_ref, o_ref):
    acc = jnp.dot(x_ref[...], w_ref[...], preferred_element_type=jnp.float32)
    o_ref[...] = (acc + b_ref[...]).astype(o_ref.dtype)


def _conv_cost(M, Kd, C_out, elem_bytes_in=2, elem_bytes_out=2):
    return pl.CostEstimate(
        flops=2 * M * Kd * C_out + 10 * M * C_out,
        transcendentals=C_out,
        bytes_accessed=(M * Kd + Kd * C_out) * elem_bytes_in
        + 2 * C_out * 4
        + M * C_out * elem_bytes_out,
    )


def conv_bn_lrelu(patches, w2d, gamma, beta):
    """Fused conv+BN+LReLU. patches:(M,Kd) bf16, w2d:(Kd,C) bf16 -> (M,C) bf16."""
    M, Kd = patches.shape
    C_out = w2d.shape[1]
    kernel = functools.partial(_conv_bn_lrelu_kernel, eps=EPS, slope=SLOPE)
    return pl.pallas_call(
        kernel,
        out_shape=jax.ShapeDtypeStruct((M, C_out), jnp.bfloat16),
        grid=(1,),
        in_specs=[
            pl.BlockSpec((M, Kd), lambda i: (0, 0)),
            pl.BlockSpec((Kd, C_out), lambda i: (0, 0)),
            pl.BlockSpec((1, C_out), lambda i: (0, 0)),
            pl.BlockSpec((1, C_out), lambda i: (0, 0)),
        ],
        out_specs=pl.BlockSpec((M, C_out), lambda i: (0, 0)),
        compiler_params=pltpu.CompilerParams(dimension_semantics=("arbitrary",)),
        cost_estimate=_conv_cost(M, Kd, C_out, 2, 2),
    )(patches, w2d, gamma, beta)


def conv_bias(patches, w2d, b):
    """Final conv: patches:(M,Kd) bf16, w2d:(Kd,C) bf16, b:(1,C) f32 -> (M,C) f32."""
    M, Kd = patches.shape
    C_out = w2d.shape[1]
    return pl.pallas_call(
        _conv_bias_kernel,
        out_shape=jax.ShapeDtypeStruct((M, C_out), jnp.float32),
        grid=(1,),
        in_specs=[
            pl.BlockSpec((M, Kd), lambda i: (0, 0)),
            pl.BlockSpec((Kd, C_out), lambda i: (0, 0)),
            pl.BlockSpec((1, C_out), lambda i: (0, 0)),
        ],
        out_specs=pl.BlockSpec((M, C_out), lambda i: (0, 0)),
        compiler_params=pltpu.CompilerParams(dimension_semantics=("arbitrary",)),
        cost_estimate=_conv_cost(M, Kd, C_out, 2, 4),
    )(patches, w2d, b)


# ----------------------------------------------------------------------------
# im2col (layout glue, fused by XLA under jit). Feature order of
# conv_general_dilated_patches is input-channel-major: col = c*K*K + kh*K + kw.
# ----------------------------------------------------------------------------
def _im2col(x_nhwc, K, stride):
    N, H, W, C = x_nhwc.shape
    Ho = (H - K) // stride + 1
    Wo = (W - K) // stride + 1
    patches = lax.conv_general_dilated_patches(
        x_nhwc,
        filter_shape=(K, K),
        window_strides=(stride, stride),
        padding="VALID",
        dimension_numbers=("NHWC", "HWIO", "NHWC"),
    )
    return patches.reshape(N * Ho * Wo, C * K * K), Ho, Wo


# ----------------------------------------------------------------------------
# Parameters: PyTorch-style init, then conversion to kernel layout.
# ----------------------------------------------------------------------------
def init_params(key, arch_channels=(64, 128, 256), K=KSIZE, in_dim=3):
    """PyTorch-equivalent params: Conv2d uniform init (HWIO), BN weight=1 bias=0."""
    params = []
    c_in = in_dim
    for c_out in arch_channels:
        key, k1, k2 = jax.random.split(key, 3)
        fan_in = K * K * c_in
        bound = 1.0 / float(fan_in) ** 0.5
        w = jax.random.uniform(k1, (K, K, c_in, c_out), jnp.float32, -bound, bound)
        b = jax.random.uniform(k2, (c_out,), jnp.float32, -bound, bound)
        gamma = jnp.ones((c_out,), jnp.float32)
        beta = jnp.zeros((c_out,), jnp.float32)
        params.append(dict(w=w, b=b, gamma=gamma, beta=beta))
        c_in = c_out
    return params


def prepare_params(params, lane=LANE):
    """Kernel-ready params:
      * weights kept in (padded) HWIO as bf16 (flattened to matmul layout at
        trace time so K/C are static shapes),
      * non-final C_out zero-padded to a multiple of 128 lanes; beta padded
        with 0 so padded channels stay exactly 0 and are carried as padded
        input channels (zero weight rows) into the next layer,
      * conv bias dropped for BN layers (cancels under mean subtraction)."""
    prepped = []
    n = len(params)
    c_in_pad_prev = None
    for i, p in enumerate(params):
        K, _, c_in, c_out = p["w"].shape
        w = p["w"]
        c_in_pad = c_in if c_in_pad_prev is None else c_in_pad_prev
        if c_in_pad != c_in:
            w = jnp.pad(w, ((0, 0), (0, 0), (0, c_in_pad - c_in), (0, 0)))
        last = i == n - 1
        c_out_pad = c_out if last else _round_up(c_out, lane)
        if c_out_pad != c_out:
            w = jnp.pad(w, ((0, 0), (0, 0), (0, 0), (0, c_out_pad - c_out)))
        entry = {"w": w.astype(jnp.bfloat16)}
        if last:
            entry["b"] = p["b"].reshape(1, c_out).astype(jnp.float32)
        else:
            gamma = jnp.pad(p["gamma"], (0, c_out_pad - c_out), constant_values=1.0)
            beta = jnp.pad(p["beta"], (0, c_out_pad - c_out), constant_values=0.0)
            entry["gamma"] = gamma.reshape(1, c_out_pad).astype(jnp.float32)
            entry["beta"] = beta.reshape(1, c_out_pad).astype(jnp.float32)
        prepped.append(entry)
        c_in_pad_prev = c_out_pad
    return prepped


# ----------------------------------------------------------------------------
# Full forward, matching PatchDiscriminator.forward(x, layout=None).
# ----------------------------------------------------------------------------
def patch_discriminator_forward(x_nchw, params, layout=None):
    if layout is not None:
        x_nchw = jnp.concatenate([x_nchw, layout], axis=1)  # cat along channels
    # NCHW -> NHWC; bf16 for MXU operands (all BN math stays f32 inside kernels).
    x = jnp.transpose(x_nchw, (0, 2, 3, 1)).astype(jnp.bfloat16)
    n_layers = len(params)
    N = x.shape[0]
    for i, p in enumerate(params):
        w = p["w"]                                   # (K, K, C_in_pad, C_out_pad) bf16
        K, _, c_in, c_out = w.shape
        patches, Ho, Wo = _im2col(x, K, STRIDE)      # (N*Ho*Wo, C_in_pad*K*K) bf16
        # Rows ordered c-major to match conv_general_dilated_patches columns.
        w2d = jnp.transpose(w, (2, 0, 1, 3)).reshape(c_in * K * K, c_out)
        if i + 1 < n_layers:
            y = conv_bn_lrelu(patches, w2d, p["gamma"], p["beta"])   # bf16
        else:
            y = conv_bias(patches, w2d, p["b"])                      # f32
        x = y.reshape(N, Ho, Wo, c_out)
    # TODO(synk): self.classifier (1x1 conv) is defined in __init__ but never
    # used in forward(), so it is deliberately not applied.
    return jnp.transpose(x, (0, 3, 1, 2))  # NHWC -> NCHW, matches PyTorch output


if __name__ == "__main__":
    key = jax.random.PRNGKey(0)
    key, kx = jax.random.split(key)
    # Small input consistent with the module: batch=2, 3 channels (layout_dim=0),
    # 32x32 spatial so three stride-2 K=4 valid convs remain well-defined.
    x = jax.random.normal(kx, (2, 3, 32, 32), jnp.float32)  # NCHW, like PyTorch
    params = prepare_params(init_params(key))

    fwd = jax.jit(patch_discriminator_forward)
    out = jax.block_until_ready(fwd(x, params))

    # 32 -> 15 -> 6 -> 2 spatial, 256 channels
    assert out.shape == (2, 256, 2, 2), out.shape
    assert out.dtype == jnp.float32
    assert bool(jnp.all(jnp.isfinite(out)))
    print("KERNEL_OK")
</pallas_src>

<mosaic_0001>
module attributes {stable_mosaic.version = 11 : i64} {
  func.func @_conv_bn_lrelu_kernel(%arg0: i32, %arg1: memref<450x48xbf16, #tpu.memory_space<vmem>>, %arg2: memref<48x128xbf16, #tpu.memory_space<vmem>>, %arg3: memref<1x128xf32, #tpu.memory_space<vmem>>, %arg4: memref<1x128xf32, #tpu.memory_space<vmem>>, %arg5: memref<450x128xbf16, #tpu.memory_space<vmem>>) attributes {dimension_semantics = [#tpu.dimension_semantics<arbitrary>], iteration_bounds = array<i64: 1>, scalar_prefetch = 0 : i64, scratch_operands = 0 : i64, tpu.core_type = #tpu.core_type<tc>, window_params = [{pipeline_mode = #tpu.pipeline_mode<synchronous>, transform_indices = @transform_0, window_bounds = array<i64: 450, 48>}, {pipeline_mode = #tpu.pipeline_mode<synchronous>, transform_indices = @transform_1, window_bounds = array<i64: 48, 128>}, {pipeline_mode = #tpu.pipeline_mode<synchronous>, transform_indices = @transform_2, window_bounds = array<i64: 1, 128>}, {pipeline_mode = #tpu.pipeline_mode<synchronous>, transform_indices = @transform_3, window_bounds = array<i64: 1, 128>}, {pipeline_mode = #tpu.pipeline_mode<synchronous>, transform_indices = @transform_4, window_bounds = array<i64: 450, 128>}]} {
    %c0 = arith.constant 0 : index
    %c0_0 = arith.constant 0 : index
    %0 = vector.load %arg1[%c0, %c0_0] : memref<450x48xbf16, #tpu.memory_space<vmem>>, vector<450x48xbf16>
    %c0_1 = arith.constant 0 : index
    %c0_2 = arith.constant 0 : index
    %1 = vector.load %arg2[%c0_1, %c0_2] : memref<48x128xbf16, #tpu.memory_space<vmem>>, vector<48x128xbf16>
    %cst = arith.constant dense<0.000000e+00> : vector<450x128xf32>
    %2 = tpu.matmul %0, %1, %cst {dimension_numbers = #tpu.dot_dimension_numbers<[1], [0], [0], [1], [0, 0, 1, 1], [], []>} : vector<450x48xbf16>, vector<48x128xbf16>, vector<450x128xf32> -> vector<450x128xf32>
    %cst_3 = arith.constant dense<0.000000e+00> : vector<128xf32>
    %3 = vector.multi_reduction <add>, %2, %cst_3 [0] : vector<450x128xf32> to vector<128xf32>
    %4 = vector.shape_cast %3 : vector<128xf32> to vector<1x128xf32>
    %cst_4 = arith.constant 4.500000e+02 : f32
    %5 = vector.broadcast %cst_4 : f32 to vector<1x128xf32>
    %6 = arith.divf %4, %5 : vector<1x128xf32>
    %7 = vector.broadcast %6 : vector<1x128xf32> to vector<450x128xf32>
    %8 = arith.subf %2, %7 : vector<450x128xf32>
    %9 = arith.mulf %8, %8 : vector<450x128xf32>
    %cst_5 = arith.constant dense<0.000000e+00> : vector<128xf32>
    %10 = vector.multi_reduction <add>, %9, %cst_5 [0] : vector<450x128xf32> to vector<128xf32>
    %11 = vector.shape_cast %10 : vector<128xf32> to vector<1x128xf32>
    %cst_6 = arith.constant 4.500000e+02 : f32
    %12 = vector.broadcast %cst_6 : f32 to vector<1x128xf32>
    %13 = arith.divf %11, %12 : vector<1x128xf32>
    %14 = vector.broadcast %6 : vector<1x128xf32> to vector<450x128xf32>
    %15 = arith.subf %2, %14 : vector<450x128xf32>
    %cst_7 = arith.constant 9.99999974E-6 : f32
    %16 = vector.broadcast %cst_7 : f32 to vector<1x128xf32>
    %17 = arith.addf %13, %16 : vector<1x128xf32>
    %18 = math.rsqrt %17 : vector<1x128xf32>
    %19 = vector.broadcast %18 : vector<1x128xf32> to vector<450x128xf32>
    %20 = arith.mulf %15, %19 : vector<450x128xf32>
    %c0_8 = arith.constant 0 : index
    %c0_9 = arith.constant 0 : index
    %21 = vector.load %arg3[%c0_8, %c0_9] : memref<1x128xf32, #tpu.memory_space<vmem>>, vector<1x128xf32>
    %22 = vector.broadcast %21 : vector<1x128xf32> to vector<450x128xf32>
    %23 = arith.mulf %20, %22 : vector<450x128xf32>
    %c0_10 = arith.constant 0 : index
    %c0_11 = arith.constant 0 : index
    %24 = vector.load %arg4[%c0_10, %c0_11] : memref<1x128xf32, #tpu.memory_space<vmem>>, vector<1x128xf32>
    %25 = vector.broadcast %24 : vector<1x128xf32> to vector<450x128xf32>
    %26 = arith.addf %23, %25 : vector<450x128xf32>
    %cst_12 = arith.constant 0.000000e+00 : f32
    %27 = vector.broadcast %cst_12 : f32 to vector<450x128xf32>
    %28 = arith.cmpf ogt, %26, %27 : vector<450x128xf32>
    %cst_13 = arith.constant 2.000000e-01 : f32
    %29 = vector.broadcast %cst_13 : f32 to vector<450x128xf32>
    %30 = arith.mulf %29, %26 : vector<450x128xf32>
    %31 = arith.select %28, %26, %30 : vector<450x128xi1>, vector<450x128xf32>
    %32 = arith.truncf %31 : vector<450x128xf32> to vector<450x128xbf16>
    %c0_14 = arith.constant 0 : index
    %c0_15 = arith.constant 0 : index
    %33 = vector.load %arg5[%c0_14, %c0_15] : memref<450x128xbf16, #tpu.memory_space<vmem>>, vector<450x128xbf16>
    tpu.vector_store %arg5[%c0_14, %c0_15], %32 {strides = array<i32>} : memref<450x128xbf16, #tpu.memory_space<vmem>>, vector<450x128xbf16>,
    return
  }
  func.func @transform_0(%arg0: i32) -> (i32, i32) {
    %c0_i32 = arith.constant 0 : i32
    %c0_i32_0 = arith.constant 0 : i32
    %c0_i32_1 = arith.constant 0 : i32
    return %c0_i32, %c0_i32_0 : i32, i32
  }
  func.func @transform_1(%arg0: i32) -> (i32, i32) {
    %c0_i32 = arith.constant 0 : i32
    %c0_i32_0 = arith.constant 0 : i32
    %c0_i32_1 = arith.constant 0 : i32
    return %c0_i32, %c0_i32_0 : i32, i32
  }
  func.func @transform_2(%arg0: i32) -> (i32, i32) {
    %c0_i32 = arith.constant 0 : i32
    %c0_i32_0 = arith.constant 0 : i32
    %c0_i32_1 = arith.constant 0 : i32
    return %c0_i32, %c0_i32_0 : i32, i32
  }
  func.func @transform_3(%arg0: i32) -> (i32, i32) {
    %c0_i32 = arith.constant 0 : i32
    %c0_i32_0 = arith.constant 0 : i32
    %c0_i32_1 = arith.constant 0 : i32
    return %c0_i32, %c0_i32_0 : i32, i32
  }
  func.func @transform_4(%arg0: i32) -> (i32, i32) {
    %c0_i32 = arith.constant 0 : i32
    %c0_i32_0 = arith.constant 0 : i32
    %c0_i32_1 = arith.constant 0 : i32
    return %c0_i32, %c0_i32_0 : i32, i32
  }
}

module attributes {stable_mosaic.version = 11 : i64} {
  func.func @_conv_bn_lrelu_kernel(%arg0: i32, %arg1: memref<72x2048xbf16, #tpu.memory_space<vmem>>, %arg2: memref<2048x128xbf16, #tpu.memory_space<vmem>>, %arg3: memref<1x128xf32, #tpu.memory_space<vmem>>, %arg4: memref<1x128xf32, #tpu.memory_space<vmem>>, %arg5: memref<72x128xbf16, #tpu.memory_space<vmem>>) attributes {dimension_semantics = [#tpu.dimension_semantics<arbitrary>], iteration_bounds = array<i64: 1>, scalar_prefetch = 0 : i64, scratch_operands = 0 : i64, tpu.core_type = #tpu.core_type<tc>, window_params = [{pipeline_mode = #tpu.pipeline_mode<synchronous>, transform_indices = @transform_0, window_bounds = array<i64: 72, 2048>}, {pipeline_mode = #tpu.pipeline_mode<synchronous>, transform_indices = @transform_1, window_bounds = array<i64: 2048, 128>}, {pipeline_mode = #tpu.pipeline_mode<synchronous>, transform_indices = @transform_2, window_bounds = array<i64: 1, 128>}, {pipeline_mode = #tpu.pipeline_mode<synchronous>, transform_indices = @transform_3, window_bounds = array<i64: 1, 128>}, {pipeline_mode = #tpu.pipeline_mode<synchronous>, transform_indices = @transform_4, window_bounds = array<i64: 72, 128>}]} {
    %c0 = arith.constant 0 : index
    %c0_0 = arith.constant 0 : index
    %0 = vector.load %arg1[%c0, %c0_0] : memref<72x2048xbf16, #tpu.memory_space<vmem>>, vector<72x2048xbf16>
    %c0_1 = arith.constant 0 : index
    %c0_2 = arith.constant 0 : index
    %1 = vector.load %arg2[%c0_1, %c0_2] : memref<2048x128xbf16, #tpu.memory_space<vmem>>, vector<2048x128xbf16>
    %cst = arith.constant dense<0.000000e+00> : vector<72x128xf32>
    %2 = tpu.matmul %0, %1, %cst {dimension_numbers = #tpu.dot_dimension_numbers<[1], [0], [0], [1], [0, 0, 1, 1], [], []>} : vector<72x2048xbf16>, vector<2048x128xbf16>, vector<72x128xf32> -> vector<72x128xf32>
    %cst_3 = arith.constant dense<0.000000e+00> : vector<128xf32>
    %3 = vector.multi_reduction <add>, %2, %cst_3 [0] : vector<72x128xf32> to vector<128xf32>
    %4 = vector.shape_cast %3 : vector<128xf32> to vector<1x128xf32>
    %cst_4 = arith.constant 7.200000e+01 : f32
    %5 = vector.broadcast %cst_4 : f32 to vector<1x128xf32>
    %6 = arith.divf %4, %5 : vector<1x128xf32>
    %7 = vector.broadcast %6 : vector<1x128xf32> to vector<72x128xf32>
    %8 = arith.subf %2, %7 : vector<72x128xf32>
    %9 = arith.mulf %8, %8 : vector<72x128xf32>
    %cst_5 = arith.constant dense<0.000000e+00> : vector<128xf32>
    %10 = vector.multi_reduction <add>, %9, %cst_5 [0] : vector<72x128xf32> to vector<128xf32>
    %11 = vector.shape_cast %10 : vector<128xf32> to vector<1x128xf32>
    %cst_6 = arith.constant 7.200000e+01 : f32
    %12 = vector.broadcast %cst_6 : f32 to vector<1x128xf32>
    %13 = arith.divf %11, %12 : vector<1x128xf32>
    %14 = vector.broadcast %6 : vector<1x128xf32> to vector<72x128xf32>
    %15 = arith.subf %2, %14 : vector<72x128xf32>
    %cst_7 = arith.constant 9.99999974E-6 : f32
    %16 = vector.broadcast %cst_7 : f32 to vector<1x128xf32>
    %17 = arith.addf %13, %16 : vector<1x128xf32>
    %18 = math.rsqrt %17 : vector<1x128xf32>
    %19 = vector.broadcast %18 : vector<1x128xf32> to vector<72x128xf32>
    %20 = arith.mulf %15, %19 : vector<72x128xf32>
    %c0_8 = arith.constant 0 : index
    %c0_9 = arith.constant 0 : index
    %21 = vector.load %arg3[%c0_8, %c0_9] : memref<1x128xf32, #tpu.memory_space<vmem>>, vector<1x128xf32>
    %22 = vector.broadcast %21 : vector<1x128xf32> to vector<72x128xf32>
    %23 = arith.mulf %20, %22 : vector<72x128xf32>
    %c0_10 = arith.constant 0 : index
    %c0_11 = arith.constant 0 : index
    %24 = vector.load %arg4[%c0_10, %c0_11] : memref<1x128xf32, #tpu.memory_space<vmem>>, vector<1x128xf32>
    %25 = vector.broadcast %24 : vector<1x128xf32> to vector<72x128xf32>
    %26 = arith.addf %23, %25 : vector<72x128xf32>
    %cst_12 = arith.constant 0.000000e+00 : f32
    %27 = vector.broadcast %cst_12 : f32 to vector<72x128xf32>
    %28 = arith.cmpf ogt, %26, %27 : vector<72x128xf32>
    %cst_13 = arith.constant 2.000000e-01 : f32
    %29 = vector.broadcast %cst_13 : f32 to vector<72x128xf32>
    %30 = arith.mulf %29, %26 : vector<72x128xf32>
    %31 = arith.select %28, %26, %30 : vector<72x128xi1>, vector<72x128xf32>
    %32 = arith.truncf %31 : vector<72x128xf32> to vector<72x128xbf16>
    %c0_14 = arith.constant 0 : index
    %c0_15 = arith.constant 0 : index
    %33 = vector.load %arg5[%c0_14, %c0_15] : memref<72x128xbf16, #tpu.memory_space<vmem>>, vector<72x128xbf16>
    tpu.vector_store %arg5[%c0_14, %c0_15], %32 {strides = array<i32>} : memref<72x128xbf16, #tpu.memory_space<vmem>>, vector<72x128xbf16>,
    return
  }
  func.func @transform_0(%arg0: i32) -> (i32, i32) {
    %c0_i32 = arith.constant 0 : i32
    %c0_i32_0 = arith.constant 0 : i32
    %c0_i32_1 = arith.constant 0 : i32
    return %c0_i32, %c0_i32_0 : i32, i32
  }
  func.func @transform_1(%arg0: i32) -> (i32, i32) {
    %c0_i32 = arith.constant 0 : i32
    %c0_i32_0 = arith.constant 0 : i32
    %c0_i32_1 = arith.constant 0 : i32
    return %c0_i32, %c0_i32_0 : i32, i32
  }
  func.func @transform_2(%arg0: i32) -> (i32, i32) {
    %c0_i32 = arith.constant 0 : i32
    %c0_i32_0 = arith.constant 0 : i32
    %c0_i32_1 = arith.constant 0 : i32
    return %c0_i32, %c0_i32_0 : i32, i32
  }
  func.func @transform_3(%arg0: i32) -> (i32, i32) {
    %c0_i32 = arith.constant 0 : i32
    %c0_i32_0 = arith.constant 0 : i32
    %c0_i32_1 = arith.constant 0 : i32
    return %c0_i32, %c0_i32_0 : i32, i32
  }
  func.func @transform_4(%arg0: i32) -> (i32, i32) {
    %c0_i32 = arith.constant 0 : i32
    %c0_i32_0 = arith.constant 0 : i32
    %c0_i32_1 = arith.constant 0 : i32
    return %c0_i32, %c0_i32_0 : i32, i32
  }
}

module attributes {stable_mosaic.version = 11 : i64} {
  func.func @_conv_bias_kernel(%arg0: i32, %arg1: memref<8x2048xbf16, #tpu.memory_space<vmem>>, %arg2: memref<2048x256xbf16, #tpu.memory_space<vmem>>, %arg3: memref<1x256xf32, #tpu.memory_space<vmem>>, %arg4: memref<8x256xf32, #tpu.memory_space<vmem>>) attributes {dimension_semantics = [#tpu.dimension_semantics<arbitrary>], iteration_bounds = array<i64: 1>, scalar_prefetch = 0 : i64, scratch_operands = 0 : i64, tpu.core_type = #tpu.core_type<tc>, window_params = [{pipeline_mode = #tpu.pipeline_mode<synchronous>, transform_indices = @transform_0, window_bounds = array<i64: 8, 2048>}, {pipeline_mode = #tpu.pipeline_mode<synchronous>, transform_indices = @transform_1, window_bounds = array<i64: 2048, 256>}, {pipeline_mode = #tpu.pipeline_mode<synchronous>, transform_indices = @transform_2, window_bounds = array<i64: 1, 256>}, {pipeline_mode = #tpu.pipeline_mode<synchronous>, transform_indices = @transform_3, window_bounds = array<i64: 8, 256>}]} {
    %c0 = arith.constant 0 : index
    %c0_0 = arith.constant 0 : index
    %0 = vector.load %arg1[%c0, %c0_0] : memref<8x2048xbf16, #tpu.memory_space<vmem>>, vector<8x2048xbf16>
    %c0_1 = arith.constant 0 : index
    %c0_2 = arith.constant 0 : index
    %1 = vector.load %arg2[%c0_1, %c0_2] : memref<2048x256xbf16, #tpu.memory_space<vmem>>, vector<2048x256xbf16>
    %cst = arith.constant dense<0.000000e+00> : vector<8x256xf32>
    %2 = tpu.matmul %0, %1, %cst {dimension_numbers = #tpu.dot_dimension_numbers<[1], [0], [0], [1], [0, 0, 1, 1], [], []>} : vector<8x2048xbf16>, vector<2048x256xbf16>, vector<8x256xf32> -> vector<8x256xf32>
    %c0_3 = arith.constant 0 : index
    %c0_4 = arith.constant 0 : index
    %3 = vector.load %arg3[%c0_3, %c0_4] : memref<1x256xf32, #tpu.memory_space<vmem>>, vector<1x256xf32>
    %4 = vector.broadcast %3 : vector<1x256xf32> to vector<8x256xf32>
    %5 = arith.addf %2, %4 : vector<8x256xf32>
    %c0_5 = arith.constant 0 : index
    %c0_6 = arith.constant 0 : index
    %6 = vector.load %arg4[%c0_5, %c0_6] : memref<8x256xf32, #tpu.memory_space<vmem>>, vector<8x256xf32>
    tpu.vector_store %arg4[%c0_5, %c0_6], %5 {strides = array<i32>} : memref<8x256xf32, #tpu.memory_space<vmem>>, vector<8x256xf32>,
    return
  }
  func.func @transform_0(%arg0: i32) -> (i32, i32) {
    %c0_i32 = arith.constant 0 : i32
    %c0_i32_0 = arith.constant 0 : i32
    %c0_i32_1 = arith.constant 0 : i32
    return %c0_i32, %c0_i32_0 : i32, i32
  }
  func.func @transform_1(%arg0: i32) -> (i32, i32) {
    %c0_i32 = arith.constant 0 : i32
    %c0_i32_0 = arith.constant 0 : i32
    %c0_i32_1 = arith.constant 0 : i32
    return %c0_i32, %c0_i32_0 : i32, i32
  }
  func.func @transform_2(%arg0: i32) -> (i32, i32) {
    %c0_i32 = arith.constant 0 : i32
    %c0_i32_0 = arith.constant 0 : i32
    %c0_i32_1 = arith.constant 0 : i32
    return %c0_i32, %c0_i32_0 : i32, i32
  }
  func.func @transform_3(%arg0: i32) -> (i32, i32) {
    %c0_i32 = arith.constant 0 : i32
    %c0_i32_0 = arith.constant 0 : i32
    %c0_i32_1 = arith.constant 0 : i32
    return %c0_i32, %c0_i32_0 : i32, i32
  }
}

</mosaic_0001>

<llo_original>
// kernel: patch_discriminator_forward.3
$region0: #{patch_discriminator_forward.3}
  #allocation0 [shape = 'u32[]', space=smem, size = 0x4, offset = 0x4, fixed_abs, tag = 'smem constant byte address 0x4 - core index']
  #allocation1 [shape = 'u32[144,128]{1,0:T(1,128)}', space=vmem, size = 0x12000, scoped, tag = 'internal scratch']
  %s0 = inlined_call_operand.vmem [shape: bf16[450,48], index: 0, kind: input, shape index: {}]
  %s1 = inlined_call_operand.vmem [shape: bf16[48,128], index: 1, kind: input, shape index: {}]
  %s2 = inlined_call_operand.vmem [shape: f32[1,128], index: 2, kind: input, shape index: {}]
  %s3 = inlined_call_operand.vmem [shape: f32[1,128], index: 3, kind: input, shape index: {}]
  %s4 = inlined_call_operand.vmem [shape: bf16[450,128], index: 4, kind: output, shape index: {}]
  %s5 = sld [smem:[#allocation0]]
  $region26: #{patch_discriminator_forward.3} parent=0
    _
  %s7 = ssub.s32 1, %s5
  %s8 = scalar_select 0, %s7, %s5
  // Predicated region
  $region2: #{patch_discriminator_forward.3} parent=0 // pred_check
    _
  $region3: #{patch_discriminator_forward.3} parent=0 // pred_check_branch
    %10 = sbr.rel (0) target = $region5
  $region4: #{patch_discriminator_forward.3} parent=0 // pred_region
    _
  $region5: #{patch_discriminator_forward.3} parent=0 // pred_fallthru
    _
  // Predicated region
  $region6: #{patch_discriminator_forward.3} parent=0 // pred_check
    _
  $region7: #{patch_discriminator_forward.3} parent=0 // pred_check_branch
    %12 = sbr.rel (0) target = $region9
  $region8: #{patch_discriminator_forward.3} parent=0 // pred_region
    _
  $region9: #{patch_discriminator_forward.3} parent=0 // pred_fallthru
    _
  // Predicated region
  $region10: #{patch_discriminator_forward.3} parent=0 // pred_check
    _
  $region11: #{patch_discriminator_forward.3} parent=0 // pred_check_branch
    %14 = sbr.rel (0) target = $region13
  $region12: #{patch_discriminator_forward.3} parent=0 // pred_region
    _
  $region13: #{patch_discriminator_forward.3} parent=0 // pred_fallthru
    _
  // Predicated region
  $region14: #{patch_discriminator_forward.3} parent=0 // pred_check
    _
  $region15: #{patch_discriminator_forward.3} parent=0 // pred_check_branch
    %16 = sbr.rel (0) target = $region17
  $region16: #{patch_discriminator_forward.3} parent=0 // pred_region
    _
  $region17: #{patch_discriminator_forward.3} parent=0 // pred_fallthru
    _
  %v18 = vld [vmem:[%s0] sm:$0xf]
  %v19 = vld [vmem:[%s0 + $0x4] sm:$0xf]
  %v20 = vld [vmem:[%s0 + $0x8] sm:$0xf]
  %v21 = vld [vmem:[%s0 + $0xc] sm:$0xf]
  %v22 = vld [vmem:[%s0 + $0x10] sm:$0xf]
  %v23 = vld [vmem:[%s0 + $0x14] sm:$0xf]
  %v24 = vld [vmem:[%s0 + $0x18] sm:$0xf]
  %v25 = vld [vmem:[%s0 + $0x1c] sm:$0xf]
  %v26 = vld [vmem:[%s0 + $0x20] sm:$0xf]
  %v27 = vld [vmem:[%s0 + $0x24] sm:$0xf]
  %v28 = vld [vmem:[%s0 + $0x28] sm:$0xf]
  %v29 = vld [vmem:[%s0 + $0x2c] sm:$0xf]
  %v30 = vld [vmem:[%s0 + $0x30] sm:$0xf]
  %v31 = vld [vmem:[%s0 + $0x34] sm:$0xf]
  %v32 = vld [vmem:[%s0 + $0x38] sm:$0xf]
  %v33 = vld [vmem:[%s0 + $0x3c] sm:$0xf]
  %v34 = vld [vmem:[%s0 + $0x40] sm:$0xf]
  %v35 = vld [vmem:[%s0 + $0x44] sm:$0xf]
  %v36 = vld [vmem:[%s0 + $0x48] sm:$0xf]
  %v37 = vld [vmem:[%s0 + $0x4c] sm:$0xf]
  %v38 = vld [vmem:[%s0 + $0x50] sm:$0xf]
  %v39 = vld [vmem:[%s0 + $0x54] sm:$0xf]
  %v40 = vld [vmem:[%s0 + $0x58] sm:$0xf]
  %v41 = vld [vmem:[%s0 + $0x5c] sm:$0xf]
  %v42 = vld [vmem:[%s0 + $0x60] sm:$0xf]
  %v43 = vld [vmem:[%s0 + $0x64] sm:$0xf]
  %v44 = vld [vmem:[%s0 + $0x68] sm:$0xf]
  %v45 = vld [vmem:[%s0 + $0x6c] sm:$0xf]
  %v46 = vld [vmem:[%s0 + $0x70] sm:$0xf]
  %v47 = vld [vmem:[%s0 + $0x74] sm:$0xf]
  %v48 = vld [vmem:[%s0 + $0x78] sm:$0xf]
  %v49 = vld [vmem:[%s0 + $0x7c] sm:$0xf]
  %v50 = vld [vmem:[%s0 + $0x80] sm:$0xf]
  %v51 = vld [vmem:[%s0 + $0x84] sm:$0xf]
  %v52 = vld [vmem:[%s0 + $0x88] sm:$0xf]
  %v53 = vld [vmem:[%s0 + $0x8c] sm:$0xf]
  %v54 = vld [vmem:[%s0 + $0x90] sm:$0xf]
  %v55 = vld [vmem:[%s0 + $0x94] sm:$0xf]
  %v56 = vld [vmem:[%s0 + $0x98] sm:$0xf]
  %v57 = vld [vmem:[%s0 + $0x9c] sm:$0xf]
  %v58 = vld [vmem:[%s0 + $0xa0] sm:$0xf]
  %v59 = vld [vmem:[%s0 + $0xa4] sm:$0xf]
  %v60 = vld [vmem:[%s0 + $0xa8] sm:$0xf]
  %v61 = vld [vmem:[%s0 + $0xac] sm:$0xf]
  %v62 = vld [vmem:[%s0 + $0xb0] sm:$0xf]
  %v63 = vld [vmem:[%s0 + $0xb4] sm:$0xf]
  %v64 = vld [vmem:[%s0 + $0xb8] sm:$0xf]
  %v65 = vld [vmem:[%s0 + $0xbc] sm:$0xf]
  %v66 = vld [vmem:[%s0 + $0xc0] sm:$0xf]
  %v67 = vld [vmem:[%s0 + $0xc4] sm:$0xf]
  %v68 = vld [vmem:[%s0 + $0xc8] sm:$0xf]
  %v69 = vld [vmem:[%s0 + $0xcc] sm:$0xf]
  %v70 = vld [vmem:[%s0 + $0xd0] sm:$0xf]
  %v71 = vld [vmem:[%s0 + $0xd4] sm:$0xf]
  %v72 = vld [vmem:[%s0 + $0xd8] sm:$0xf]
  %v73 = vld [vmem:[%s0 + $0xdc] sm:$0xf]
  %v74 = vld [vmem:[%s0 + $0xe0] sm:$0x1]
  %v75 = vld [vmem:[%s1] sm:$0xf]
  %v76 = vld [vmem:[%s1 + $0x4] sm:$0xf]
  %v77 = vld [vmem:[%s1 + $0x8] sm:$0xf]
  %v78 = vld [vmem:[%s1 + $0xc] sm:$0xf]
  %v79 = vld [vmem:[%s1 + $0x10] sm:$0xf]
  %v80 = vld [vmem:[%s1 + $0x14] sm:$0xf]
  %v138 = vunpack.c.l.b16 %v18
  %v139 = vunpack.c.l.b16 %v19
  %v140 = vunpack.c.l.b16 %v20
  %v141 = vunpack.c.l.b16 %v21
  %v142 = vunpack.c.l.b16 %v22
  %v143 = vunpack.c.l.b16 %v23
  %v144 = vunpack.c.l.b16 %v24
  %v145 = vunpack.c.l.b16 %v25
  %v146 = vunpack.c.l.b16 %v26
  %v147 = vunpack.c.l.b16 %v27
  %v148 = vunpack.c.l.b16 %v28
  %v149 = vunpack.c.l.b16 %v29
  %v150 = vunpack.c.l.b16 %v30
  %v151 = vunpack.c.l.b16 %v31
  %v152 = vunpack.c.l.b16 %v32
  %v153 = vunpack.c.l.b16 %v33
  %v154 = vunpack.c.l.b16 %v34
  %v155 = vunpack.c.l.b16 %v35
  %v156 = vunpack.c.l.b16 %v36
  %v157 = vunpack.c.l.b16 %v37
  %v158 = vunpack.c.l.b16 %v38
  %v159 = vunpack.c.l.b16 %v39
  %v160 = vunpack.c.l.b16 %v40
  %v161 = vunpack.c.l.b16 %v41
  %v162 = vunpack.c.l.b16 %v42
  %v163 = vunpack.c.l.b16 %v43
  %v164 = vunpack.c.l.b16 %v44
  %v165 = vunpack.c.l.b16 %v45
  %v166 = vunpack.c.l.b16 %v46
  %v167 = vunpack.c.l.b16 %v47
  %v168 = vunpack.c.l.b16 %v48
  %v169 = vunpack.c.l.b16 %v49
  %v170 = vunpack.c.l.b16 %v50
  %v171 = vunpack.c.l.b16 %v51
  %v172 = vunpack.c.l.b16 %v52
  %v173 = vunpack.c.l.b16 %v53
  %v174 = vunpack.c.l.b16 %v54
  %v175 = vunpack.c.l.b16 %v55
  %v176 = vunpack.c.l.b16 %v56
  %v177 = vunpack.c.l.b16 %v57
  %v178 = vunpack.c.l.b16 %v58
  %v179 = vunpack.c.l.b16 %v59
  %v180 = vunpack.c.l.b16 %v60
  %v181 = vunpack.c.l.b16 %v61
  %v182 = vunpack.c.l.b16 %v62
  %v183 = vunpack.c.l.b16 %v63
  %v184 = vunpack.c.l.b16 %v64
  %v185 = vunpack.c.l.b16 %v65
  %v186 = vunpack.c.l.b16 %v66
  %v187 = vunpack.c.l.b16 %v67
  %v188 = vunpack.c.l.b16 %v68
  %v189 = vunpack.c.l.b16 %v69
  %v190 = vunpack.c.l.b16 %v70
  %v191 = vunpack.c.l.b16 %v71
  %v192 = vunpack.c.l.b16 %v72
  %v193 = vunpack.c.l.b16 %v73
  %v194 = vunpack.c.l.b16 %v74
  %v195 = vpack.c.b16 %v139, %v138
  %v196 = vpack.c.b16 %v141, %v140
  %v197 = vpack.c.b16 %v143, %v142
  %v198 = vpack.c.b16 %v145, %v144
  %v199 = vpack.c.b16 %v147, %v146
  %v200 = vpack.c.b16 %v149, %v148
  %v201 = vpack.c.b16 %v151, %v150
  %v202 = vpack.c.b16 %v153, %v152
  %v203 = vpack.c.b16 %v155, %v154
  %v204 = vpack.c.b16 %v157, %v156
  %v205 = vpack.c.b16 %v159, %v158
  %v206 = vpack.c.b16 %v161, %v160
  %v207 = vpack.c.b16 %v163, %v162
  %v208 = vpack.c.b16 %v165, %v164
  %v209 = vpack.c.b16 %v167, %v166
  %v210 = vpack.c.b16 %v169, %v168
  %v211 = vpack.c.b16 %v171, %v170
  %v212 = vpack.c.b16 %v173, %v172
  %v213 = vpack.c.b16 %v175, %v174
  %v214 = vpack.c.b16 %v177, %v176
  %v215 = vpack.c.b16 %v179, %v178
  %v216 = vpack.c.b16 %v181, %v180
  %v217 = vpack.c.b16 %v183, %v182
  %v218 = vpack.c.b16 %v185, %v184
  %v219 = vpack.c.b16 %v187, %v186
  %v220 = vpack.c.b16 %v189, %v188
  %v221 = vpack.c.b16 %v191, %v190
  %v222 = vpack.c.b16 %v193, %v192
  %v223 = vpack.c.b16 %v194, %v194
  %v230 = vunpack.c.l.b16 %v75
  %v231 = vunpack.c.l.b16 %v76
  %v232 = vunpack.c.l.b16 %v77
  %v233 = vunpack.c.l.b16 %v78
  %v234 = vunpack.c.l.b16 %v79
  %v235 = vunpack.c.l.b16 %v80
  %v236 = vpack.c.b16 %v231, %v230
  %v237 = vpack.c.b16 %v233, %v232
  %v238 = vpack.c.b16 %v235, %v234
  %vm242 = vcmask 392192
  %v244 = vsel %vm242, %v195, 0
  %v247 = vsel %vm242, %v196, 0
  %v250 = vsel %vm242, %v197, 0
  %v253 = vsel %vm242, %v198, 0
  %v256 = vsel %vm242, %v199, 0
  %v259 = vsel %vm242, %v200, 0
  %v262 = vsel %vm242, %v201, 0
  %v265 = vsel %vm242, %v202, 0
  %v268 = vsel %vm242, %v203, 0
  %v271 = vsel %vm242, %v204, 0
  %v274 = vsel %vm242, %v205, 0
  %v277 = vsel %vm242, %v206, 0
  %v280 = vsel %vm242, %v207, 0
  %v283 = vsel %vm242, %v208, 0
  %v286 = vsel %vm242, %v209, 0
  %v289 = vsel %vm242, %v210, 0
  %v292 = vsel %vm242, %v211, 0
  %v295 = vsel %vm242, %v212, 0
  %v298 = vsel %vm242, %v213, 0
  %v301 = vsel %vm242, %v214, 0
  %v304 = vsel %vm242, %v215, 0
  %v307 = vsel %vm242, %v216, 0
  %v310 = vsel %vm242, %v217, 0
  %v313 = vsel %vm242, %v218, 0
  %v316 = vsel %vm242, %v219, 0
  %v319 = vsel %vm242, %v220, 0
  %v322 = vsel %vm242, %v221, 0
  %v325 = vsel %vm242, %v222, 0
  %v328 = vsel %vm242, %v223, 0
  %330 = vmatprep.subr.bf16.mxu0 0
  %331 = vmatpush1.bf16.msra.mxu0 %v236
  %332 = vmatprep.subr.bf16.mxu0 0
  %333 = vmatpush1.bf16.msra.mxu0 %v237
  %334 = vmatprep.subr.bf16.mxu0 0
  %335 = vmatpush1.bf16.msra.mxu0 %v238
  %336 = vmatprep.subr.bf16.mxu0 0
  %337 = vmatpush1.bf16.msra.mxu0 0
  %338 = vmatprep.subr.bf16.mxu0 0
  %339 = vmatpush1.bf16.msra.mxu0 0
  %340 = vmatprep.subr.bf16.mxu0 0
  %341 = vmatpush1.bf16.msra.mxu0 0
  %342 = vmatprep.subr.bf16.mxu0 0
  %343 = vmatpush1.bf16.msra.mxu0 0
  %344 = vmatprep.subr.bf16.mxu0 0
  %345 = vmatpush1.bf16.msra.mxu0 0
  %346 = vmatprep.subr.bf16.mxu0 0
  %347 = vmatpush1.bf16.msra.mxu0 0
  %348 = vmatprep.subr.bf16.mxu0 0
  %349 = vmatpush1.bf16.msra.mxu0 0
  %350 = vmatprep.subr.bf16.mxu0 0
  %351 = vmatpush1.bf16.msra.mxu0 0
  %352 = vmatprep.subr.bf16.mxu0 0
  %353 = vmatpush1.bf16.msra.mxu0 0
  %354 = vmatprep.subr.bf16.mxu0 0
  %355 = vmatpush1.bf16.msra.mxu0 0
  %356 = vmatprep.subr.bf16.mxu0 0
  %357 = vmatpush1.bf16.msra.mxu0 0
  %358 = vmatprep.subr.bf16.mxu0 0
  %359 = vmatpush1.bf16.msra.mxu0 0
  %360 = vmatprep.subr.bf16.mxu0 0
  %361 = vmatpush1.bf16.msra.mxu0 0
  %362 = vmatprep.mubr.bf16.mxu0 0
  %363 = vmatmul.mubr.bf16.gmra.mrb[0].mxu0 %v244
  %v364 = vpop.f32.mrb[0].mxu0
  %v365 = vadd.f32 0.0, %v364
  %v366 = vpop.f32.mrb[0].mxu0
  %v367 = vpop.f32.mrb[0].mxu0
  %v368 = vadd.f32 0.0, %v367
  %v369 = vpop.f32.mrb[0].mxu0
  %370 = vmatprep.mubr.bf16.mxu0 0
  %371 = vmatmul.mubr.bf16.gmra.mrb[0].mxu0 %v247
  %v372 = vpop.f32.mrb[0].mxu0
  %v373 = vadd.f32 0.0, %v372
  %v374 = vpop.f32.mrb[0].mxu0
  %v375 = vpop.f32.mrb[0].mxu0
  %v376 = vadd.f32 0.0, %v375
  %v377 = vpop.f32.mrb[0].mxu0
  %378 = vmatprep.mubr.bf16.mxu0 0
  %379 = vmatmul.mubr.bf16.gmra.mrb[0].mxu0 %v250
  %v380 = vpop.f32.mrb[0].mxu0
  %v381 = vadd.f32 0.0, %v380
  %v382 = vpop.f32.mrb[0].mxu0
  %v383 = vpop.f32.mrb[0].mxu0
  %v384 = vadd.f32 0.0, %v383
  %v385 = vpop.f32.mrb[0].mxu0
  %386 = vmatprep.mubr.bf16.mxu0 0
  %387 = vmatmul.mubr.bf16.gmra.mrb[0].mxu0 %v253
  %v388 = vpop.f32.mrb[0].mxu0
  %v389 = vadd.f32 0.0, %v388
  %v390 = vpop.f32.mrb[0].mxu0
  %v391 = vpop.f32.mrb[0].mxu0
  %v392 = vadd.f32 0.0, %v391
  %v393 = vpop.f32.mrb[0].mxu0
  %394 = vmatprep.mubr.bf16.mxu0 0
  %395 = vmatmul.mubr.bf16.gmra.mrb[0].mxu0 %v256
  %v396 = vpop.f32.mrb[0].mxu0
  %v397 = vadd.f32 0.0, %v396
  %v398 = vpop.f32.mrb[0].mxu0
  %v399 = vpop.f32.mrb[0].mxu0
  %v400 = vadd.f32 0.0, %v399
  %v401 = vpop.f32.mrb[0].mxu0
  %402 = vmatprep.mubr.bf16.mxu0 0
  %403 = vmatmul.mubr.bf16.gmra.mrb[0].mxu0 %v259
  %v404 = vpop.f32.mrb[0].mxu0
  %v405 = vadd.f32 0.0, %v404
  %v406 = vpop.f32.mrb[0].mxu0
  %v407 = vpop.f32.mrb[0].mxu0
  %v408 = vadd.f32 0.0, %v407
  %v409 = vpop.f32.mrb[0].mxu0
  %410 = vmatprep.mubr.bf16.mxu0 0
  %411 = vmatmul.mubr.bf16.gmra.mrb[0].mxu0 %v262
  %v412 = vpop.f32.mrb[0].mxu0
  %v413 = vadd.f32 0.0, %v412
  %v414 = vpop.f32.mrb[0].mxu0
  %v415 = vpop.f32.mrb[0].mxu0
  %v416 = vadd.f32 0.0, %v415
  %v417 = vpop.f32.mrb[0].mxu0
  %418 = vmatprep.mubr.bf16.mxu0 0
  %419 = vmatmul.mubr.bf16.gmra.mrb[0].mxu0 %v265
  %v420 = vpop.f32.mrb[0].mxu0
  %v421 = vadd.f32 0.0, %v420
  %v422 = vpop.f32.mrb[0].mxu0
  %v423 = vpop.f32.mrb[0].mxu0
  %v424 = vadd.f32 0.0, %v423
  %v425 = vpop.f32.mrb[0].mxu0
  %426 = vmatprep.mubr.bf16.mxu0 0
  %427 = vmatmul.mubr.bf16.gmra.mrb[0].mxu0 %v268
  %v428 = vpop.f32.mrb[0].mxu0
  %v429 = vadd.f32 0.0, %v428
  %v430 = vpop.f32.mrb[0].mxu0
  %v431 = vpop.f32.mrb[0].mxu0
  %v432 = vadd.f32 0.0, %v431
  %v433 = vpop.f32.mrb[0].mxu0
  %434 = vmatprep.mubr.bf16.mxu0 0
  %435 = vmatmul.mubr.bf16.gmra.mrb[0].mxu0 %v271
  %v436 = vpop.f32.mrb[0].mxu0
  %v437 = vadd.f32 0.0, %v436
  %v438 = vpop.f32.mrb[0].mxu0
  %v439 = vpop.f32.mrb[0].mxu0
  %v440 = vadd.f32 0.0, %v439
  %v441 = vpop.f32.mrb[0].mxu0
  %442 = vmatprep.mubr.bf16.mxu0 0
  %443 = vmatmul.mubr.bf16.gmra.mrb[0].mxu0 %v274
  %v444 = vpop.f32.mrb[0].mxu0
  %v445 = vadd.f32 0.0, %v444
  %v446 = vpop.f32.mrb[0].mxu0
  %v447 = vpop.f32.mrb[0].mxu0
  %v448 = vadd.f32 0.0, %v447
  %v449 = vpop.f32.mrb[0].mxu0
  %450 = vmatprep.mubr.bf16.mxu0 0
  %451 = vmatmul.mubr.bf16.gmra.mrb[0].mxu0 %v277
  %v452 = vpop.f32.mrb[0].mxu0
  %v453 = vadd.f32 0.0, %v452
  %v454 = vpop.f32.mrb[0].mxu0
  %v455 = vpop.f32.mrb[0].mxu0
  %v456 = vadd.f32 0.0, %v455
  %v457 = vpop.f32.mrb[0].mxu0
  %458 = vmatprep.mubr.bf16.mxu0 0
  %459 = vmatmul.mubr.bf16.gmra.mrb[0].mxu0 %v280
  %v460 = vpop.f32.mrb[0].mxu0
  %v461 = vadd.f32 0.0, %v460
  %v462 = vpop.f32.mrb[0].mxu0
  %v463 = vpop.f32.mrb[0].mxu0
  %v464 = vadd.f32 0.0, %v463
  %v465 = vpop.f32.mrb[0].mxu0
  %466 = vmatprep.mubr.bf16.mxu0 0
  %467 = vmatmul.mubr.bf16.gmra.mrb[0].mxu0 %v283
  %v468 = vpop.f32.mrb[0].mxu0
  %v469 = vadd.f32 0.0, %v468
  %v470 = vpop.f32.mrb[0].mxu0
  %v471 = vpop.f32.mrb[0].mxu0
  %v472 = vadd.f32 0.0, %v471
  %v473 = vpop.f32.mrb[0].mxu0
  %474 = vmatprep.mubr.bf16.mxu0 0
  %475 = vmatmul.mubr.bf16.gmra.mrb[0].mxu0 %v286
  %v476 = vpop.f32.mrb[0].mxu0
  %v477 = vadd.f32 0.0, %v476
  %v478 = vpop.f32.mrb[0].mxu0
  %v479 = vpop.f32.mrb[0].mxu0
  %v480 = vadd.f32 0.0, %v479
  %v481 = vpop.f32.mrb[0].mxu0
  %482 = vmatprep.mubr.bf16.mxu0 0
  %483 = vmatmul.mubr.bf16.gmra.mrb[0].mxu0 %v289
  %v484 = vpop.f32.mrb[0].mxu0
  %v485 = vadd.f32 0.0, %v484
  %v486 = vpop.f32.mrb[0].mxu0
  %v487 = vpop.f32.mrb[0].mxu0
  %v488 = vadd.f32 0.0, %v487
  %v489 = vpop.f32.mrb[0].mxu0
  %490 = vmatprep.mubr.bf16.mxu0 0
  %491 = vmatmul.mubr.bf16.gmra.mrb[0].mxu0 %v292
  %v492 = vpop.f32.mrb[0].mxu0
  %v493 = vadd.f32 0.0, %v492
  %v494 = vpop.f32.mrb[0].mxu0
  %v495 = vpop.f32.mrb[0].mxu0
  %v496 = vadd.f32 0.0, %v495
  %v497 = vpop.f32.mrb[0].mxu0
  %498 = vmatprep.mubr.bf16.mxu0 0
  %499 = vmatmul.mubr.bf16.gmra.mrb[0].mxu0 %v295
  %v500 = vpop.f32.mrb[0].mxu0
  %v501 = vadd.f32 0.0, %v500
  %v502 = vpop.f32.mrb[0].mxu0
  %v503 = vpop.f32.mrb[0].mxu0
  %v504 = vadd.f32 0.0, %v503
  %v505 = vpop.f32.mrb[0].mxu0
  %506 = vmatprep.mubr.bf16.mxu0 0
  %507 = vmatmul.mubr.bf16.gmra.mrb[0].mxu0 %v298
  %v508 = vpop.f32.mrb[0].mxu0
  %v509 = vadd.f32 0.0, %v508
  %v510 = vpop.f32.mrb[0].mxu0
  %v511 = vpop.f32.mrb[0].mxu0
  %v512 = vadd.f32 0.0, %v511
  %v513 = vpop.f32.mrb[0].mxu0
  %514 = vmatprep.mubr.bf16.mxu0 0
  %515 = vmatmul.mubr.bf16.gmra.mrb[0].mxu0 %v301
  %v516 = vpop.f32.mrb[0].mxu0
  %v517 = vadd.f32 0.0, %v516
  %v518 = vpop.f32.mrb[0].mxu0
  %v519 = vpop.f32.mrb[0].mxu0
  %v520 = vadd.f32 0.0, %v519
  %v521 = vpop.f32.mrb[0].mxu0
  %522 = vmatprep.mubr.bf16.mxu0 0
  %523 = vmatmul.mubr.bf16.gmra.mrb[0].mxu0 %v304
  %v524 = vpop.f32.mrb[0].mxu0
  %v525 = vadd.f32 0.0, %v524
  %v526 = vpop.f32.mrb[0].mxu0
  %v527 = vpop.f32.mrb[0].mxu0
  %v528 = vadd.f32 0.0, %v527
  %v529 = vpop.f32.mrb[0].mxu0
  %530 = vmatprep.mubr.bf16.mxu0 0
  %531 = vmatmul.mubr.bf16.gmra.mrb[0].mxu0 %v307
  %v532 = vpop.f32.mrb[0].mxu0
  %v533 = vadd.f32 0.0, %v532
  %v534 = vpop.f32.mrb[0].mxu0
  %v535 = vpop.f32.mrb[0].mxu0
  %v536 = vadd.f32 0.0, %v535
  %v537 = vpop.f32.mrb[0].mxu0
  %538 = vmatprep.mubr.bf16.mxu0 0
  %539 = vmatmul.mubr.bf16.gmra.mrb[0].mxu0 %v310
  %v540 = vpop.f32.mrb[0].mxu0
  %v541 = vadd.f32 0.0, %v540
  %v542 = vpop.f32.mrb[0].mxu0
  %v543 = vpop.f32.mrb[0].mxu0
  %v544 = vadd.f32 0.0, %v543
  %v545 = vpop.f32.mrb[0].mxu0
  %546 = vmatprep.mubr.bf16.mxu0 0
  %547 = vmatmul.mubr.bf16.gmra.mrb[0].mxu0 %v313
  %v548 = vpop.f32.mrb[0].mxu0
  %v549 = vadd.f32 0.0, %v548
  %v550 = vpop.f32.mrb[0].mxu0
  %v551 = vpop.f32.mrb[0].mxu0
  %v552 = vadd.f32 0.0, %v551
  %v553 = vpop.f32.mrb[0].mxu0
  %554 = vmatprep.mubr.bf16.mxu0 0
  %555 = vmatmul.mubr.bf16.gmra.mrb[0].mxu0 %v316
  %v556 = vpop.f32.mrb[0].mxu0
  %v557 = vadd.f32 0.0, %v556
  %v558 = vpop.f32.mrb[0].mxu0
  %v559 = vpop.f32.mrb[0].mxu0
  %v560 = vadd.f32 0.0, %v559
  %v561 = vpop.f32.mrb[0].mxu0
  %562 = vmatprep.mubr.bf16.mxu0 0
  %563 = vmatmul.mubr.bf16.gmra.mrb[0].mxu0 %v319
  %v564 = vpop.f32.mrb[0].mxu0
  %v565 = vadd.f32 0.0, %v564
  %v566 = vpop.f32.mrb[0].mxu0
  %v567 = vpop.f32.mrb[0].mxu0
  %v568 = vadd.f32 0.0, %v567
  %v569 = vpop.f32.mrb[0].mxu0
  %570 = vmatprep.mubr.bf16.mxu0 0
  %571 = vmatmul.mubr.bf16.gmra.mrb[0].mxu0 %v322
  %v572 = vpop.f32.mrb[0].mxu0
  %v573 = vadd.f32 0.0, %v572
  %v574 = vpop.f32.mrb[0].mxu0
  %v575 = vpop.f32.mrb[0].mxu0
  %v576 = vadd.f32 0.0, %v575
  %v577 = vpop.f32.mrb[0].mxu0
  %578 = vmatprep.mubr.bf16.mxu0 0
  %579 = vmatmul.mubr.bf16.gmra.mrb[0].mxu0 %v325
  %v580 = vpop.f32.mrb[0].mxu0
  %v581 = vadd.f32 0.0, %v580
  %v582 = vpop.f32.mrb[0].mxu0
  %v583 = vpop.f32.mrb[0].mxu0
  %v584 = vadd.f32 0.0, %v583
  %v585 = vpop.f32.mrb[0].mxu0
  %586 = vmatprep.mubr.bf16.mxu0 0
  %587 = vmatmul.mubr.bf16.gmra.mrb[0].mxu0 %v328
  %v588 = vpop.f32.mrb[0].mxu0
  %v589 = vadd.f32 0.0, %v588
  %v590 = vpop.f32.mrb[0].mxu0
  %v591 = vpop.f32.mrb[0].mxu0
  %v592 = vpop.f32.mrb[0].mxu0
  %593 = vdwg.mxu0
  %v594 = vadd.f32 %v365, %v368
  %v595 = vadd.f32 %v594, %v373
  %v596 = vadd.f32 %v595, %v376
  %v597 = vadd.f32 %v596, %v381
  %v598 = vadd.f32 %v597, %v384
  %v599 = vadd.f32 %v598, %v389
  %v600 = vadd.f32 %v599, %v392
  %v601 = vadd.f32 %v600, %v397
  %v602 = vadd.f32 %v601, %v400
  %v603 = vadd.f32 %v602, %v405
  %v604 = vadd.f32 %v603, %v408
  %v605 = vadd.f32 %v604, %v413
  %v606 = vadd.f32 %v605, %v416
  %v607 = vadd.f32 %v606, %v421
  %v608 = vadd.f32 %v607, %v424
  %v609 = vadd.f32 %v608, %v429
  %v610 = vadd.f32 %v609, %v432
  %v611 = vadd.f32 %v610, %v437
  %v612 = vadd.f32 %v611, %v440
  %v613 = vadd.f32 %v612, %v445
  %v614 = vadd.f32 %v613, %v448
  %v615 = vadd.f32 %v614, %v453
  %v616 = vadd.f32 %v615, %v456
  %v617 = vadd.f32 %v616, %v461
  %v618 = vadd.f32 %v617, %v464
  %v619 = vadd.f32 %v618, %v469
  %v620 = vadd.f32 %v619, %v472
  %v621 = vadd.f32 %v620, %v477
  %v622 = vadd.f32 %v621, %v480
  %v623 = vadd.f32 %v622, %v485
  %v624 = vadd.f32 %v623, %v488
  %v625 = vadd.f32 %v624, %v493
  %v626 = vadd.f32 %v625, %v496
  %v627 = vadd.f32 %v626, %v501
  %v628 = vadd.f32 %v627, %v504
  %v629 = vadd.f32 %v628, %v509
  %v630 = vadd.f32 %v629, %v512
  %v631 = vadd.f32 %v630, %v517
  %v632 = vadd.f32 %v631, %v520
  %v633 = vadd.f32 %v632, %v525
  %v634 = vadd.f32 %v633, %v528
  %v635 = vadd.f32 %v634, %v533
  %v636 = vadd.f32 %v635, %v536
  %v637 = vadd.f32 %v636, %v541
  %v638 = vadd.f32 %v637, %v544
  %v639 = vadd.f32 %v638, %v549
  %v640 = vadd.f32 %v639, %v552
  %v641 = vadd.f32 %v640, %v557
  %v642 = vadd.f32 %v641, %v560
  %v643 = vadd.f32 %v642, %v565
  %v644 = vadd.f32 %v643, %v568
  %v645 = vadd.f32 %v644, %v573
  %v646 = vadd.f32 %v645, %v576
  %v647 = vadd.f32 %v646, %v581
  %v648 = vadd.f32 %v647, %v584
  %vm649 = vcmask 1041408
  %v650 = vsel %vm649, %v589, 0.0
  %v651 = vadd.f32 %v648, %v650
  %v652 = vrot.slane %v651, 4
  %v653 = vadd.f32 %v651, %v652
  %v654 = vrot.slane %v653, 2
  %v655 = vadd.f32 %v653, %v654
  %v656 = vrot.slane %v655, 1
  %v657 = vadd.f32 %v655, %v656
  %v658 = vrcp.pop 450.0
  %v659 = vmul.f32 %v657, %v658
  %v660 = vsub.f32 %v365, %v659
  %v661 = vsub.f32 %v368, %v659
  %v662 = vsub.f32 %v373, %v659
  %v663 = vsub.f32 %v376, %v659
  %v664 = vsub.f32 %v381, %v659
  %v665 = vsub.f32 %v384, %v659
  %v666 = vsub.f32 %v389, %v659
  %v667 = vsub.f32 %v392, %v659
  %v668 = vsub.f32 %v397, %v659
  %v669 = vsub.f32 %v400, %v659
  %v670 = vsub.f32 %v405, %v659
  %v671 = vsub.f32 %v408, %v659
  %v672 = vsub.f32 %v413, %v659
  %v673 = vsub.f32 %v416, %v659
  %v674 = vsub.f32 %v421, %v659
  %v675 = vsub.f32 %v424, %v659
  %v676 = vsub.f32 %v429, %v659
  %v677 = vsub.f32 %v432, %v659
  %v678 = vsub.f32 %v437, %v659
  %v679 = vsub.f32 %v440, %v659
  %v680 = vsub.f32 %v445, %v659
  %v681 = vsub.f32 %v448, %v659
  %v682 = vsub.f32 %v453, %v659
  %v683 = vsub.f32 %v456, %v659
  %v684 = vsub.f32 %v461, %v659
  %v685 = vsub.f32 %v464, %v659
  %v686 = vsub.f32 %v469, %v659
  %v687 = vsub.f32 %v472, %v659
  %v688 = vsub.f32 %v477, %v659
  %v689 = vsub.f32 %v480, %v659
  %v690 = vsub.f32 %v485, %v659
  %v691 = vsub.f32 %v488, %v659
  %v692 = vsub.f32 %v493, %v659
  %v693 = vsub.f32 %v496, %v659
  %v694 = vsub.f32 %v501, %v659
  %v695 = vsub.f32 %v504, %v659
  %v696 = vsub.f32 %v509, %v659
  %v697 = vsub.f32 %v512, %v659
  %v698 = vsub.f32 %v517, %v659
  %v699 = vsub.f32 %v520, %v659
  %v700 = vsub.f32 %v525, %v659
  %v701 = vsub.f32 %v528, %v659
  %v702 = vsub.f32 %v533, %v659
  %v703 = vsub.f32 %v536, %v659
  %v704 = vsub.f32 %v541, %v659
  %v705 = vsub.f32 %v544, %v659
  %v706 = vsub.f32 %v549, %v659
  %v707 = vsub.f32 %v552, %v659
  %v708 = vsub.f32 %v557, %v659
  %v709 = vsub.f32 %v560, %v659
  %v710 = vsub.f32 %v565, %v659
  %v711 = vsub.f32 %v568, %v659
  %v712 = vsub.f32 %v573, %v659
  %v713 = vsub.f32 %v576, %v659
  %v714 = vsub.f32 %v581, %v659
  %v715 = vsub.f32 %v584, %v659
  %v716 = vsub.f32 %v589, %v659
  %v717 = vmul.f32 %v660, %v660
  %v718 = vmul.f32 %v661, %v661
  %v719 = vmul.f32 %v662, %v662
  %v720 = vmul.f32 %v663, %v663
  %v721 = vmul.f32 %v664, %v664
  %v722 = vmul.f32 %v665, %v665
  %v723 = vmul.f32 %v666, %v666
  %v724 = vmul.f32 %v667, %v667
  %v725 = vmul.f32 %v668, %v668
  %v726 = vmul.f32 %v669, %v669
  %v727 = vmul.f32 %v670, %v670
  %v728 = vmul.f32 %v671, %v671
  %v729 = vmul.f32 %v672, %v672
  %v730 = vmul.f32 %v673, %v673
  %v731 = vmul.f32 %v674, %v674
  %v732 = vmul.f32 %v675, %v675
  %v733 = vmul.f32 %v676, %v676
  %v734 = vmul.f32 %v677, %v677
  %v735 = vmul.f32 %v678, %v678
  %v736 = vmul.f32 %v679, %v679
  %v737 = vmul.f32 %v680, %v680
  %v738 = vmul.f32 %v681, %v681
  %v739 = vmul.f32 %v682, %v682
  %v740 = vmul.f32 %v683, %v683
  %v741 = vmul.f32 %v684, %v684
  %v742 = vmul.f32 %v685, %v685
  %v743 = vmul.f32 %v686, %v686
  %v744 = vmul.f32 %v687, %v687
  %v745 = vmul.f32 %v688, %v688
  %v746 = vmul.f32 %v689, %v689
  %v747 = vmul.f32 %v690, %v690
  %v748 = vmul.f32 %v691, %v691
  %v749 = vmul.f32 %v692, %v692
  %v750 = vmul.f32 %v693, %v693
  %v751 = vmul.f32 %v694, %v694
  %v752 = vmul.f32 %v695, %v695
  %v753 = vmul.f32 %v696, %v696
  %v754 = vmul.f32 %v697, %v697
  %v755 = vmul.f32 %v698, %v698
  %v756 = vmul.f32 %v699, %v699
  %v757 = vmul.f32 %v700, %v700
  %v758 = vmul.f32 %v701, %v701
  %v759 = vmul.f32 %v702, %v702
  %v760 = vmul.f32 %v703, %v703
  %v761 = vmul.f32 %v704, %v704
  %v762 = vmul.f32 %v705, %v705
  %v763 = vmul.f32 %v706, %v706
  %v764 = vmul.f32 %v707, %v707
  %v765 = vmul.f32 %v708, %v708
  %v766 = vmul.f32 %v709, %v709
  %v767 = vmul.f32 %v710, %v710
  %v768 = vmul.f32 %v711, %v711
  %v769 = vmul.f32 %v712, %v712
  %v770 = vmul.f32 %v713, %v713
  %v771 = vmul.f32 %v714, %v714
  %v772 = vmul.f32 %v715, %v715
  %v773 = vmul.f32 %v716, %v716
  %v774 = vadd.f32 %v717, %v718
  %v775 = vadd.f32 %v774, %v719
  %v776 = vadd.f32 %v775, %v720
  %v777 = vadd.f32 %v776, %v721
  %v778 = vadd.f32 %v777, %v722
  %v779 = vadd.f32 %v778, %v723
  %v780 = vadd.f32 %v779, %v724
  %v781 = vadd.f32 %v780, %v725
  %v782 = vadd.f32 %v781, %v726
  %v783 = vadd.f32 %v782, %v727
  %v784 = vadd.f32 %v783, %v728
  %v785 = vadd.f32 %v784, %v729
  %v786 = vadd.f32 %v785, %v730
  %v787 = vadd.f32 %v786, %v731
  %v788 = vadd.f32 %v787, %v732
  %v789 = vadd.f32 %v788, %v733
  %v790 = vadd.f32 %v789, %v734
  %v791 = vadd.f32 %v790, %v735
  %v792 = vadd.f32 %v791, %v736
  %v793 = vadd.f32 %v792, %v737
  %v794 = vadd.f32 %v793, %v738
  %v795 = vadd.f32 %v794, %v739
  %v796 = vadd.f32 %v795, %v740
  %v797 = vadd.f32 %v796, %v741
  %v798 = vadd.f32 %v797, %v742
  %v799 = vadd.f32 %v798, %v743
  %v800 = vadd.f32 %v799, %v744
  %v801 = vadd.f32 %v800, %v745
  %v802 = vadd.f32 %v801, %v746
  %v803 = vadd.f32 %v802, %v747
  %v804 = vadd.f32 %v803, %v748
  %v805 = vadd.f32 %v804, %v749
  %v806 = vadd.f32 %v805, %v750
  %v807 = vadd.f32 %v806, %v751
  %v808 = vadd.f32 %v807, %v752
  %v809 = vadd.f32 %v808, %v753
  %v810 = vadd.f32 %v809, %v754
  %v811 = vadd.f32 %v810, %v755
  %v812 = vadd.f32 %v811, %v756
  %v813 = vadd.f32 %v812, %v757
  %v814 = vadd.f32 %v813, %v758
  %v815 = vadd.f32 %v814, %v759
  %v816 = vadd.f32 %v815, %v760
  %v817 = vadd.f32 %v816, %v761
  %v818 = vadd.f32 %v817, %v762
  %v819 = vadd.f32 %v818, %v763
  %v820 = vadd.f32 %v819, %v764
  %v821 = vadd.f32 %v820, %v765
  %v822 = vadd.f32 %v821, %v766
  %v823 = vadd.f32 %v822, %v767
  %v824 = vadd.f32 %v823, %v768
  %v825 = vadd.f32 %v824, %v769
  %v826 = vadd.f32 %v825, %v770
  %v827 = vadd.f32 %v826, %v771
  %v828 = vadd.f32 %v827, %v772
  %v829 = vsel %vm649, %v773, 0.0
  %v830 = vadd.f32 %v828, %v829
  %v831 = vrot.slane %v830, 4
  %v832 = vadd.f32 %v830, %v831
  %v833 = vrot.slane %v832, 2
  %v834 = vadd.f32 %v832, %v833
  %v835 = vrot.slane %v834, 1
  %v836 = vadd.f32 %v834, %v835
  %v837 = vmul.f32 %v836, %v658
  %v838 = vadd.f32 %v837, 1e-05
  %v839 = vrsqrt.pop %v838
  %v840 = vmul.f32 %v660, %v839
  %v841 = vmul.f32 %v661, %v839
  %v842 = vmul.f32 %v662, %v839
  %v843 = vmul.f32 %v663, %v839
  %v844 = vmul.f32 %v664, %v839
  %v845 = vmul.f32 %v665, %v839
  %v846 = vmul.f32 %v666, %v839
  %v847 = vmul.f32 %v667, %v839
  %v848 = vmul.f32 %v668, %v839
  %v849 = vmul.f32 %v669, %v839
  %v850 = vmul.f32 %v670, %v839
  %v851 = vmul.f32 %v671, %v839
  %v852 = vmul.f32 %v672, %v839
  %v853 = vmul.f32 %v673, %v839
  %v854 = vmul.f32 %v674, %v839
  %v855 = vmul.f32 %v675, %v839
  %v856 = vmul.f32 %v676, %v839
  %v857 = vmul.f32 %v677, %v839
  %v858 = vmul.f32 %v678, %v839
  %v859 = vmul.f32 %v679, %v839
  %v860 = vmul.f32 %v680, %v839
  %v861 = vmul.f32 %v681, %v839
  %v862 = vmul.f32 %v682, %v839
  %v863 = vmul.f32 %v683, %v839
  %v864 = vmul.f32 %v684, %v839
  %v865 = vmul.f32 %v685, %v839
  %v866 = vmul.f32 %v686, %v839
  %v867 = vmul.f32 %v687, %v839
  %v868 = vmul.f32 %v688, %v839
  %v869 = vmul.f32 %v689, %v839
  %v870 = vmul.f32 %v690, %v839
  %v871 = vmul.f32 %v691, %v839
  %v872 = vmul.f32 %v692, %v839
  %v873 = vmul.f32 %v693, %v839
  %v874 = vmul.f32 %v694, %v839
  %v875 = vmul.f32 %v695, %v839
  %v876 = vmul.f32 %v696, %v839
  %v877 = vmul.f32 %v697, %v839
  %v878 = vmul.f32 %v698, %v839
  %v879 = vmul.f32 %v699, %v839
  %v880 = vmul.f32 %v700, %v839
  %v881 = vmul.f32 %v701, %v839
  %v882 = vmul.f32 %v702, %v839
  %v883 = vmul.f32 %v703, %v839
  %v884 = vmul.f32 %v704, %v839
  %v885 = vmul.f32 %v705, %v839
  %v886 = vmul.f32 %v706, %v839
  %v887 = vmul.f32 %v707, %v839
  %v888 = vmul.f32 %v708, %v839
  %v889 = vmul.f32 %v709, %v839
  %v890 = vmul.f32 %v710, %v839
  %v891 = vmul.f32 %v711, %v839
  %v892 = vmul.f32 %v712, %v839
  %v893 = vmul.f32 %v713, %v839
  %v894 = vmul.f32 %v714, %v839
  %v895 = vmul.f32 %v715, %v839
  %v896 = vmul.f32 %v716, %v839
  %v897 = vld [vmem:[%s2] sm:$0x1]
  %v899 = vlaneseq
  %v900 = vshrl.u32 %v899, 7
  %v901 = vsub.s32 0, %v900
  %v902 = vrot.slane %v897, %v901
  %v904 = vmul.f32 %v840, %v902
  %v905 = vmul.f32 %v841, %v902
  %v906 = vmul.f32 %v842, %v902
  %v907 = vmul.f32 %v843, %v902
  %v908 = vmul.f32 %v844, %v902
  %v909 = vmul.f32 %v845, %v902
  %v910 = vmul.f32 %v846, %v902
  %v911 = vmul.f32 %v847, %v902
  %v912 = vmul.f32 %v848, %v902
  %v913 = vmul.f32 %v849, %v902
  %v914 = vmul.f32 %v850, %v902
  %v915 = vmul.f32 %v851, %v902
  %v916 = vmul.f32 %v852, %v902
  %v917 = vmul.f32 %v853, %v902
  %v918 = vmul.f32 %v854, %v902
  %v919 = vmul.f32 %v855, %v902
  %v920 = vmul.f32 %v856, %v902
  %v921 = vmul.f32 %v857, %v902
  %v922 = vmul.f32 %v858, %v902
  %v923 = vmul.f32 %v859, %v902
  %v924 = vmul.f32 %v860, %v902
  %v925 = vmul.f32 %v861, %v902
  %v926 = vmul.f32 %v862, %v902
  %v927 = vmul.f32 %v863, %v902
  %v928 = vmul.f32 %v864, %v902
  %v929 = vmul.f32 %v865, %v902
  %v930 = vmul.f32 %v866, %v902
  %v931 = vmul.f32 %v867, %v902
  %v932 = vmul.f32 %v868, %v902
  %v933 = vmul.f32 %v869, %v902
  %v934 = vmul.f32 %v870, %v902
  %v935 = vmul.f32 %v871, %v902
  %v936 = vmul.f32 %v872, %v902
  %v937 = vmul.f32 %v873, %v902
  %v938 = vmul.f32 %v874, %v902
  %v939 = vmul.f32 %v875, %v902
  %v940 = vmul.f32 %v876, %v902
  %v941 = vmul.f32 %v877, %v902
  %v942 = vmul.f32 %v878, %v902
  %v943 = vmul.f32 %v879, %v902
  %v944 = vmul.f32 %v880, %v902
  %v945 = vmul.f32 %v881, %v902
  %v946 = vmul.f32 %v882, %v902
  %v947 = vmul.f32 %v883, %v902
  %v948 = vmul.f32 %v884, %v902
  %v949 = vmul.f32 %v885, %v902
  %v950 = vmul.f32 %v886, %v902
  %v951 = vmul.f32 %v887, %v902
  %v952 = vmul.f32 %v888, %v902
  %v953 = vmul.f32 %v889, %v902
  %v954 = vmul.f32 %v890, %v902
  %v955 = vmul.f32 %v891, %v902
  %v956 = vmul.f32 %v892, %v902
  %v957 = vmul.f32 %v893, %v902
  %v958 = vmul.f32 %v894, %v902
  %v959 = vmul.f32 %v895, %v902
  %v960 = vmul.f32 %v896, %v902
  %v961 = vld [vmem:[%s3] sm:$0x1]
  %v963 = vlaneseq
  %v964 = vshrl.u32 %v963, 7
  %v965 = vsub.s32 0, %v964
  %v966 = vrot.slane %v961, %v965
  %v968 = vadd.f32 %v904, %v966
  %v969 = vadd.f32 %v905, %v966
  %v970 = vadd.f32 %v906, %v966
  %v971 = vadd.f32 %v907, %v966
  %v972 = vadd.f32 %v908, %v966
  %v973 = vadd.f32 %v909, %v966
  %v974 = vadd.f32 %v910, %v966
  %v975 = vadd.f32 %v911, %v966
  %v976 = vadd.f32 %v912, %v966
  %v977 = vadd.f32 %v913, %v966
  %v978 = vadd.f32 %v914, %v966
  %v979 = vadd.f32 %v915, %v966
  %v980 = vadd.f32 %v916, %v966
  %v981 = vadd.f32 %v917, %v966
  %v982 = vadd.f32 %v918, %v966
  %v983 = vadd.f32 %v919, %v966
  %v984 = vadd.f32 %v920, %v966
  %v985 = vadd.f32 %v921, %v966
  %v986 = vadd.f32 %v922, %v966
  %v987 = vadd.f32 %v923, %v966
  %v988 = vadd.f32 %v924, %v966
  %v989 = vadd.f32 %v925, %v966
  %v990 = vadd.f32 %v926, %v966
  %v991 = vadd.f32 %v927, %v966
  %v992 = vadd.f32 %v928, %v966
  %v993 = vadd.f32 %v929, %v966
  %v994 = vadd.f32 %v930, %v966
  %v995 = vadd.f32 %v931, %v966
  %v996 = vadd.f32 %v932, %v966
  %v997 = vadd.f32 %v933, %v966
  %v998 = vadd.f32 %v934, %v966
  %v999 = vadd.f32 %v935, %v966
  %v1000 = vadd.f32 %v936, %v966
  %v1001 = vadd.f32 %v937, %v966
  %v1002 = vadd.f32 %v938, %v966
  %v1003 = vadd.f32 %v939, %v966
  %v1004 = vadd.f32 %v940, %v966
  %v1005 = vadd.f32 %v941, %v966
  %v1006 = vadd.f32 %v942, %v966
  %v1007 = vadd.f32 %v943, %v966
  %v1008 = vadd.f32 %v944, %v966
  %v1009 = vadd.f32 %v945, %v966
  %v1010 = vadd.f32 %v946, %v966
  %v1011 = vadd.f32 %v947, %v966
  %v1012 = vadd.f32 %v948, %v966
  %v1013 = vadd.f32 %v949, %v966
  %v1014 = vadd.f32 %v950, %v966
  %v1015 = vadd.f32 %v951, %v966
  %v1016 = vadd.f32 %v952, %v966
  %v1017 = vadd.f32 %v953, %v966
  %v1018 = vadd.f32 %v954, %v966
  %v1019 = vadd.f32 %v955, %v966
  %v1020 = vadd.f32 %v956, %v966
  %v1021 = vadd.f32 %v957, %v966
  %v1022 = vadd.f32 %v958, %v966
  %v1023 = vadd.f32 %v959, %v966
  %v1024 = vadd.f32 %v960, %v966
  %vm1025 = vcmp.gt.f32.partialorder %v968, 0.0
  %vm1026 = vcmp.gt.f32.partialorder %v969, 0.0
  %vm1027 = vcmp.gt.f32.partialorder %v970, 0.0
  %vm1028 = vcmp.gt.f32.partialorder %v971, 0.0
  %vm1029 = vcmp.gt.f32.partialorder %v972, 0.0
  %vm1030 = vcmp.gt.f32.partialorder %v973, 0.0
  %vm1031 = vcmp.gt.f32.partialorder %v974, 0.0
  %vm1032 = vcmp.gt.f32.partialorder %v975, 0.0
  %vm1033 = vcmp.gt.f32.partialorder %v976, 0.0
  %vm1034 = vcmp.gt.f32.partialorder %v977, 0.0
  %vm1035 = vcmp.gt.f32.partialorder %v978, 0.0
  %vm1036 = vcmp.gt.f32.partialorder %v979, 0.0
  %vm1037 = vcmp.gt.f32.partialorder %v980, 0.0
  %vm1038 = vcmp.gt.f32.partialorder %v981, 0.0
  %vm1039 = vcmp.gt.f32.partialorder %v982, 0.0
  %vm1040 = vcmp.gt.f32.partialorder %v983, 0.0
  %vm1041 = vcmp.gt.f32.partialorder %v984, 0.0
  %vm1042 = vcmp.gt.f32.partialorder %v985, 0.0
  %vm1043 = vcmp.gt.f32.partialorder %v986, 0.0
  %vm1044 = vcmp.gt.f32.partialorder %v987, 0.0
  %vm1045 = vcmp.gt.f32.partialorder %v988, 0.0
  %vm1046 = vcmp.gt.f32.partialorder %v989, 0.0
  %vm1047 = vcmp.gt.f32.partialorder %v990, 0.0
  %vm1048 = vcmp.gt.f32.partialorder %v991, 0.0
  %vm1049 = vcmp.gt.f32.partialorder %v992, 0.0
  %vm1050 = vcmp.gt.f32.partialorder %v993, 0.0
  %vm1051 = vcmp.gt.f32.partialorder %v994, 0.0
  %vm1052 = vcmp.gt.f32.partialorder %v995, 0.0
  %vm1053 = vcmp.gt.f32.partialorder %v996, 0.0
  %vm1054 = vcmp.gt.f32.partialorder %v997, 0.0
  %vm1055 = vcmp.gt.f32.partialorder %v998, 0.0
  %vm1056 = vcmp.gt.f32.partialorder %v999, 0.0
  %vm1057 = vcmp.gt.f32.partialorder %v1000, 0.0
  %vm1058 = vcmp.gt.f32.partialorder %v1001, 0.0
  %vm1059 = vcmp.gt.f32.partialorder %v1002, 0.0
  %vm1060 = vcmp.gt.f32.partialorder %v1003, 0.0
  %vm1061 = vcmp.gt.f32.partialorder %v1004, 0.0
  %vm1062 = vcmp.gt.f32.partialorder %v1005, 0.0
  %vm1063 = vcmp.gt.f32.partialorder %v1006, 0.0
  %vm1064 = vcmp.gt.f32.partialorder %v1007, 0.0
  %vm1065 = vcmp.gt.f32.partialorder %v1008, 0.0
  %vm1066 = vcmp.gt.f32.partialorder %v1009, 0.0
  %vm1067 = vcmp.gt.f32.partialorder %v1010, 0.0
  %vm1068 = vcmp.gt.f32.partialorder %v1011, 0.0
  %vm1069 = vcmp.gt.f32.partialorder %v1012, 0.0
  %vm1070 = vcmp.gt.f32.partialorder %v1013, 0.0
  %vm1071 = vcmp.gt.f32.partialorder %v1014, 0.0
  %vm1072 = vcmp.gt.f32.partialorder %v1015, 0.0
  %vm1073 = vcmp.gt.f32.partialorder %v1016, 0.0
  %vm1074 = vcmp.gt.f32.partialorder %v1017, 0.0
  %vm1075 = vcmp.gt.f32.partialorder %v1018, 0.0
  %vm1076 = vcmp.gt.f32.partialorder %v1019, 0.0
  %vm1077 = vcmp.gt.f32.partialorder %v1020, 0.0
  %vm1078 = vcmp.gt.f32.partialorder %v1021, 0.0
  %vm1079 = vcmp.gt.f32.partialorder %v1022, 0.0
  %vm1080 = vcmp.gt.f32.partialorder %v1023, 0.0
  %vm1081 = vcmp.gt.f32.partialorder %v1024, 0.0
  %v1082 = vmul.f32 %v968, 0.2
  %v1083 = vmul.f32 %v969, 0.2
  %v1084 = vmul.f32 %v970, 0.2
  %v1085 = vmul.f32 %v971, 0.2
  %v1086 = vmul.f32 %v972, 0.2
  %v1087 = vmul.f32 %v973, 0.2
  %v1088 = vmul.f32 %v974, 0.2
  %v1089 = vmul.f32 %v975, 0.2
  %v1090 = vmul.f32 %v976, 0.2
  %v1091 = vmul.f32 %v977, 0.2
  %v1092 = vmul.f32 %v978, 0.2
  %v1093 = vmul.f32 %v979, 0.2
  %v1094 = vmul.f32 %v980, 0.2
  %v1095 = vmul.f32 %v981, 0.2
  %v1096 = vmul.f32 %v982, 0.2
  %v1097 = vmul.f32 %v983, 0.2
  %v1098 = vmul.f32 %v984, 0.2
  %v1099 = vmul.f32 %v985, 0.2
  %v1100 = vmul.f32 %v986, 0.2
  %v1101 = vmul.f32 %v987, 0.2
  %v1102 = vmul.f32 %v988, 0.2
  %v1103 = vmul.f32 %v989, 0.2
  %v1104 = vmul.f32 %v990, 0.2
  %v1105 = vmul.f32 %v991, 0.2
  %v1106 = vmul.f32 %v992, 0.2
  %v1107 = vmul.f32 %v993, 0.2
  %v1108 = vmul.f32 %v994, 0.2
  %v1109 = vmul.f32 %v995, 0.2
  %v1110 = vmul.f32 %v996, 0.2
  %v1111 = vmul.f32 %v997, 0.2
  %v1112 = vmul.f32 %v998, 0.2
  %v1113 = vmul.f32 %v999, 0.2
  %v1114 = vmul.f32 %v1000, 0.2
  %v1115 = vmul.f32 %v1001, 0.2
  %v1116 = vmul.f32 %v1002, 0.2
  %v1117 = vmul.f32 %v1003, 0.2
  %v1118 = vmul.f32 %v1004, 0.2
  %v1119 = vmul.f32 %v1005, 0.2
  %v1120 = vmul.f32 %v1006, 0.2
  %v1121 = vmul.f32 %v1007, 0.2
  %v1122 = vmul.f32 %v1008, 0.2
  %v1123 = vmul.f32 %v1009, 0.2
  %v1124 = vmul.f32 %v1010, 0.2
  %v1125 = vmul.f32 %v1011, 0.2
  %v1126 = vmul.f32 %v1012, 0.2
  %v1127 = vmul.f32 %v1013, 0.2
  %v1128 = vmul.f32 %v1014, 0.2
  %v1129 = vmul.f32 %v1015, 0.2
  %v1130 = vmul.f32 %v1016, 0.2
  %v1131 = vmul.f32 %v1017, 0.2
  %v1132 = vmul.f32 %v1018, 0.2
  %v1133 = vmul.f32 %v1019, 0.2
  %v1134 = vmul.f32 %v1020, 0.2
  %v1135 = vmul.f32 %v1021, 0.2
  %v1136 = vmul.f32 %v1022, 0.2
  %v1137 = vmul.f32 %v1023, 0.2
  %v1138 = vmul.f32 %v1024, 0.2
  %v1139 = vsel %vm1025, %v968, %v1082
  %v1140 = vsel %vm1026, %v969, %v1083
  %v1141 = vsel %vm1027, %v970, %v1084
  %v1142 = vsel %vm1028, %v971, %v1085
  %v1143 = vsel %vm1029, %v972, %v1086
  %v1144 = vsel %vm1030, %v973, %v1087
  %v1145 = vsel %vm1031, %v974, %v1088
  %v1146 = vsel %vm1032, %v975, %v1089
  %v1147 = vsel %vm1033, %v976, %v1090
  %v1148 = vsel %vm1034, %v977, %v1091
  %v1149 = vsel %vm1035, %v978, %v1092
  %v1150 = vsel %vm1036, %v979, %v1093
  %v1151 = vsel %vm1037, %v980, %v1094
  %v1152 = vsel %vm1038, %v981, %v1095
  %v1153 = vsel %vm1039, %v982, %v1096
  %v1154 = vsel %vm1040, %v983, %v1097
  %v1155 = vsel %vm1041, %v984, %v1098
  %v1156 = vsel %vm1042, %v985, %v1099
  %v1157 = vsel %vm1043, %v986, %v1100
  %v1158 = vsel %vm1044, %v987, %v1101
  %v1159 = vsel %vm1045, %v988, %v1102
  %v1160 = vsel %vm1046, %v989, %v1103
  %v1161 = vsel %vm1047, %v990, %v1104
  %v1162 = vsel %vm1048, %v991, %v1105
  %v1163 = vsel %vm1049, %v992, %v1106
  %v1164 = vsel %vm1050, %v993, %v1107
  %v1165 = vsel %vm1051, %v994, %v1108
  %v1166 = vsel %vm1052, %v995, %v1109
  %v1167 = vsel %vm1053, %v996, %v1110
  %v1168 = vsel %vm1054, %v997, %v1111
  %v1169 = vsel %vm1055, %v998, %v1112
  %v1170 = vsel %vm1056, %v999, %v1113
  %v1171 = vsel %vm1057, %v1000, %v1114
  %v1172 = vsel %vm1058, %v1001, %v1115
  %v1173 = vsel %vm1059, %v1002, %v1116
  %v1174 = vsel %vm1060, %v1003, %v1117
  %v1175 = vsel %vm1061, %v1004, %v1118
  %v1176 = vsel %vm1062, %v1005, %v1119
  %v1177 = vsel %vm1063, %v1006, %v1120
  %v1178 = vsel %vm1064, %v1007, %v1121
  %v1179 = vsel %vm1065, %v1008, %v1122
  %v1180 = vsel %vm1066, %v1009, %v1123
  %v1181 = vsel %vm1067, %v1010, %v1124
  %v1182 = vsel %vm1068, %v1011, %v1125
  %v1183 = vsel %vm1069, %v1012, %v1126
  %v1184 = vsel %vm1070, %v1013, %v1127
  %v1185 = vsel %vm1071, %v1014, %v1128
  %v1186 = vsel %vm1072, %v1015, %v1129
  %v1187 = vsel %vm1073, %v1016, %v1130
  %v1188 = vsel %vm1074, %v1017, %v1131
  %v1189 = vsel %vm1075, %v1018, %v1132
  %v1190 = vsel %vm1076, %v1019, %v1133
  %v1191 = vsel %vm1077, %v1020, %v1134
  %v1192 = vsel %vm1078, %v1021, %v1135
  %v1193 = vsel %vm1079, %v1022, %v1136
  %v1194 = vsel %vm1080, %v1023, %v1137
  %v1195 = vsel %vm1081, %v1024, %v1138
  %v1196 = vpack.c.bf16 %v1140, %v1139
  %v1197 = vpack.c.bf16 %v1142, %v1141
  %v1198 = vpack.c.bf16 %v1144, %v1143
  %v1199 = vpack.c.bf16 %v1146, %v1145
  %v1200 = vpack.c.bf16 %v1148, %v1147
  %v1201 = vpack.c.bf16 %v1150, %v1149
  %v1202 = vpack.c.bf16 %v1152, %v1151
  %v1203 = vpack.c.bf16 %v1154, %v1153
  %v1204 = vpack.c.bf16 %v1156, %v1155
  %v1205 = vpack.c.bf16 %v1158, %v1157
  %v1206 = vpack.c.bf16 %v1160, %v1159
  %v1207 = vpack.c.bf16 %v1162, %v1161
  %v1208 = vpack.c.bf16 %v1164, %v1163
  %v1209 = vpack.c.bf16 %v1166, %v1165
  %v1210 = vpack.c.bf16 %v1168, %v1167
  %v1211 = vpack.c.bf16 %v1170, %v1169
  %v1212 = vpack.c.bf16 %v1172, %v1171
  %v1213 = vpack.c.bf16 %v1174, %v1173
  %v1214 = vpack.c.bf16 %v1176, %v1175
  %v1215 = vpack.c.bf16 %v1178, %v1177
  %v1216 = vpack.c.bf16 %v1180, %v1179
  %v1217 = vpack.c.bf16 %v1182, %v1181
  %v1218 = vpack.c.bf16 %v1184, %v1183
  %v1219 = vpack.c.bf16 %v1186, %v1185
  %v1220 = vpack.c.bf16 %v1188, %v1187
  %v1221 = vpack.c.bf16 %v1190, %v1189
  %v1222 = vpack.c.bf16 %v1192, %v1191
  %v1223 = vpack.c.bf16 %v1194, %v1193
  %v1224 = vpack.c.bf16 %v1195, %v1195
  %v1254 = vunpack.c.l.b16 %v1196
  %v1255 = vunpack.c.h.b16 %v1196
  %v1256 = vunpack.c.l.b16 %v1197
  %v1257 = vunpack.c.h.b16 %v1197
  %v1258 = vunpack.c.l.b16 %v1198
  %v1259 = vunpack.c.h.b16 %v1198
  %v1260 = vunpack.c.l.b16 %v1199
  %v1261 = vunpack.c.h.b16 %v1199
  %v1262 = vunpack.c.l.b16 %v1200
  %v1263 = vunpack.c.h.b16 %v1200
  %v1264 = vunpack.c.l.b16 %v1201
  %v1265 = vunpack.c.h.b16 %v1201
  %v1266 = vunpack.c.l.b16 %v1202
  %v1267 = vunpack.c.h.b16 %v1202
  %v1268 = vunpack.c.l.b16 %v1203
  %v1269 = vunpack.c.h.b16 %v1203
  %v1270 = vunpack.c.l.b16 %v1204
  %v1271 = vunpack.c.h.b16 %v1204
  %v1272 = vunpack.c.l.b16 %v1205
  %v1273 = vunpack.c.h.b16 %v1205
  %v1274 = vunpack.c.l.b16 %v1206
  %v1275 = vunpack.c.h.b16 %v1206
  %v1276 = vunpack.c.l.b16 %v1207
  %v1277 = vunpack.c.h.b16 %v1207
  %v1278 = vunpack.c.l.b16 %v1208
  %v1279 = vunpack.c.h.b16 %v1208
  %v1280 = vunpack.c.l.b16 %v1209
  %v1281 = vunpack.c.h.b16 %v1209
  %v1282 = vunpack.c.l.b16 %v1210
  %v1283 = vunpack.c.h.b16 %v1210
  %v1284 = vunpack.c.l.b16 %v1211
  %v1285 = vunpack.c.h.b16 %v1211
  %v1286 = vunpack.c.l.b16 %v1212
  %v1287 = vunpack.c.h.b16 %v1212
  %v1288 = vunpack.c.l.b16 %v1213
  %v1289 = vunpack.c.h.b16 %v1213
  %v1290 = vunpack.c.l.b16 %v1214
  %v1291 = vunpack.c.h.b16 %v1214
  %v1292 = vunpack.c.l.b16 %v1215
  %v1293 = vunpack.c.h.b16 %v1215
  %v1294 = vunpack.c.l.b16 %v1216
  %v1295 = vunpack.c.h.b16 %v1216
  %v1296 = vunpack.c.l.b16 %v1217
  %v1297 = vunpack.c.h.b16 %v1217
  %v1298 = vunpack.c.l.b16 %v1218
  %v1299 = vunpack.c.h.b16 %v1218
  %v1300 = vunpack.c.l.b16 %v1219
  %v1301 = vunpack.c.h.b16 %v1219
  %v1302 = vunpack.c.l.b16 %v1220
  %v1303 = vunpack.c.h.b16 %v1220
  %v1304 = vunpack.c.l.b16 %v1221
  %v1305 = vunpack.c.h.b16 %v1221
  %v1306 = vunpack.c.l.b16 %v1222
  %v1307 = vunpack.c.h.b16 %v1222
  %v1308 = vunpack.c.l.b16 %v1223
  %v1309 = vunpack.c.h.b16 %v1223
  %v1310 = vunpack.c.l.b16 %v1224
  %v1311 = vpack.c.b16 %v1254, %v1254
  %v1312 = vpack.c.b16 %v1255, %v1255
  %v1313 = vpack.c.b16 %v1256, %v1256
  %v1314 = vpack.c.b16 %v1257, %v1257
  %v1315 = vpack.c.b16 %v1258, %v1258
  %v1316 = vpack.c.b16 %v1259, %v1259
  %v1317 = vpack.c.b16 %v1260, %v1260
  %v1318 = vpack.c.b16 %v1261, %v1261
  %v1319 = vpack.c.b16 %v1262, %v1262
  %v1320 = vpack.c.b16 %v1263, %v1263
  %v1321 = vpack.c.b16 %v1264, %v1264
  %v1322 = vpack.c.b16 %v1265, %v1265
  %v1323 = vpack.c.b16 %v1266, %v1266
  %v1324 = vpack.c.b16 %v1267, %v1267
  %v1325 = vpack.c.b16 %v1268, %v1268
  %v1326 = vpack.c.b16 %v1269, %v1269
  %v1327 = vpack.c.b16 %v1270, %v1270
  %v1328 = vpack.c.b16 %v1271, %v1271
  %v1329 = vpack.c.b16 %v1272, %v1272
  %v1330 = vpack.c.b16 %v1273, %v1273
  %v1331 = vpack.c.b16 %v1274, %v1274
  %v1332 = vpack.c.b16 %v1275, %v1275
  %v1333 = vpack.c.b16 %v1276, %v1276
  %v1334 = vpack.c.b16 %v1277, %v1277
  %v1335 = vpack.c.b16 %v1278, %v1278
  %v1336 = vpack.c.b16 %v1279, %v1279
  %v1337 = vpack.c.b16 %v1280, %v1280
  %v1338 = vpack.c.b16 %v1281, %v1281
  %v1339 = vpack.c.b16 %v1282, %v1282
  %v1340 = vpack.c.b16 %v1283, %v1283
  %v1341 = vpack.c.b16 %v1284, %v1284
  %v1342 = vpack.c.b16 %v1285, %v1285
  %v1343 = vpack.c.b16 %v1286, %v1286
  %v1344 = vpack.c.b16 %v1287, %v1287
  %v1345 = vpack.c.b16 %v1288, %v1288
  %v1346 = vpack.c.b16 %v1289, %v1289
  %v1347 = vpack.c.b16 %v1290, %v1290
  %v1348 = vpack.c.b16 %v1291, %v1291
  %v1349 = vpack.c.b16 %v1292, %v1292
  %v1350 = vpack.c.b16 %v1293, %v1293
  %v1351 = vpack.c.b16 %v1294, %v1294
  %v1352 = vpack.c.b16 %v1295, %v1295
  %v1353 = vpack.c.b16 %v1296, %v1296
  %v1354 = vpack.c.b16 %v1297, %v1297
  %v1355 = vpack.c.b16 %v1298, %v1298
  %v1356 = vpack.c.b16 %v1299, %v1299
  %v1357 = vpack.c.b16 %v1300, %v1300
  %v1358 = vpack.c.b16 %v1301, %v1301
  %v1359 = vpack.c.b16 %v1302, %v1302
  %v1360 = vpack.c.b16 %v1303, %v1303
  %v1361 = vpack.c.b16 %v1304, %v1304
  %v1362 = vpack.c.b16 %v1305, %v1305
  %v1363 = vpack.c.b16 %v1306, %v1306
  %v1364 = vpack.c.b16 %v1307, %v1307
  %v1365 = vpack.c.b16 %v1308, %v1308
  %v1366 = vpack.c.b16 %v1309, %v1309
  %v1367 = vpack.c.b16 %v1310, %v1310
  %1425 = vst [vmem:[%s4] sm:$0xf] %v1311
  %1426 = vst [vmem:[%s4 + $0x4] sm:$0xf] %v1312
  %1427 = vst [vmem:[%s4 + $0x8] sm:$0xf] %v1313
  %1428 = vst [vmem:[%s4 + $0xc] sm:$0xf] %v1314
  %1429 = vst [vmem:[%s4 + $0x10] sm:$0xf] %v1315
  %1430 = vst [vmem:[%s4 + $0x14] sm:$0xf] %v1316
  %1431 = vst [vmem:[%s4 + $0x18] sm:$0xf] %v1317
  %1432 = vst [vmem:[%s4 + $0x1c] sm:$0xf] %v1318
  %1433 = vst [vmem:[%s4 + $0x20] sm:$0xf] %v1319
  %1434 = vst [vmem:[%s4 + $0x24] sm:$0xf] %v1320
  %1435 = vst [vmem:[%s4 + $0x28] sm:$0xf] %v1321
  %1436 = vst [vmem:[%s4 + $0x2c] sm:$0xf] %v1322
  %1437 = vst [vmem:[%s4 + $0x30] sm:$0xf] %v1323
  %1438 = vst [vmem:[%s4 + $0x34] sm:$0xf] %v1324
  %1439 = vst [vmem:[%s4 + $0x38] sm:$0xf] %v1325
  %1440 = vst [vmem:[%s4 + $0x3c] sm:$0xf] %v1326
  %1441 = vst [vmem:[%s4 + $0x40] sm:$0xf] %v1327
  %1442 = vst [vmem:[%s4 + $0x44] sm:$0xf] %v1328
  %1443 = vst [vmem:[%s4 + $0x48] sm:$0xf] %v1329
  %1444 = vst [vmem:[%s4 + $0x4c] sm:$0xf] %v1330
  %1445 = vst [vmem:[%s4 + $0x50] sm:$0xf] %v1331
  %1446 = vst [vmem:[%s4 + $0x54] sm:$0xf] %v1332
  %1447 = vst [vmem:[%s4 + $0x58] sm:$0xf] %v1333
  %1448 = vst [vmem:[%s4 + $0x5c] sm:$0xf] %v1334
  %1449 = vst [vmem:[%s4 + $0x60] sm:$0xf] %v1335
  %1450 = vst [vmem:[%s4 + $0x64] sm:$0xf] %v1336
  %1451 = vst [vmem:[%s4 + $0x68] sm:$0xf] %v1337
  %1452 = vst [vmem:[%s4 + $0x6c] sm:$0xf] %v1338
  %1453 = vst [vmem:[%s4 + $0x70] sm:$0xf] %v1339
  %1454 = vst [vmem:[%s4 + $0x74] sm:$0xf] %v1340
  %1455 = vst [vmem:[%s4 + $0x78] sm:$0xf] %v1341
  %1456 = vst [vmem:[%s4 + $0x7c] sm:$0xf] %v1342
  %1457 = vst [vmem:[%s4 + $0x80] sm:$0xf] %v1343
  %1458 = vst [vmem:[%s4 + $0x84] sm:$0xf] %v1344
  %1459 = vst [vmem:[%s4 + $0x88] sm:$0xf] %v1345
  %1460 = vst [vmem:[%s4 + $0x8c] sm:$0xf] %v1346
  %1461 = vst [vmem:[%s4 + $0x90] sm:$0xf] %v1347
  %1462 = vst [vmem:[%s4 + $0x94] sm:$0xf] %v1348
  %1463 = vst [vmem:[%s4 + $0x98] sm:$0xf] %v1349
  %1464 = vst [vmem:[%s4 + $0x9c] sm:$0xf] %v1350
  %1465 = vst [vmem:[%s4 + $0xa0] sm:$0xf] %v1351
  %1466 = vst [vmem:[%s4 + $0xa4] sm:$0xf] %v1352
  %1467 = vst [vmem:[%s4 + $0xa8] sm:$0xf] %v1353
  %1468 = vst [vmem:[%s4 + $0xac] sm:$0xf] %v1354
  %1469 = vst [vmem:[%s4 + $0xb0] sm:$0xf] %v1355
  %1470 = vst [vmem:[%s4 + $0xb4] sm:$0xf] %v1356
  %1471 = vst [vmem:[%s4 + $0xb8] sm:$0xf] %v1357
  %1472 = vst [vmem:[%s4 + $0xbc] sm:$0xf] %v1358
  %1473 = vst [vmem:[%s4 + $0xc0] sm:$0xf] %v1359
  %1474 = vst [vmem:[%s4 + $0xc4] sm:$0xf] %v1360
  %1475 = vst [vmem:[%s4 + $0xc8] sm:$0xf] %v1361
  %1476 = vst [vmem:[%s4 + $0xcc] sm:$0xf] %v1362
  %1477 = vst [vmem:[%s4 + $0xd0] sm:$0xf] %v1363
  %1478 = vst [vmem:[%s4 + $0xd4] sm:$0xf] %v1364
  %1479 = vst [vmem:[%s4 + $0xd8] sm:$0xf] %v1365
  %1480 = vst [vmem:[%s4 + $0xdc] sm:$0xf] %v1366
  %1481 = vst [vmem:[%s4 + $0xe0] sm:$0x1] %v1367
  // Predicated region
  $region18: #{patch_discriminator_forward.3} parent=0 // pred_check
    _
  $region19: #{patch_discriminator_forward.3} parent=0 // pred_check_branch
    %1483 = sbr.rel (0) target = $region21
  $region20: #{patch_discriminator_forward.3} parent=0 // pred_region
    _
  $region21: #{patch_discriminator_forward.3} parent=0 // pred_fallthru
    _
  // Predicated region
  $region22: #{patch_discriminator_forward.3} parent=0 // pred_check
    _
  $region23: #{patch_discriminator_forward.3} parent=0 // pred_check_branch
    %1485 = sbr.rel (0) target = $region25
  $region24: #{patch_discriminator_forward.3} parent=0 // pred_region
    _
  $region25: #{patch_discriminator_forward.3} parent=0 // pred_fallthru
    _

// kernel: patch_discriminator_forward.4
$region0: #{patch_discriminator_forward.4}
  #allocation0 [shape = 'u32[]', space=smem, size = 0x4, offset = 0x4, fixed_abs, tag = 'smem constant byte address 0x4 - core index']
  #allocation1 [shape = 'u32[144,128]{1,0:T(1,128)}', space=vmem, size = 0x12000, scoped, tag = 'internal scratch']
  %s0 = inlined_call_operand.vmem [shape: bf16[72,2048], index: 0, kind: input, shape index: {}]
  %s1 = inlined_call_operand.vmem [shape: bf16[2048,128], index: 1, kind: input, shape index: {}]
  %s2 = inlined_call_operand.vmem [shape: f32[1,128], index: 2, kind: input, shape index: {}]
  %s3 = inlined_call_operand.vmem [shape: f32[1,128], index: 3, kind: input, shape index: {}]
  %s4 = inlined_call_operand.vmem [shape: bf16[72,128], index: 4, kind: output, shape index: {}]
  %s5 = sld [smem:[#allocation0]]
  $region26: #{patch_discriminator_forward.4} parent=0
    _
  %s7 = ssub.s32 1, %s5
  %s8 = scalar_select 0, %s7, %s5
  // Predicated region
  $region2: #{patch_discriminator_forward.4} parent=0 // pred_check
    _
  $region3: #{patch_discriminator_forward.4} parent=0 // pred_check_branch
    %10 = sbr.rel (0) target = $region5
  $region4: #{patch_discriminator_forward.4} parent=0 // pred_region
    _
  $region5: #{patch_discriminator_forward.4} parent=0 // pred_fallthru
    _
  // Predicated region
  $region6: #{patch_discriminator_forward.4} parent=0 // pred_check
    _
  $region7: #{patch_discriminator_forward.4} parent=0 // pred_check_branch
    %12 = sbr.rel (0) target = $region9
  $region8: #{patch_discriminator_forward.4} parent=0 // pred_region
    _
  $region9: #{patch_discriminator_forward.4} parent=0 // pred_fallthru
    _
  // Predicated region
  $region10: #{patch_discriminator_forward.4} parent=0 // pred_check
    _
  $region11: #{patch_discriminator_forward.4} parent=0 // pred_check_branch
    %14 = sbr.rel (0) target = $region13
  $region12: #{patch_discriminator_forward.4} parent=0 // pred_region
    _
  $region13: #{patch_discriminator_forward.4} parent=0 // pred_fallthru
    _
  // Predicated region
  $region14: #{patch_discriminator_forward.4} parent=0 // pred_check
    _
  $region15: #{patch_discriminator_forward.4} parent=0 // pred_check_branch
    %16 = sbr.rel (0) target = $region17
  $region16: #{patch_discriminator_forward.4} parent=0 // pred_region
    _
  $region17: #{patch_discriminator_forward.4} parent=0 // pred_fallthru
    _
  %v18 = vld [vmem:[%s0] sm:$0xff]
  %v19 = vld [vmem:[%s0 + $0x8] sm:$0xff]
  %v20 = vld [vmem:[%s0 + $0x10] sm:$0xff]
  %v21 = vld [vmem:[%s0 + $0x18] sm:$0xff]
  %v22 = vld [vmem:[%s0 + $0x20] sm:$0xff]
  %v23 = vld [vmem:[%s0 + $0x28] sm:$0xff]
  %v24 = vld [vmem:[%s0 + $0x30] sm:$0xff]
  %v25 = vld [vmem:[%s0 + $0x38] sm:$0xff]
  %v26 = vld [vmem:[%s0 + $0x40] sm:$0xff]
  %v27 = vld [vmem:[%s0 + $0x48] sm:$0xff]
  %v28 = vld [vmem:[%s0 + $0x50] sm:$0xff]
  %v29 = vld [vmem:[%s0 + $0x58] sm:$0xff]
  %v30 = vld [vmem:[%s0 + $0x60] sm:$0xff]
  %v31 = vld [vmem:[%s0 + $0x68] sm:$0xff]
  %v32 = vld [vmem:[%s0 + $0x70] sm:$0xff]
  %v33 = vld [vmem:[%s0 + $0x78] sm:$0xff]
  %v34 = vld [vmem:[%s0 + $0x80] sm:$0xff]
  %v35 = vld [vmem:[%s0 + $0x88] sm:$0xff]
  %v36 = vld [vmem:[%s0 + $0x90] sm:$0xff]
  %v37 = vld [vmem:[%s0 + $0x98] sm:$0xff]
  %v38 = vld [vmem:[%s0 + $0xa0] sm:$0xff]
  %v39 = vld [vmem:[%s0 + $0xa8] sm:$0xff]
  %v40 = vld [vmem:[%s0 + $0xb0] sm:$0xff]
  %v41 = vld [vmem:[%s0 + $0xb8] sm:$0xff]
  %v42 = vld [vmem:[%s0 + $0xc0] sm:$0xff]
  %v43 = vld [vmem:[%s0 + $0xc8] sm:$0xff]
  %v44 = vld [vmem:[%s0 + $0xd0] sm:$0xff]
  %v45 = vld [vmem:[%s0 + $0xd8] sm:$0xff]
  %v46 = vld [vmem:[%s0 + $0xe0] sm:$0xff]
  %v47 = vld [vmem:[%s0 + $0xe8] sm:$0xff]
  %v48 = vld [vmem:[%s0 + $0xf0] sm:$0xff]
  %v49 = vld [vmem:[%s0 + $0xf8] sm:$0xff]
  %v50 = vld [vmem:[%s0 + $0x100] sm:$0xff]
  %v51 = vld [vmem:[%s0 + $0x108] sm:$0xff]
  %v52 = vld [vmem:[%s0 + $0x110] sm:$0xff]
  %v53 = vld [vmem:[%s0 + $0x118] sm:$0xff]
  %v54 = vld [vmem:[%s0 + $0x120] sm:$0xff]
  %v55 = vld [vmem:[%s0 + $0x128] sm:$0xff]
  %v56 = vld [vmem:[%s0 + $0x130] sm:$0xff]
  %v57 = vld [vmem:[%s0 + $0x138] sm:$0xff]
  %v58 = vld [vmem:[%s0 + $0x140] sm:$0xff]
  %v59 = vld [vmem:[%s0 + $0x148] sm:$0xff]
  %v60 = vld [vmem:[%s0 + $0x150] sm:$0xff]
  %v61 = vld [vmem:[%s0 + $0x158] sm:$0xff]
  %v62 = vld [vmem:[%s0 + $0x160] sm:$0xff]
  %v63 = vld [vmem:[%s0 + $0x168] sm:$0xff]
  %v64 = vld [vmem:[%s0 + $0x170] sm:$0xff]
  %v65 = vld [vmem:[%s0 + $0x178] sm:$0xff]
  %v66 = vld [vmem:[%s0 + $0x180] sm:$0xff]
  %v67 = vld [vmem:[%s0 + $0x188] sm:$0xff]
  %v68 = vld [vmem:[%s0 + $0x190] sm:$0xff]
  %v69 = vld [vmem:[%s0 + $0x198] sm:$0xff]
  %v70 = vld [vmem:[%s0 + $0x1a0] sm:$0xff]
  %v71 = vld [vmem:[%s0 + $0x1a8] sm:$0xff]
  %v72 = vld [vmem:[%s0 + $0x1b0] sm:$0xff]
  %v73 = vld [vmem:[%s0 + $0x1b8] sm:$0xff]
  %v74 = vld [vmem:[%s0 + $0x1c0] sm:$0xff]
  %v75 = vld [vmem:[%s0 + $0x1c8] sm:$0xff]
  %v76 = vld [vmem:[%s0 + $0x1d0] sm:$0xff]
  %v77 = vld [vmem:[%s0 + $0x1d8] sm:$0xff]
  %v78 = vld [vmem:[%s0 + $0x1e0] sm:$0xff]
  %v79 = vld [vmem:[%s0 + $0x1e8] sm:$0xff]
  %v80 = vld [vmem:[%s0 + $0x1f0] sm:$0xff]
  %v81 = vld [vmem:[%s0 + $0x1f8] sm:$0xff]
  %v82 = vld [vmem:[%s0 + $0x200] sm:$0xff]
  %v83 = vld [vmem:[%s0 + $0x208] sm:$0xff]
  %v84 = vld [vmem:[%s0 + $0x210] sm:$0xff]
  %v85 = vld [vmem:[%s0 + $0x218] sm:$0xff]
  %v86 = vld [vmem:[%s0 + $0x220] sm:$0xff]
  %v87 = vld [vmem:[%s0 + $0x228] sm:$0xff]
  %v88 = vld [vmem:[%s0 + $0x230] sm:$0xff]
  %v89 = vld [vmem:[%s0 + $0x238] sm:$0xff]
  %v90 = vld [vmem:[%s1] sm:$0xf]
  %v91 = vld [vmem:[%s1 + $0x4] sm:$0xf]
  %v92 = vld [vmem:[%s1 + $0x8] sm:$0xf]
  %v93 = vld [vmem:[%s1 + $0xc] sm:$0xf]
  %v94 = vld [vmem:[%s1 + $0x10] sm:$0xf]
  %v95 = vld [vmem:[%s1 + $0x14] sm:$0xf]
  %v96 = vld [vmem:[%s1 + $0x18] sm:$0xf]
  %v97 = vld [vmem:[%s1 + $0x1c] sm:$0xf]
  %v98 = vld [vmem:[%s1 + $0x20] sm:$0xf]
  %v99 = vld [vmem:[%s1 + $0x24] sm:$0xf]
  %v100 = vld [vmem:[%s1 + $0x28] sm:$0xf]
  %v101 = vld [vmem:[%s1 + $0x2c] sm:$0xf]
  %v102 = vld [vmem:[%s1 + $0x30] sm:$0xf]
  %v103 = vld [vmem:[%s1 + $0x34] sm:$0xf]
  %v104 = vld [vmem:[%s1 + $0x38] sm:$0xf]
  %v105 = vld [vmem:[%s1 + $0x3c] sm:$0xf]
  %v106 = vld [vmem:[%s1 + $0x40] sm:$0xf]
  %v107 = vld [vmem:[%s1 + $0x44] sm:$0xf]
  %v108 = vld [vmem:[%s1 + $0x48] sm:$0xf]
  %v109 = vld [vmem:[%s1 + $0x4c] sm:$0xf]
  %v110 = vld [vmem:[%s1 + $0x50] sm:$0xf]
  %v111 = vld [vmem:[%s1 + $0x54] sm:$0xf]
  %v112 = vld [vmem:[%s1 + $0x58] sm:$0xf]
  %v113 = vld [vmem:[%s1 + $0x5c] sm:$0xf]
  %v114 = vld [vmem:[%s1 + $0x60] sm:$0xf]
  %v115 = vld [vmem:[%s1 + $0x64] sm:$0xf]
  %v116 = vld [vmem:[%s1 + $0x68] sm:$0xf]
  %v117 = vld [vmem:[%s1 + $0x6c] sm:$0xf]
  %v118 = vld [vmem:[%s1 + $0x70] sm:$0xf]
  %v119 = vld [vmem:[%s1 + $0x74] sm:$0xf]
  %v120 = vld [vmem:[%s1 + $0x78] sm:$0xf]
  %v121 = vld [vmem:[%s1 + $0x7c] sm:$0xf]
  %v122 = vld [vmem:[%s1 + $0x80] sm:$0xf]
  %v123 = vld [vmem:[%s1 + $0x84] sm:$0xf]
  %v124 = vld [vmem:[%s1 + $0x88] sm:$0xf]
  %v125 = vld [vmem:[%s1 + $0x8c] sm:$0xf]
  %v126 = vld [vmem:[%s1 + $0x90] sm:$0xf]
  %v127 = vld [vmem:[%s1 + $0x94] sm:$0xf]
  %v128 = vld [vmem:[%s1 + $0x98] sm:$0xf]
  %v129 = vld [vmem:[%s1 + $0x9c] sm:$0xf]
  %v130 = vld [vmem:[%s1 + $0xa0] sm:$0xf]
  %v131 = vld [vmem:[%s1 + $0xa4] sm:$0xf]
  %v132 = vld [vmem:[%s1 + $0xa8] sm:$0xf]
  %v133 = vld [vmem:[%s1 + $0xac] sm:$0xf]
  %v134 = vld [vmem:[%s1 + $0xb0] sm:$0xf]
  %v135 = vld [vmem:[%s1 + $0xb4] sm:$0xf]
  %v136 = vld [vmem:[%s1 + $0xb8] sm:$0xf]
  %v137 = vld [vmem:[%s1 + $0xbc] sm:$0xf]
  %v138 = vld [vmem:[%s1 + $0xc0] sm:$0xf]
  %v139 = vld [vmem:[%s1 + $0xc4] sm:$0xf]
  %v140 = vld [vmem:[%s1 + $0xc8] sm:$0xf]
  %v141 = vld [vmem:[%s1 + $0xcc] sm:$0xf]
  %v142 = vld [vmem:[%s1 + $0xd0] sm:$0xf]
  %v143 = vld [vmem:[%s1 + $0xd4] sm:$0xf]
  %v144 = vld [vmem:[%s1 + $0xd8] sm:$0xf]
  %v145 = vld [vmem:[%s1 + $0xdc] sm:$0xf]
  %v146 = vld [vmem:[%s1 + $0xe0] sm:$0xf]
  %v147 = vld [vmem:[%s1 + $0xe4] sm:$0xf]
  %v148 = vld [vmem:[%s1 + $0xe8] sm:$0xf]
  %v149 = vld [vmem:[%s1 + $0xec] sm:$0xf]
  %v150 = vld [vmem:[%s1 + $0xf0] sm:$0xf]
  %v151 = vld [vmem:[%s1 + $0xf4] sm:$0xf]
  %v152 = vld [vmem:[%s1 + $0xf8] sm:$0xf]
  %v153 = vld [vmem:[%s1 + $0xfc] sm:$0xf]
  %v154 = vld [vmem:[%s1 + $0x100] sm:$0xf]
  %v155 = vld [vmem:[%s1 + $0x104] sm:$0xf]
  %v156 = vld [vmem:[%s1 + $0x108] sm:$0xf]
  %v157 = vld [vmem:[%s1 + $0x10c] sm:$0xf]
  %v158 = vld [vmem:[%s1 + $0x110] sm:$0xf]
  %v159 = vld [vmem:[%s1 + $0x114] sm:$0xf]
  %v160 = vld [vmem:[%s1 + $0x118] sm:$0xf]
  %v161 = vld [vmem:[%s1 + $0x11c] sm:$0xf]
  %v162 = vld [vmem:[%s1 + $0x120] sm:$0xf]
  %v163 = vld [vmem:[%s1 + $0x124] sm:$0xf]
  %v164 = vld [vmem:[%s1 + $0x128] sm:$0xf]
  %v165 = vld [vmem:[%s1 + $0x12c] sm:$0xf]
  %v166 = vld [vmem:[%s1 + $0x130] sm:$0xf]
  %v167 = vld [vmem:[%s1 + $0x134] sm:$0xf]
  %v168 = vld [vmem:[%s1 + $0x138] sm:$0xf]
  %v169 = vld [vmem:[%s1 + $0x13c] sm:$0xf]
  %v170 = vld [vmem:[%s1 + $0x140] sm:$0xf]
  %v171 = vld [vmem:[%s1 + $0x144] sm:$0xf]
  %v172 = vld [vmem:[%s1 + $0x148] sm:$0xf]
  %v173 = vld [vmem:[%s1 + $0x14c] sm:$0xf]
  %v174 = vld [vmem:[%s1 + $0x150] sm:$0xf]
  %v175 = vld [vmem:[%s1 + $0x154] sm:$0xf]
  %v176 = vld [vmem:[%s1 + $0x158] sm:$0xf]
  %v177 = vld [vmem:[%s1 + $0x15c] sm:$0xf]
  %v178 = vld [vmem:[%s1 + $0x160] sm:$0xf]
  %v179 = vld [vmem:[%s1 + $0x164] sm:$0xf]
  %v180 = vld [vmem:[%s1 + $0x168] sm:$0xf]
  %v181 = vld [vmem:[%s1 + $0x16c] sm:$0xf]
  %v182 = vld [vmem:[%s1 + $0x170] sm:$0xf]
  %v183 = vld [vmem:[%s1 + $0x174] sm:$0xf]
  %v184 = vld [vmem:[%s1 + $0x178] sm:$0xf]
  %v185 = vld [vmem:[%s1 + $0x17c] sm:$0xf]
  %v186 = vld [vmem:[%s1 + $0x180] sm:$0xf]
  %v187 = vld [vmem:[%s1 + $0x184] sm:$0xf]
  %v188 = vld [vmem:[%s1 + $0x188] sm:$0xf]
  %v189 = vld [vmem:[%s1 + $0x18c] sm:$0xf]
  %v190 = vld [vmem:[%s1 + $0x190] sm:$0xf]
  %v191 = vld [vmem:[%s1 + $0x194] sm:$0xf]
  %v192 = vld [vmem:[%s1 + $0x198] sm:$0xf]
  %v193 = vld [vmem:[%s1 + $0x19c] sm:$0xf]
  %v194 = vld [vmem:[%s1 + $0x1a0] sm:$0xf]
  %v195 = vld [vmem:[%s1 + $0x1a4] sm:$0xf]
  %v196 = vld [vmem:[%s1 + $0x1a8] sm:$0xf]
  %v197 = vld [vmem:[%s1 + $0x1ac] sm:$0xf]
  %v198 = vld [vmem:[%s1 + $0x1b0] sm:$0xf]
  %v199 = vld [vmem:[%s1 + $0x1b4] sm:$0xf]
  %v200 = vld [vmem:[%s1 + $0x1b8] sm:$0xf]
  %v201 = vld [vmem:[%s1 + $0x1bc] sm:$0xf]
  %v202 = vld [vmem:[%s1 + $0x1c0] sm:$0xf]
  %v203 = vld [vmem:[%s1 + $0x1c4] sm:$0xf]
  %v204 = vld [vmem:[%s1 + $0x1c8] sm:$0xf]
  %v205 = vld [vmem:[%s1 + $0x1cc] sm:$0xf]
  %v206 = vld [vmem:[%s1 + $0x1d0] sm:$0xf]
  %v207 = vld [vmem:[%s1 + $0x1d4] sm:$0xf]
  %v208 = vld [vmem:[%s1 + $0x1d8] sm:$0xf]
  %v209 = vld [vmem:[%s1 + $0x1dc] sm:$0xf]
  %v210 = vld [vmem:[%s1 + $0x1e0] sm:$0xf]
  %v211 = vld [vmem:[%s1 + $0x1e4] sm:$0xf]
  %v212 = vld [vmem:[%s1 + $0x1e8] sm:$0xf]
  %v213 = vld [vmem:[%s1 + $0x1ec] sm:$0xf]
  %v214 = vld [vmem:[%s1 + $0x1f0] sm:$0xf]
  %v215 = vld [vmem:[%s1 + $0x1f4] sm:$0xf]
  %v216 = vld [vmem:[%s1 + $0x1f8] sm:$0xf]
  %v217 = vld [vmem:[%s1 + $0x1fc] sm:$0xf]
  %v218 = vld [vmem:[%s1 + $0x200] sm:$0xf]
  %v219 = vld [vmem:[%s1 + $0x204] sm:$0xf]
  %v220 = vld [vmem:[%s1 + $0x208] sm:$0xf]
  %v221 = vld [vmem:[%s1 + $0x20c] sm:$0xf]
  %v222 = vld [vmem:[%s1 + $0x210] sm:$0xf]
  %v223 = vld [vmem:[%s1 + $0x214] sm:$0xf]
  %v224 = vld [vmem:[%s1 + $0x218] sm:$0xf]
  %v225 = vld [vmem:[%s1 + $0x21c] sm:$0xf]
  %v226 = vld [vmem:[%s1 + $0x220] sm:$0xf]
  %v227 = vld [vmem:[%s1 + $0x224] sm:$0xf]
  %v228 = vld [vmem:[%s1 + $0x228] sm:$0xf]
  %v229 = vld [vmem:[%s1 + $0x22c] sm:$0xf]
  %v230 = vld [vmem:[%s1 + $0x230] sm:$0xf]
  %v231 = vld [vmem:[%s1 + $0x234] sm:$0xf]
  %v232 = vld [vmem:[%s1 + $0x238] sm:$0xf]
  %v233 = vld [vmem:[%s1 + $0x23c] sm:$0xf]
  %v234 = vld [vmem:[%s1 + $0x240] sm:$0xf]
  %v235 = vld [vmem:[%s1 + $0x244] sm:$0xf]
  %v236 = vld [vmem:[%s1 + $0x248] sm:$0xf]
  %v237 = vld [vmem:[%s1 + $0x24c] sm:$0xf]
  %v238 = vld [vmem:[%s1 + $0x250] sm:$0xf]
  %v239 = vld [vmem:[%s1 + $0x254] sm:$0xf]
  %v240 = vld [vmem:[%s1 + $0x258] sm:$0xf]
  %v241 = vld [vmem:[%s1 + $0x25c] sm:$0xf]
  %v242 = vld [vmem:[%s1 + $0x260] sm:$0xf]
  %v243 = vld [vmem:[%s1 + $0x264] sm:$0xf]
  %v244 = vld [vmem:[%s1 + $0x268] sm:$0xf]
  %v245 = vld [vmem:[%s1 + $0x26c] sm:$0xf]
  %v246 = vld [vmem:[%s1 + $0x270] sm:$0xf]
  %v247 = vld [vmem:[%s1 + $0x274] sm:$0xf]
  %v248 = vld [vmem:[%s1 + $0x278] sm:$0xf]
  %v249 = vld [vmem:[%s1 + $0x27c] sm:$0xf]
  %v250 = vld [vmem:[%s1 + $0x280] sm:$0xf]
  %v251 = vld [vmem:[%s1 + $0x284] sm:$0xf]
  %v252 = vld [vmem:[%s1 + $0x288] sm:$0xf]
  %v253 = vld [vmem:[%s1 + $0x28c] sm:$0xf]
  %v254 = vld [vmem:[%s1 + $0x290] sm:$0xf]
  %v255 = vld [vmem:[%s1 + $0x294] sm:$0xf]
  %v256 = vld [vmem:[%s1 + $0x298] sm:$0xf]
  %v257 = vld [vmem:[%s1 + $0x29c] sm:$0xf]
  %v258 = vld [vmem:[%s1 + $0x2a0] sm:$0xf]
  %v259 = vld [vmem:[%s1 + $0x2a4] sm:$0xf]
  %v260 = vld [vmem:[%s1 + $0x2a8] sm:$0xf]
  %v261 = vld [vmem:[%s1 + $0x2ac] sm:$0xf]
  %v262 = vld [vmem:[%s1 + $0x2b0] sm:$0xf]
  %v263 = vld [vmem:[%s1 + $0x2b4] sm:$0xf]
  %v264 = vld [vmem:[%s1 + $0x2b8] sm:$0xf]
  %v265 = vld [vmem:[%s1 + $0x2bc] sm:$0xf]
  %v266 = vld [vmem:[%s1 + $0x2c0] sm:$0xf]
  %v267 = vld [vmem:[%s1 + $0x2c4] sm:$0xf]
  %v268 = vld [vmem:[%s1 + $0x2c8] sm:$0xf]
  %v269 = vld [vmem:[%s1 + $0x2cc] sm:$0xf]
  %v270 = vld [vmem:[%s1 + $0x2d0] sm:$0xf]
  %v271 = vld [vmem:[%s1 + $0x2d4] sm:$0xf]
  %v272 = vld [vmem:[%s1 + $0x2d8] sm:$0xf]
  %v273 = vld [vmem:[%s1 + $0x2dc] sm:$0xf]
  %v274 = vld [vmem:[%s1 + $0x2e0] sm:$0xf]
  %v275 = vld [vmem:[%s1 + $0x2e4] sm:$0xf]
  %v276 = vld [vmem:[%s1 + $0x2e8] sm:$0xf]
  %v277 = vld [vmem:[%s1 + $0x2ec] sm:$0xf]
  %v278 = vld [vmem:[%s1 + $0x2f0] sm:$0xf]
  %v279 = vld [vmem:[%s1 + $0x2f4] sm:$0xf]
  %v280 = vld [vmem:[%s1 + $0x2f8] sm:$0xf]
  %v281 = vld [vmem:[%s1 + $0x2fc] sm:$0xf]
  %v282 = vld [vmem:[%s1 + $0x300] sm:$0xf]
  %v283 = vld [vmem:[%s1 + $0x304] sm:$0xf]
  %v284 = vld [vmem:[%s1 + $0x308] sm:$0xf]
  %v285 = vld [vmem:[%s1 + $0x30c] sm:$0xf]
  %v286 = vld [vmem:[%s1 + $0x310] sm:$0xf]
  %v287 = vld [vmem:[%s1 + $0x314] sm:$0xf]
  %v288 = vld [vmem:[%s1 + $0x318] sm:$0xf]
  %v289 = vld [vmem:[%s1 + $0x31c] sm:$0xf]
  %v290 = vld [vmem:[%s1 + $0x320] sm:$0xf]
  %v291 = vld [vmem:[%s1 + $0x324] sm:$0xf]
  %v292 = vld [vmem:[%s1 + $0x328] sm:$0xf]
  %v293 = vld [vmem:[%s1 + $0x32c] sm:$0xf]
  %v294 = vld [vmem:[%s1 + $0x330] sm:$0xf]
  %v295 = vld [vmem:[%s1 + $0x334] sm:$0xf]
  %v296 = vld [vmem:[%s1 + $0x338] sm:$0xf]
  %v297 = vld [vmem:[%s1 + $0x33c] sm:$0xf]
  %v298 = vld [vmem:[%s1 + $0x340] sm:$0xf]
  %v299 = vld [vmem:[%s1 + $0x344] sm:$0xf]
  %v300 = vld [vmem:[%s1 + $0x348] sm:$0xf]
  %v301 = vld [vmem:[%s1 + $0x34c] sm:$0xf]
  %v302 = vld [vmem:[%s1 + $0x350] sm:$0xf]
  %v303 = vld [vmem:[%s1 + $0x354] sm:$0xf]
  %v304 = vld [vmem:[%s1 + $0x358] sm:$0xf]
  %v305 = vld [vmem:[%s1 + $0x35c] sm:$0xf]
  %v306 = vld [vmem:[%s1 + $0x360] sm:$0xf]
  %v307 = vld [vmem:[%s1 + $0x364] sm:$0xf]
  %v308 = vld [vmem:[%s1 + $0x368] sm:$0xf]
  %v309 = vld [vmem:[%s1 + $0x36c] sm:$0xf]
  %v310 = vld [vmem:[%s1 + $0x370] sm:$0xf]
  %v311 = vld [vmem:[%s1 + $0x374] sm:$0xf]
  %v312 = vld [vmem:[%s1 + $0x378] sm:$0xf]
  %v313 = vld [vmem:[%s1 + $0x37c] sm:$0xf]
  %v314 = vld [vmem:[%s1 + $0x380] sm:$0xf]
  %v315 = vld [vmem:[%s1 + $0x384] sm:$0xf]
  %v316 = vld [vmem:[%s1 + $0x388] sm:$0xf]
  %v317 = vld [vmem:[%s1 + $0x38c] sm:$0xf]
  %v318 = vld [vmem:[%s1 + $0x390] sm:$0xf]
  %v319 = vld [vmem:[%s1 + $0x394] sm:$0xf]
  %v320 = vld [vmem:[%s1 + $0x398] sm:$0xf]
  %v321 = vld [vmem:[%s1 + $0x39c] sm:$0xf]
  %v322 = vld [vmem:[%s1 + $0x3a0] sm:$0xf]
  %v323 = vld [vmem:[%s1 + $0x3a4] sm:$0xf]
  %v324 = vld [vmem:[%s1 + $0x3a8] sm:$0xf]
  %v325 = vld [vmem:[%s1 + $0x3ac] sm:$0xf]
  %v326 = vld [vmem:[%s1 + $0x3b0] sm:$0xf]
  %v327 = vld [vmem:[%s1 + $0x3b4] sm:$0xf]
  %v328 = vld [vmem:[%s1 + $0x3b8] sm:$0xf]
  %v329 = vld [vmem:[%s1 + $0x3bc] sm:$0xf]
  %v330 = vld [vmem:[%s1 + $0x3c0] sm:$0xf]
  %v331 = vld [vmem:[%s1 + $0x3c4] sm:$0xf]
  %v332 = vld [vmem:[%s1 + $0x3c8] sm:$0xf]
  %v333 = vld [vmem:[%s1 + $0x3cc] sm:$0xf]
  %v334 = vld [vmem:[%s1 + $0x3d0] sm:$0xf]
  %v335 = vld [vmem:[%s1 + $0x3d4] sm:$0xf]
  %v336 = vld [vmem:[%s1 + $0x3d8] sm:$0xf]
  %v337 = vld [vmem:[%s1 + $0x3dc] sm:$0xf]
  %v338 = vld [vmem:[%s1 + $0x3e0] sm:$0xf]
  %v339 = vld [vmem:[%s1 + $0x3e4] sm:$0xf]
  %v340 = vld [vmem:[%s1 + $0x3e8] sm:$0xf]
  %v341 = vld [vmem:[%s1 + $0x3ec] sm:$0xf]
  %v342 = vld [vmem:[%s1 + $0x3f0] sm:$0xf]
  %v343 = vld [vmem:[%s1 + $0x3f4] sm:$0xf]
  %v344 = vld [vmem:[%s1 + $0x3f8] sm:$0xf]
  %v345 = vld [vmem:[%s1 + $0x3fc] sm:$0xf]
  %v418 = vunpack.c.l.b16 %v18
  %v419 = vunpack.c.h.b16 %v18
  %v420 = vunpack.c.l.b16 %v19
  %v421 = vunpack.c.h.b16 %v19
  %v422 = vunpack.c.l.b16 %v20
  %v423 = vunpack.c.h.b16 %v20
  %v424 = vunpack.c.l.b16 %v21
  %v425 = vunpack.c.h.b16 %v21
  %v426 = vunpack.c.l.b16 %v22
  %v427 = vunpack.c.h.b16 %v22
  %v428 = vunpack.c.l.b16 %v23
  %v429 = vunpack.c.h.b16 %v23
  %v430 = vunpack.c.l.b16 %v24
  %v431 = vunpack.c.h.b16 %v24
  %v432 = vunpack.c.l.b16 %v25
  %v433 = vunpack.c.h.b16 %v25
  %v434 = vunpack.c.l.b16 %v26
  %v435 = vunpack.c.h.b16 %v26
  %v436 = vunpack.c.l.b16 %v27
  %v437 = vunpack.c.h.b16 %v27
  %v438 = vunpack.c.l.b16 %v28
  %v439 = vunpack.c.h.b16 %v28
  %v440 = vunpack.c.l.b16 %v29
  %v441 = vunpack.c.h.b16 %v29
  %v442 = vunpack.c.l.b16 %v30
  %v443 = vunpack.c.h.b16 %v30
  %v444 = vunpack.c.l.b16 %v31
  %v445 = vunpack.c.h.b16 %v31
  %v446 = vunpack.c.l.b16 %v32
  %v447 = vunpack.c.h.b16 %v32
  %v448 = vunpack.c.l.b16 %v33
  %v449 = vunpack.c.h.b16 %v33
  %v450 = vunpack.c.l.b16 %v34
  %v451 = vunpack.c.h.b16 %v34
  %v452 = vunpack.c.l.b16 %v35
  %v453 = vunpack.c.h.b16 %v35
  %v454 = vunpack.c.l.b16 %v36
  %v455 = vunpack.c.h.b16 %v36
  %v456 = vunpack.c.l.b16 %v37
  %v457 = vunpack.c.h.b16 %v37
  %v458 = vunpack.c.l.b16 %v38
  %v459 = vunpack.c.h.b16 %v38
  %v460 = vunpack.c.l.b16 %v39
  %v461 = vunpack.c.h.b16 %v39
  %v462 = vunpack.c.l.b16 %v40
  %v463 = vunpack.c.h.b16 %v40
  %v464 = vunpack.c.l.b16 %v41
  %v465 = vunpack.c.h.b16 %v41
  %v466 = vunpack.c.l.b16 %v42
  %v467 = vunpack.c.h.b16 %v42
  %v468 = vunpack.c.l.b16 %v43
  %v469 = vunpack.c.h.b16 %v43
  %v470 = vunpack.c.l.b16 %v44
  %v471 = vunpack.c.h.b16 %v44
  %v472 = vunpack.c.l.b16 %v45
  %v473 = vunpack.c.h.b16 %v45
  %v474 = vunpack.c.l.b16 %v46
  %v475 = vunpack.c.h.b16 %v46
  %v476 = vunpack.c.l.b16 %v47
  %v477 = vunpack.c.h.b16 %v47
  %v478 = vunpack.c.l.b16 %v48
  %v479 = vunpack.c.h.b16 %v48
  %v480 = vunpack.c.l.b16 %v49
  %v481 = vunpack.c.h.b16 %v49
  %v482 = vunpack.c.l.b16 %v50
  %v483 = vunpack.c.h.b16 %v50
  %v484 = vunpack.c.l.b16 %v51
  %v485 = vunpack.c.h.b16 %v51
  %v486 = vunpack.c.l.b16 %v52
  %v487 = vunpack.c.h.b16 %v52
  %v488 = vunpack.c.l.b16 %v53
  %v489 = vunpack.c.h.b16 %v53
  %v490 = vunpack.c.l.b16 %v54
  %v491 = vunpack.c.h.b16 %v54
  %v492 = vunpack.c.l.b16 %v55
  %v493 = vunpack.c.h.b16 %v55
  %v494 = vunpack.c.l.b16 %v56
  %v495 = vunpack.c.h.b16 %v56
  %v496 = vunpack.c.l.b16 %v57
  %v497 = vunpack.c.h.b16 %v57
  %v498 = vunpack.c.l.b16 %v58
  %v499 = vunpack.c.h.b16 %v58
  %v500 = vunpack.c.l.b16 %v59
  %v501 = vunpack.c.h.b16 %v59
  %v502 = vunpack.c.l.b16 %v60
  %v503 = vunpack.c.h.b16 %v60
  %v504 = vunpack.c.l.b16 %v61
  %v505 = vunpack.c.h.b16 %v61
  %v506 = vunpack.c.l.b16 %v62
  %v507 = vunpack.c.h.b16 %v62
  %v508 = vunpack.c.l.b16 %v63
  %v509 = vunpack.c.h.b16 %v63
  %v510 = vunpack.c.l.b16 %v64
  %v511 = vunpack.c.h.b16 %v64
  %v512 = vunpack.c.l.b16 %v65
  %v513 = vunpack.c.h.b16 %v65
  %v514 = vunpack.c.l.b16 %v66
  %v515 = vunpack.c.h.b16 %v66
  %v516 = vunpack.c.l.b16 %v67
  %v517 = vunpack.c.h.b16 %v67
  %v518 = vunpack.c.l.b16 %v68
  %v519 = vunpack.c.h.b16 %v68
  %v520 = vunpack.c.l.b16 %v69
  %v521 = vunpack.c.h.b16 %v69
  %v522 = vunpack.c.l.b16 %v70
  %v523 = vunpack.c.h.b16 %v70
  %v524 = vunpack.c.l.b16 %v71
  %v525 = vunpack.c.h.b16 %v71
  %v526 = vunpack.c.l.b16 %v72
  %v527 = vunpack.c.h.b16 %v72
  %v528 = vunpack.c.l.b16 %v73
  %v529 = vunpack.c.h.b16 %v73
  %v530 = vunpack.c.l.b16 %v74
  %v531 = vunpack.c.h.b16 %v74
  %v532 = vunpack.c.l.b16 %v75
  %v533 = vunpack.c.h.b16 %v75
  %v534 = vunpack.c.l.b16 %v76
  %v535 = vunpack.c.h.b16 %v76
  %v536 = vunpack.c.l.b16 %v77
  %v537 = vunpack.c.h.b16 %v77
  %v538 = vunpack.c.l.b16 %v78
  %v539 = vunpack.c.h.b16 %v78
  %v540 = vunpack.c.l.b16 %v79
  %v541 = vunpack.c.h.b16 %v79
  %v542 = vunpack.c.l.b16 %v80
  %v543 = vunpack.c.h.b16 %v80
  %v544 = vunpack.c.l.b16 %v81
  %v545 = vunpack.c.h.b16 %v81
  %v546 = vunpack.c.l.b16 %v82
  %v547 = vunpack.c.h.b16 %v82
  %v548 = vunpack.c.l.b16 %v83
  %v549 = vunpack.c.h.b16 %v83
  %v550 = vunpack.c.l.b16 %v84
  %v551 = vunpack.c.h.b16 %v84
  %v552 = vunpack.c.l.b16 %v85
  %v553 = vunpack.c.h.b16 %v85
  %v554 = vunpack.c.l.b16 %v86
  %v555 = vunpack.c.h.b16 %v86
  %v556 = vunpack.c.l.b16 %v87
  %v557 = vunpack.c.h.b16 %v87
  %v558 = vunpack.c.l.b16 %v88
  %v559 = vunpack.c.h.b16 %v88
  %v560 = vunpack.c.l.b16 %v89
  %v561 = vunpack.c.h.b16 %v89
  %v562 = vpack.c.b16 %v434, %v418
  %v563 = vpack.c.b16 %v435, %v419
  %v564 = vpack.c.b16 %v436, %v420
  %v565 = vpack.c.b16 %v437, %v421
  %v566 = vpack.c.b16 %v438, %v422
  %v567 = vpack.c.b16 %v439, %v423
  %v568 = vpack.c.b16 %v440, %v424
  %v569 = vpack.c.b16 %v441, %v425
  %v570 = vpack.c.b16 %v442, %v426
  %v571 = vpack.c.b16 %v443, %v427
  %v572 = vpack.c.b16 %v444, %v428
  %v573 = vpack.c.b16 %v445, %v429
  %v574 = vpack.c.b16 %v446, %v430
  %v575 = vpack.c.b16 %v447, %v431
  %v576 = vpack.c.b16 %v448, %v432
  %v577 = vpack.c.b16 %v449, %v433
  %v578 = vpack.c.b16 %v466, %v450
  %v579 = vpack.c.b16 %v467, %v451
  %v580 = vpack.c.b16 %v468, %v452
  %v581 = vpack.c.b16 %v469, %v453
  %v582 = vpack.c.b16 %v470, %v454
  %v583 = vpack.c.b16 %v471, %v455
  %v584 = vpack.c.b16 %v472, %v456
  %v585 = vpack.c.b16 %v473, %v457
  %v586 = vpack.c.b16 %v474, %v458
  %v587 = vpack.c.b16 %v475, %v459
  %v588 = vpack.c.b16 %v476, %v460
  %v589 = vpack.c.b16 %v477, %v461
  %v590 = vpack.c.b16 %v478, %v462
  %v591 = vpack.c.b16 %v479, %v463
  %v592 = vpack.c.b16 %v480, %v464
  %v593 = vpack.c.b16 %v481, %v465
  %v594 = vpack.c.b16 %v498, %v482
  %v595 = vpack.c.b16 %v499, %v483
  %v596 = vpack.c.b16 %v500, %v484
  %v597 = vpack.c.b16 %v501, %v485
  %v598 = vpack.c.b16 %v502, %v486
  %v599 = vpack.c.b16 %v503, %v487
  %v600 = vpack.c.b16 %v504, %v488
  %v601 = vpack.c.b16 %v505, %v489
  %v602 = vpack.c.b16 %v506, %v490
  %v603 = vpack.c.b16 %v507, %v491
  %v604 = vpack.c.b16 %v508, %v492
  %v605 = vpack.c.b16 %v509, %v493
  %v606 = vpack.c.b16 %v510, %v494
  %v607 = vpack.c.b16 %v511, %v495
  %v608 = vpack.c.b16 %v512, %v496
  %v609 = vpack.c.b16 %v513, %v497
  %v610 = vpack.c.b16 %v530, %v514
  %v611 = vpack.c.b16 %v531, %v515
  %v612 = vpack.c.b16 %v532, %v516
  %v613 = vpack.c.b16 %v533, %v517
  %v614 = vpack.c.b16 %v534, %v518
  %v615 = vpack.c.b16 %v535, %v519
  %v616 = vpack.c.b16 %v536, %v520
  %v617 = vpack.c.b16 %v537, %v521
  %v618 = vpack.c.b16 %v538, %v522
  %v619 = vpack.c.b16 %v539, %v523
  %v620 = vpack.c.b16 %v540, %v524
  %v621 = vpack.c.b16 %v541, %v525
  %v622 = vpack.c.b16 %v542, %v526
  %v623 = vpack.c.b16 %v543, %v527
  %v624 = vpack.c.b16 %v544, %v528
  %v625 = vpack.c.b16 %v545, %v529
  %v626 = vpack.c.b16 %v546, %v546
  %v627 = vpack.c.b16 %v547, %v547
  %v628 = vpack.c.b16 %v548, %v548
  %v629 = vpack.c.b16 %v549, %v549
  %v630 = vpack.c.b16 %v550, %v550
  %v631 = vpack.c.b16 %v551, %v551
  %v632 = vpack.c.b16 %v552, %v552
  %v633 = vpack.c.b16 %v553, %v553
  %v634 = vpack.c.b16 %v554, %v554
  %v635 = vpack.c.b16 %v555, %v555
  %v636 = vpack.c.b16 %v556, %v556
  %v637 = vpack.c.b16 %v557, %v557
  %v638 = vpack.c.b16 %v558, %v558
  %v639 = vpack.c.b16 %v559, %v559
  %v640 = vpack.c.b16 %v560, %v560
  %v641 = vpack.c.b16 %v561, %v561
  %v978 = vunpack.c.l.b16 %v90
  %v979 = vunpack.c.l.b16 %v91
  %v980 = vunpack.c.l.b16 %v92
  %v981 = vunpack.c.l.b16 %v93
  %v982 = vunpack.c.l.b16 %v94
  %v983 = vunpack.c.l.b16 %v95
  %v984 = vunpack.c.l.b16 %v96
  %v985 = vunpack.c.l.b16 %v97
  %v986 = vunpack.c.l.b16 %v98
  %v987 = vunpack.c.l.b16 %v99
  %v988 = vunpack.c.l.b16 %v100
  %v989 = vunpack.c.l.b16 %v101
  %v990 = vunpack.c.l.b16 %v102
  %v991 = vunpack.c.l.b16 %v103
  %v992 = vunpack.c.l.b16 %v104
  %v993 = vunpack.c.l.b16 %v105
  %v994 = vunpack.c.l.b16 %v106
  %v995 = vunpack.c.l.b16 %v107
  %v996 = vunpack.c.l.b16 %v108
  %v997 = vunpack.c.l.b16 %v109
  %v998 = vunpack.c.l.b16 %v110
  %v999 = vunpack.c.l.b16 %v111
  %v1000 = vunpack.c.l.b16 %v112
  %v1001 = vunpack.c.l.b16 %v113
  %v1002 = vunpack.c.l.b16 %v114
  %v1003 = vunpack.c.l.b16 %v115
  %v1004 = vunpack.c.l.b16 %v116
  %v1005 = vunpack.c.l.b16 %v117
  %v1006 = vunpack.c.l.b16 %v118
  %v1007 = vunpack.c.l.b16 %v119
  %v1008 = vunpack.c.l.b16 %v120
  %v1009 = vunpack.c.l.b16 %v121
  %v1010 = vunpack.c.l.b16 %v122
  %v1011 = vunpack.c.l.b16 %v123
  %v1012 = vunpack.c.l.b16 %v124
  %v1013 = vunpack.c.l.b16 %v125
  %v1014 = vunpack.c.l.b16 %v126
  %v1015 = vunpack.c.l.b16 %v127
  %v1016 = vunpack.c.l.b16 %v128
  %v1017 = vunpack.c.l.b16 %v129
  %v1018 = vunpack.c.l.b16 %v130
  %v1019 = vunpack.c.l.b16 %v131
  %v1020 = vunpack.c.l.b16 %v132
  %v1021 = vunpack.c.l.b16 %v133
  %v1022 = vunpack.c.l.b16 %v134
  %v1023 = vunpack.c.l.b16 %v135
  %v1024 = vunpack.c.l.b16 %v136
  %v1025 = vunpack.c.l.b16 %v137
  %v1026 = vunpack.c.l.b16 %v138
  %v1027 = vunpack.c.l.b16 %v139
  %v1028 = vunpack.c.l.b16 %v140
  %v1029 = vunpack.c.l.b16 %v141
  %v1030 = vunpack.c.l.b16 %v142
  %v1031 = vunpack.c.l.b16 %v143
  %v1032 = vunpack.c.l.b16 %v144
  %v1033 = vunpack.c.l.b16 %v145
  %v1034 = vunpack.c.l.b16 %v146
  %v1035 = vunpack.c.l.b16 %v147
  %v1036 = vunpack.c.l.b16 %v148
  %v1037 = vunpack.c.l.b16 %v149
  %v1038 = vunpack.c.l.b16 %v150
  %v1039 = vunpack.c.l.b16 %v151
  %v1040 = vunpack.c.l.b16 %v152
  %v1041 = vunpack.c.l.b16 %v153
  %v1042 = vunpack.c.l.b16 %v154
  %v1043 = vunpack.c.l.b16 %v155
  %v1044 = vunpack.c.l.b16 %v156
  %v1045 = vunpack.c.l.b16 %v157
  %v1046 = vunpack.c.l.b16 %v158
  %v1047 = vunpack.c.l.b16 %v159
  %v1048 = vunpack.c.l.b16 %v160
  %v1049 = vunpack.c.l.b16 %v161
  %v1050 = vunpack.c.l.b16 %v162
  %v1051 = vunpack.c.l.b16 %v163
  %v1052 = vunpack.c.l.b16 %v164
  %v1053 = vunpack.c.l.b16 %v165
  %v1054 = vunpack.c.l.b16 %v166
  %v1055 = vunpack.c.l.b16 %v167
  %v1056 = vunpack.c.l.b16 %v168
  %v1057 = vunpack.c.l.b16 %v169
  %v1058 = vunpack.c.l.b16 %v170
  %v1059 = vunpack.c.l.b16 %v171
  %v1060 = vunpack.c.l.b16 %v172
  %v1061 = vunpack.c.l.b16 %v173
  %v1062 = vunpack.c.l.b16 %v174
  %v1063 = vunpack.c.l.b16 %v175
  %v1064 = vunpack.c.l.b16 %v176
  %v1065 = vunpack.c.l.b16 %v177
  %v1066 = vunpack.c.l.b16 %v178
  %v1067 = vunpack.c.l.b16 %v179
  %v1068 = vunpack.c.l.b16 %v180
  %v1069 = vunpack.c.l.b16 %v181
  %v1070 = vunpack.c.l.b16 %v182
  %v1071 = vunpack.c.l.b16 %v183
  %v1072 = vunpack.c.l.b16 %v184
  %v1073 = vunpack.c.l.b16 %v185
  %v1074 = vunpack.c.l.b16 %v186
  %v1075 = vunpack.c.l.b16 %v187
  %v1076 = vunpack.c.l.b16 %v188
  %v1077 = vunpack.c.l.b16 %v189
  %v1078 = vunpack.c.l.b16 %v190
  %v1079 = vunpack.c.l.b16 %v191
  %v1080 = vunpack.c.l.b16 %v192
  %v1081 = vunpack.c.l.b16 %v193
  %v1082 = vunpack.c.l.b16 %v194
  %v1083 = vunpack.c.l.b16 %v195
  %v1084 = vunpack.c.l.b16 %v196
  %v1085 = vunpack.c.l.b16 %v197
  %v1086 = vunpack.c.l.b16 %v198
  %v1087 = vunpack.c.l.b16 %v199
  %v1088 = vunpack.c.l.b16 %v200
  %v1089 = vunpack.c.l.b16 %v201
  %v1090 = vunpack.c.l.b16 %v202
  %v1091 = vunpack.c.l.b16 %v203
  %v1092 = vunpack.c.l.b16 %v204
  %v1093 = vunpack.c.l.b16 %v205
  %v1094 = vunpack.c.l.b16 %v206
  %v1095 = vunpack.c.l.b16 %v207
  %v1096 = vunpack.c.l.b16 %v208
  %v1097 = vunpack.c.l.b16 %v209
  %v1098 = vunpack.c.l.b16 %v210
  %v1099 = vunpack.c.l.b16 %v211
  %v1100 = vunpack.c.l.b16 %v212
  %v1101 = vunpack.c.l.b16 %v213
  %v1102 = vunpack.c.l.b16 %v214
  %v1103 = vunpack.c.l.b16 %v215
  %v1104 = vunpack.c.l.b16 %v216
  %v1105 = vunpack.c.l.b16 %v217
  %v1106 = vunpack.c.l.b16 %v218
  %v1107 = vunpack.c.l.b16 %v219
  %v1108 = vunpack.c.l.b16 %v220
  %v1109 = vunpack.c.l.b16 %v221
  %v1110 = vunpack.c.l.b16 %v222
  %v1111 = vunpack.c.l.b16 %v223
  %v1112 = vunpack.c.l.b16 %v224
  %v1113 = vunpack.c.l.b16 %v225
  %v1114 = vunpack.c.l.b16 %v226
  %v1115 = vunpack.c.l.b16 %v227
  %v1116 = vunpack.c.l.b16 %v228
  %v1117 = vunpack.c.l.b16 %v229
  %v1118 = vunpack.c.l.b16 %v230
  %v1119 = vunpack.c.l.b16 %v231
  %v1120 = vunpack.c.l.b16 %v232
  %v1121 = vunpack.c.l.b16 %v233
  %v1122 = vunpack.c.l.b16 %v234
  %v1123 = vunpack.c.l.b16 %v235
  %v1124 = vunpack.c.l.b16 %v236
  %v1125 = vunpack.c.l.b16 %v237
  %v1126 = vunpack.c.l.b16 %v238
  %v1127 = vunpack.c.l.b16 %v239
  %v1128 = vunpack.c.l.b16 %v240
  %v1129 = vunpack.c.l.b16 %v241
  %v1130 = vunpack.c.l.b16 %v242
  %v1131 = vunpack.c.l.b16 %v243
  %v1132 = vunpack.c.l.b16 %v244
  %v1133 = vunpack.c.l.b16 %v245
  %v1134 = vunpack.c.l.b16 %v246
  %v1135 = vunpack.c.l.b16 %v247
  %v1136 = vunpack.c.l.b16 %v248
  %v1137 = vunpack.c.l.b16 %v249
  %v1138 = vunpack.c.l.b16 %v250
  %v1139 = vunpack.c.l.b16 %v251
  %v1140 = vunpack.c.l.b16 %v252
  %v1141 = vunpack.c.l.b16 %v253
  %v1142 = vunpack.c.l.b16 %v254
  %v1143 = vunpack.c.l.b16 %v255
  %v1144 = vunpack.c.l.b16 %v256
  %v1145 = vunpack.c.l.b16 %v257
  %v1146 = vunpack.c.l.b16 %v258
  %v1147 = vunpack.c.l.b16 %v259
  %v1148 = vunpack.c.l.b16 %v260
  %v1149 = vunpack.c.l.b16 %v261
  %v1150 = vunpack.c.l.b16 %v262
  %v1151 = vunpack.c.l.b16 %v263
  %v1152 = vunpack.c.l.b16 %v264
  %v1153 = vunpack.c.l.b16 %v265
  %v1154 = vunpack.c.l.b16 %v266
  %v1155 = vunpack.c.l.b16 %v267
  %v1156 = vunpack.c.l.b16 %v268
  %v1157 = vunpack.c.l.b16 %v269
  %v1158 = vunpack.c.l.b16 %v270
  %v1159 = vunpack.c.l.b16 %v271
  %v1160 = vunpack.c.l.b16 %v272
  %v1161 = vunpack.c.l.b16 %v273
  %v1162 = vunpack.c.l.b16 %v274
  %v1163 = vunpack.c.l.b16 %v275
  %v1164 = vunpack.c.l.b16 %v276
  %v1165 = vunpack.c.l.b16 %v277
  %v1166 = vunpack.c.l.b16 %v278
  %v1167 = vunpack.c.l.b16 %v279
  %v1168 = vunpack.c.l.b16 %v280
  %v1169 = vunpack.c.l.b16 %v281
  %v1170 = vunpack.c.l.b16 %v282
  %v1171 = vunpack.c.l.b16 %v283
  %v1172 = vunpack.c.l.b16 %v284
  %v1173 = vunpack.c.l.b16 %v285
  %v1174 = vunpack.c.l.b16 %v286
  %v1175 = vunpack.c.l.b16 %v287
  %v1176 = vunpack.c.l.b16 %v288
  %v1177 = vunpack.c.l.b16 %v289
  %v1178 = vunpack.c.l.b16 %v290
  %v1179 = vunpack.c.l.b16 %v291
  %v1180 = vunpack.c.l.b16 %v292
  %v1181 = vunpack.c.l.b16 %v293
  %v1182 = vunpack.c.l.b16 %v294
  %v1183 = vunpack.c.l.b16 %v295
  %v1184 = vunpack.c.l.b16 %v296
  %v1185 = vunpack.c.l.b16 %v297
  %v1186 = vunpack.c.l.b16 %v298
  %v1187 = vunpack.c.l.b16 %v299
  %v1188 = vunpack.c.l.b16 %v300
  %v1189 = vunpack.c.l.b16 %v301
  %v1190 = vunpack.c.l.b16 %v302
  %v1191 = vunpack.c.l.b16 %v303
  %v1192 = vunpack.c.l.b16 %v304
  %v1193 = vunpack.c.l.b16 %v305
  %v1194 = vunpack.c.l.b16 %v306
  %v1195 = vunpack.c.l.b16 %v307
  %v1196 = vunpack.c.l.b16 %v308
  %v1197 = vunpack.c.l.b16 %v309
  %v1198 = vunpack.c.l.b16 %v310
  %v1199 = vunpack.c.l.b16 %v311
  %v1200 = vunpack.c.l.b16 %v312
  %v1201 = vunpack.c.l.b16 %v313
  %v1202 = vunpack.c.l.b16 %v314
  %v1203 = vunpack.c.l.b16 %v315
  %v1204 = vunpack.c.l.b16 %v316
  %v1205 = vunpack.c.l.b16 %v317
  %v1206 = vunpack.c.l.b16 %v318
  %v1207 = vunpack.c.l.b16 %v319
  %v1208 = vunpack.c.l.b16 %v320
  %v1209 = vunpack.c.l.b16 %v321
  %v1210 = vunpack.c.l.b16 %v322
  %v1211 = vunpack.c.l.b16 %v323
  %v1212 = vunpack.c.l.b16 %v324
  %v1213 = vunpack.c.l.b16 %v325
  %v1214 = vunpack.c.l.b16 %v326
  %v1215 = vunpack.c.l.b16 %v327
  %v1216 = vunpack.c.l.b16 %v328
  %v1217 = vunpack.c.l.b16 %v329
  %v1218 = vunpack.c.l.b16 %v330
  %v1219 = vunpack.c.l.b16 %v331
  %v1220 = vunpack.c.l.b16 %v332
  %v1221 = vunpack.c.l.b16 %v333
  %v1222 = vunpack.c.l.b16 %v334
  %v1223 = vunpack.c.l.b16 %v335
  %v1224 = vunpack.c.l.b16 %v336
  %v1225 = vunpack.c.l.b16 %v337
  %v1226 = vunpack.c.l.b16 %v338
  %v1227 = vunpack.c.l.b16 %v339
  %v1228 = vunpack.c.l.b16 %v340
  %v1229 = vunpack.c.l.b16 %v341
  %v1230 = vunpack.c.l.b16 %v342
  %v1231 = vunpack.c.l.b16 %v343
  %v1232 = vunpack.c.l.b16 %v344
  %v1233 = vunpack.c.l.b16 %v345
  %v1234 = vpack.c.b16 %v979, %v978
  %v1235 = vpack.c.b16 %v981, %v980
  %v1236 = vpack.c.b16 %v983, %v982
  %v1237 = vpack.c.b16 %v985, %v984
  %v1238 = vpack.c.b16 %v987, %v986
  %v1239 = vpack.c.b16 %v989, %v988
  %v1240 = vpack.c.b16 %v991, %v990
  %v1241 = vpack.c.b16 %v993, %v992
  %v1242 = vpack.c.b16 %v995, %v994
  %v1243 = vpack.c.b16 %v997, %v996
  %v1244 = vpack.c.b16 %v999, %v998
  %v1245 = vpack.c.b16 %v1001, %v1000
  %v1246 = vpack.c.b16 %v1003, %v1002
  %v1247 = vpack.c.b16 %v1005, %v1004
  %v1248 = vpack.c.b16 %v1007, %v1006
  %v1249 = vpack.c.b16 %v1009, %v1008
  %v1250 = vpack.c.b16 %v1011, %v1010
  %v1251 = vpack.c.b16 %v1013, %v1012
  %v1252 = vpack.c.b16 %v1015, %v1014
  %v1253 = vpack.c.b16 %v1017, %v1016
  %v1254 = vpack.c.b16 %v1019, %v1018
  %v1255 = vpack.c.b16 %v1021, %v1020
  %v1256 = vpack.c.b16 %v1023, %v1022
  %v1257 = vpack.c.b16 %v1025, %v1024
  %v1258 = vpack.c.b16 %v1027, %v1026
  %v1259 = vpack.c.b16 %v1029, %v1028
  %v1260 = vpack.c.b16 %v1031, %v1030
  %v1261 = vpack.c.b16 %v1033, %v1032
  %v1262 = vpack.c.b16 %v1035, %v1034
  %v1263 = vpack.c.b16 %v1037, %v1036
  %v1264 = vpack.c.b16 %v1039, %v1038
  %v1265 = vpack.c.b16 %v1041, %v1040
  %v1266 = vpack.c.b16 %v1043, %v1042
  %v1267 = vpack.c.b16 %v1045, %v1044
  %v1268 = vpack.c.b16 %v1047, %v1046
  %v1269 = vpack.c.b16 %v1049, %v1048
  %v1270 = vpack.c.b16 %v1051, %v1050
  %v1271 = vpack.c.b16 %v1053, %v1052
  %v1272 = vpack.c.b16 %v1055, %v1054
  %v1273 = vpack.c.b16 %v1057, %v1056
  %v1274 = vpack.c.b16 %v1059, %v1058
  %v1275 = vpack.c.b16 %v1061, %v1060
  %v1276 = vpack.c.b16 %v1063, %v1062
  %v1277 = vpack.c.b16 %v1065, %v1064
  %v1278 = vpack.c.b16 %v1067, %v1066
  %v1279 = vpack.c.b16 %v1069, %v1068
  %v1280 = vpack.c.b16 %v1071, %v1070
  %v1281 = vpack.c.b16 %v1073, %v1072
  %v1282 = vpack.c.b16 %v1075, %v1074
  %v1283 = vpack.c.b16 %v1077, %v1076
  %v1284 = vpack.c.b16 %v1079, %v1078
  %v1285 = vpack.c.b16 %v1081, %v1080
  %v1286 = vpack.c.b16 %v1083, %v1082
  %v1287 = vpack.c.b16 %v1085, %v1084
  %v1288 = vpack.c.b16 %v1087, %v1086
  %v1289 = vpack.c.b16 %v1089, %v1088
  %v1290 = vpack.c.b16 %v1091, %v1090
  %v1291 = vpack.c.b16 %v1093, %v1092
  %v1292 = vpack.c.b16 %v1095, %v1094
  %v1293 = vpack.c.b16 %v1097, %v1096
  %v1294 = vpack.c.b16 %v1099, %v1098
  %v1295 = vpack.c.b16 %v1101, %v1100
  %v1296 = vpack.c.b16 %v1103, %v1102
  %v1297 = vpack.c.b16 %v1105, %v1104
  %v1298 = vpack.c.b16 %v1107, %v1106
  %v1299 = vpack.c.b16 %v1109, %v1108
  %v1300 = vpack.c.b16 %v1111, %v1110
  %v1301 = vpack.c.b16 %v1113, %v1112
  %v1302 = vpack.c.b16 %v1115, %v1114
  %v1303 = vpack.c.b16 %v1117, %v1116
  %v1304 = vpack.c.b16 %v1119, %v1118
  %v1305 = vpack.c.b16 %v1121, %v1120
  %v1306 = vpack.c.b16 %v1123, %v1122
  %v1307 = vpack.c.b16 %v1125, %v1124
  %v1308 = vpack.c.b16 %v1127, %v1126
  %v1309 = vpack.c.b16 %v1129, %v1128
  %v1310 = vpack.c.b16 %v1131, %v1130
  %v1311 = vpack.c.b16 %v1133, %v1132
  %v1312 = vpack.c.b16 %v1135, %v1134
  %v1313 = vpack.c.b16 %v1137, %v1136
  %v1314 = vpack.c.b16 %v1139, %v1138
  %v1315 = vpack.c.b16 %v1141, %v1140
  %v1316 = vpack.c.b16 %v1143, %v1142
  %v1317 = vpack.c.b16 %v1145, %v1144
  %v1318 = vpack.c.b16 %v1147, %v1146
  %v1319 = vpack.c.b16 %v1149, %v1148
  %v1320 = vpack.c.b16 %v1151, %v1150
  %v1321 = vpack.c.b16 %v1153, %v1152
  %v1322 = vpack.c.b16 %v1155, %v1154
  %v1323 = vpack.c.b16 %v1157, %v1156
  %v1324 = vpack.c.b16 %v1159, %v1158
  %v1325 = vpack.c.b16 %v1161, %v1160
  %v1326 = vpack.c.b16 %v1163, %v1162
  %v1327 = vpack.c.b16 %v1165, %v1164
  %v1328 = vpack.c.b16 %v1167, %v1166
  %v1329 = vpack.c.b16 %v1169, %v1168
  %v1330 = vpack.c.b16 %v1171, %v1170
  %v1331 = vpack.c.b16 %v1173, %v1172
  %v1332 = vpack.c.b16 %v1175, %v1174
  %v1333 = vpack.c.b16 %v1177, %v1176
  %v1334 = vpack.c.b16 %v1179, %v1178
  %v1335 = vpack.c.b16 %v1181, %v1180
  %v1336 = vpack.c.b16 %v1183, %v1182
  %v1337 = vpack.c.b16 %v1185, %v1184
  %v1338 = vpack.c.b16 %v1187, %v1186
  %v1339 = vpack.c.b16 %v1189, %v1188
  %v1340 = vpack.c.b16 %v1191, %v1190
  %v1341 = vpack.c.b16 %v1193, %v1192
  %v1342 = vpack.c.b16 %v1195, %v1194
  %v1343 = vpack.c.b16 %v1197, %v1196
  %v1344 = vpack.c.b16 %v1199, %v1198
  %v1345 = vpack.c.b16 %v1201, %v1200
  %v1346 = vpack.c.b16 %v1203, %v1202
  %v1347 = vpack.c.b16 %v1205, %v1204
  %v1348 = vpack.c.b16 %v1207, %v1206
  %v1349 = vpack.c.b16 %v1209, %v1208
  %v1350 = vpack.c.b16 %v1211, %v1210
  %v1351 = vpack.c.b16 %v1213, %v1212
  %v1352 = vpack.c.b16 %v1215, %v1214
  %v1353 = vpack.c.b16 %v1217, %v1216
  %v1354 = vpack.c.b16 %v1219, %v1218
  %v1355 = vpack.c.b16 %v1221, %v1220
  %v1356 = vpack.c.b16 %v1223, %v1222
  %v1357 = vpack.c.b16 %v1225, %v1224
  %v1358 = vpack.c.b16 %v1227, %v1226
  %v1359 = vpack.c.b16 %v1229, %v1228
  %v1360 = vpack.c.b16 %v1231, %v1230
  %v1361 = vpack.c.b16 %v1233, %v1232
  %1490 = vmatprep.subr.bf16.mxu0 0
  %1491 = vmatpush1.bf16.msra.mxu0 %v1234
  %1492 = vmatprep.subr.bf16.mxu0 0
  %1493 = vmatpush1.bf16.msra.mxu0 %v1235
  %1494 = vmatprep.subr.bf16.mxu0 0
  %1495 = vmatpush1.bf16.msra.mxu0 %v1236
  %1496 = vmatprep.subr.bf16.mxu0 0
  %1497 = vmatpush1.bf16.msra.mxu0 %v1237
  %1498 = vmatprep.subr.bf16.mxu0 0
  %1499 = vmatpush1.bf16.msra.mxu0 %v1238
  %1500 = vmatprep.subr.bf16.mxu0 0
  %1501 = vmatpush1.bf16.msra.mxu0 %v1239
  %1502 = vmatprep.subr.bf16.mxu0 0
  %1503 = vmatpush1.bf16.msra.mxu0 %v1240
  %1504 = vmatprep.subr.bf16.mxu0 0
  %1505 = vmatpush1.bf16.msra.mxu0 %v1241
  %1506 = vmatprep.subr.bf16.mxu0 0
  %1507 = vmatpush1.bf16.msra.mxu0 %v1242
  %1508 = vmatprep.subr.bf16.mxu0 0
  %1509 = vmatpush1.bf16.msra.mxu0 %v1243
  %1510 = vmatprep.subr.bf16.mxu0 0
  %1511 = vmatpush1.bf16.msra.mxu0 %v1244
  %1512 = vmatprep.subr.bf16.mxu0 0
  %1513 = vmatpush1.bf16.msra.mxu0 %v1245
  %1514 = vmatprep.subr.bf16.mxu0 0
  %1515 = vmatpush1.bf16.msra.mxu0 %v1246
  %1516 = vmatprep.subr.bf16.mxu0 0
  %1517 = vmatpush1.bf16.msra.mxu0 %v1247
  %1518 = vmatprep.subr.bf16.mxu0 0
  %1519 = vmatpush1.bf16.msra.mxu0 %v1248
  %1520 = vmatprep.subr.bf16.mxu0 0
  %1521 = vmatpush1.bf16.msra.mxu0 %v1249
  %1522 = vmatprep.mubr.bf16.mxu0 %v563
  %1523 = vmatmul.mubr.bf16.gmra.mrb[0].mxu0 %v562
  %v1524 = vpop.f32.mrb[0].mxu0
  %v1525 = vadd.f32 0.0, %v1524
  %v1526 = vpop.f32.mrb[0].mxu0
  %v1527 = vpop.f32.mrb[0].mxu0
  %v1528 = vadd.f32 0.0, %v1527
  %v1529 = vpop.f32.mrb[0].mxu0
  %1530 = vmatprep.mubr.bf16.mxu0 %v579
  %1531 = vmatmul.mubr.bf16.gmra.mrb[0].mxu0 %v578
  %v1532 = vpop.f32.mrb[0].mxu0
  %v1533 = vadd.f32 0.0, %v1532
  %v1534 = vpop.f32.mrb[0].mxu0
  %v1535 = vpop.f32.mrb[0].mxu0
  %v1536 = vadd.f32 0.0, %v1535
  %v1537 = vpop.f32.mrb[0].mxu0
  %1538 = vmatprep.mubr.bf16.mxu0 %v595
  %1539 = vmatmul.mubr.bf16.gmra.mrb[0].mxu0 %v594
  %v1540 = vpop.f32.mrb[0].mxu0
  %v1541 = vadd.f32 0.0, %v1540
  %v1542 = vpop.f32.mrb[0].mxu0
  %v1543 = vpop.f32.mrb[0].mxu0
  %v1544 = vadd.f32 0.0, %v1543
  %v1545 = vpop.f32.mrb[0].mxu0
  %1546 = vmatprep.mubr.bf16.mxu0 %v611
  %1547 = vmatmul.mubr.bf16.gmra.mrb[0].mxu0 %v610
  %v1548 = vpop.f32.mrb[0].mxu0
  %v1549 = vadd.f32 0.0, %v1548
  %v1550 = vpop.f32.mrb[0].mxu0
  %v1551 = vpop.f32.mrb[0].mxu0
  %v1552 = vadd.f32 0.0, %v1551
  %v1553 = vpop.f32.mrb[0].mxu0
  %1554 = vmatprep.mubr.bf16.mxu0 %v627
  %1555 = vmatmul.mubr.bf16.gmra.mrb[0].mxu0 %v626
  %v1556 = vpop.f32.mrb[0].mxu0
  %v1557 = vadd.f32 0.0, %v1556
  %v1558 = vpop.f32.mrb[0].mxu0
  %v1559 = vpop.f32.mrb[0].mxu0
  %v1560 = vpop.f32.mrb[0].mxu0
  %1561 = vdwg.mxu0
  %1562 = vmatprep.subr.bf16.mxu0 0
  %1563 = vmatpush1.bf16.msra.mxu0 %v1250
  %1564 = vmatprep.subr.bf16.mxu0 0
  %1565 = vmatpush1.bf16.msra.mxu0 %v1251
  %1566 = vmatprep.subr.bf16.mxu0 0
  %1567 = vmatpush1.bf16.msra.mxu0 %v1252
  %1568 = vmatprep.subr.bf16.mxu0 0
  %1569 = vmatpush1.bf16.msra.mxu0 %v1253
  %1570 = vmatprep.subr.bf16.mxu0 0
  %1571 = vmatpush1.bf16.msra.mxu0 %v1254
  %1572 = vmatprep.subr.bf16.mxu0 0
  %1573 = vmatpush1.bf16.msra.mxu0 %v1255
  %1574 = vmatprep.subr.bf16.mxu0 0
  %1575 = vmatpush1.bf16.msra.mxu0 %v1256
  %1576 = vmatprep.subr.bf16.mxu0 0
  %1577 = vmatpush1.bf16.msra.mxu0 %v1257
  %1578 = vmatprep.subr.bf16.mxu0 0
  %1579 = vmatpush1.bf16.msra.mxu0 %v1258
  %1580 = vmatprep.subr.bf16.mxu0 0
  %1581 = vmatpush1.bf16.msra.mxu0 %v1259
  %1582 = vmatprep.subr.bf16.mxu0 0
  %1583 = vmatpush1.bf16.msra.mxu0 %v1260
  %1584 = vmatprep.subr.bf16.mxu0 0
  %1585 = vmatpush1.bf16.msra.mxu0 %v1261
  %1586 = vmatprep.subr.bf16.mxu0 0
  %1587 = vmatpush1.bf16.msra.mxu0 %v1262
  %1588 = vmatprep.subr.bf16.mxu0 0
  %1589 = vmatpush1.bf16.msra.mxu0 %v1263
  %1590 = vmatprep.subr.bf16.mxu0 0
  %1591 = vmatpush1.bf16.msra.mxu0 %v1264
  %1592 = vmatprep.subr.bf16.mxu0 0
  %1593 = vmatpush1.bf16.msra.mxu0 %v1265
  %1594 = vmatprep.mubr.bf16.mxu0 %v565
  %1595 = vmatmul.mubr.bf16.gmra.mrb[0].mxu0 %v564
  %v1596 = vpop.f32.mrb[0].mxu0
  %v1597 = vadd.f32 %v1525, %v1596
  %v1598 = vpop.f32.mrb[0].mxu0
  %v1599 = vpop.f32.mrb[0].mxu0
  %v1600 = vadd.f32 %v1528, %v1599
  %v1601 = vpop.f32.mrb[0].mxu0
  %1602 = vmatprep.mubr.bf16.mxu0 %v581
  %1603 = vmatmul.mubr.bf16.gmra.mrb[0].mxu0 %v580
  %v1604 = vpop.f32.mrb[0].mxu0
  %v1605 = vadd.f32 %v1533, %v1604
  %v1606 = vpop.f32.mrb[0].mxu0
  %v1607 = vpop.f32.mrb[0].mxu0
  %v1608 = vadd.f32 %v1536, %v1607
  %v1609 = vpop.f32.mrb[0].mxu0
  %1610 = vmatprep.mubr.bf16.mxu0 %v597
  %1611 = vmatmul.mubr.bf16.gmra.mrb[0].mxu0 %v596
  %v1612 = vpop.f32.mrb[0].mxu0
  %v1613 = vadd.f32 %v1541, %v1612
  %v1614 = vpop.f32.mrb[0].mxu0
  %v1615 = vpop.f32.mrb[0].mxu0
  %v1616 = vadd.f32 %v1544, %v1615
  %v1617 = vpop.f32.mrb[0].mxu0
  %1618 = vmatprep.mubr.bf16.mxu0 %v613
  %1619 = vmatmul.mubr.bf16.gmra.mrb[0].mxu0 %v612
  %v1620 = vpop.f32.mrb[0].mxu0
  %v1621 = vadd.f32 %v1549, %v1620
  %v1622 = vpop.f32.mrb[0].mxu0
  %v1623 = vpop.f32.mrb[0].mxu0
  %v1624 = vadd.f32 %v1552, %v1623
  %v1625 = vpop.f32.mrb[0].mxu0
  %1626 = vmatprep.mubr.bf16.mxu0 %v629
  %1627 = vmatmul.mubr.bf16.gmra.mrb[0].mxu0 %v628
  %v1628 = vpop.f32.mrb[0].mxu0
  %v1629 = vadd.f32 %v1557, %v1628
  %v1630 = vpop.f32.mrb[0].mxu0
  %v1631 = vpop.f32.mrb[0].mxu0
  %v1632 = vpop.f32.mrb[0].mxu0
  %1633 = vdwg.mxu0
  %1634 = vmatprep.subr.bf16.mxu0 0
  %1635 = vmatpush1.bf16.msra.mxu0 %v1266
  %1636 = vmatprep.subr.bf16.mxu0 0
  %1637 = vmatpush1.bf16.msra.mxu0 %v1267
  %1638 = vmatprep.subr.bf16.mxu0 0
  %1639 = vmatpush1.bf16.msra.mxu0 %v1268
  %1640 = vmatprep.subr.bf16.mxu0 0
  %1641 = vmatpush1.bf16.msra.mxu0 %v1269
  %1642 = vmatprep.subr.bf16.mxu0 0
  %1643 = vmatpush1.bf16.msra.mxu0 %v1270
  %1644 = vmatprep.subr.bf16.mxu0 0
  %1645 = vmatpush1.bf16.msra.mxu0 %v1271
  %1646 = vmatprep.subr.bf16.mxu0 0
  %1647 = vmatpush1.bf16.msra.mxu0 %v1272
  %1648 = vmatprep.subr.bf16.mxu0 0
  %1649 = vmatpush1.bf16.msra.mxu0 %v1273
  %1650 = vmatprep.subr.bf16.mxu0 0
  %1651 = vmatpush1.bf16.msra.mxu0 %v1274
  %1652 = vmatprep.subr.bf16.mxu0 0
  %1653 = vmatpush1.bf16.msra.mxu0 %v1275
  %1654 = vmatprep.subr.bf16.mxu0 0
  %1655 = vmatpush1.bf16.msra.mxu0 %v1276
  %1656 = vmatprep.subr.bf16.mxu0 0
  %1657 = vmatpush1.bf16.msra.mxu0 %v1277
  %1658 = vmatprep.subr.bf16.mxu0 0
  %1659 = vmatpush1.bf16.msra.mxu0 %v1278
  %1660 = vmatprep.subr.bf16.mxu0 0
  %1661 = vmatpush1.bf16.msra.mxu0 %v1279
  %1662 = vmatprep.subr.bf16.mxu0 0
  %1663 = vmatpush1.bf16.msra.mxu0 %v1280
  %1664 = vmatprep.subr.bf16.mxu0 0
  %1665 = vmatpush1.bf16.msra.mxu0 %v1281
  %1666 = vmatprep.mubr.bf16.mxu0 %v567
  %1667 = vmatmul.mubr.bf16.gmra.mrb[0].mxu0 %v566
  %v1668 = vpop.f32.mrb[0].mxu0
  %v1669 = vadd.f32 %v1597, %v1668
  %v1670 = vpop.f32.mrb[0].mxu0
  %v1671 = vpop.f32.mrb[0].mxu0
  %v1672 = vadd.f32 %v1600, %v1671
  %v1673 = vpop.f32.mrb[0].mxu0
  %1674 = vmatprep.mubr.bf16.mxu0 %v583
  %1675 = vmatmul.mubr.bf16.gmra.mrb[0].mxu0 %v582
  %v1676 = vpop.f32.mrb[0].mxu0
  %v1677 = vadd.f32 %v1605, %v1676
  %v1678 = vpop.f32.mrb[0].mxu0
  %v1679 = vpop.f32.mrb[0].mxu0
  %v1680 = vadd.f32 %v1608, %v1679
  %v1681 = vpop.f32.mrb[0].mxu0
  %1682 = vmatprep.mubr.bf16.mxu0 %v599
  %1683 = vmatmul.mubr.bf16.gmra.mrb[0].mxu0 %v598
  %v1684 = vpop.f32.mrb[0].mxu0
  %v1685 = vadd.f32 %v1613, %v1684
  %v1686 = vpop.f32.mrb[0].mxu0
  %v1687 = vpop.f32.mrb[0].mxu0
  %v1688 = vadd.f32 %v1616, %v1687
  %v1689 = vpop.f32.mrb[0].mxu0
  %1690 = vmatprep.mubr.bf16.mxu0 %v615
  %1691 = vmatmul.mubr.bf16.gmra.mrb[0].mxu0 %v614
  %v1692 = vpop.f32.mrb[0].mxu0
  %v1693 = vadd.f32 %v1621, %v1692
  %v1694 = vpop.f32.mrb[0].mxu0
  %v1695 = vpop.f32.mrb[0].mxu0
  %v1696 = vadd.f32 %v1624, %v1695
  %v1697 = vpop.f32.mrb[0].mxu0
  %1698 = vmatprep.mubr.bf16.mxu0 %v631
  %1699 = vmatmul.mubr.bf16.gmra.mrb[0].mxu0 %v630
  %v1700 = vpop.f32.mrb[0].mxu0
  %v1701 = vadd.f32 %v1629, %v1700
  %v1702 = vpop.f32.mrb[0].mxu0
  %v1703 = vpop.f32.mrb[0].mxu0
  %v1704 = vpop.f32.mrb[0].mxu0
  %1705 = vdwg.mxu0
  %1706 = vmatprep.subr.bf16.mxu0 0
  %1707 = vmatpush1.bf16.msra.mxu0 %v1282
  %1708 = vmatprep.subr.bf16.mxu0 0
  %1709 = vmatpush1.bf16.msra.mxu0 %v1283
  %1710 = vmatprep.subr.bf16.mxu0 0
  %1711 = vmatpush1.bf16.msra.mxu0 %v1284
  %1712 = vmatprep.subr.bf16.mxu0 0
  %1713 = vmatpush1.bf16.msra.mxu0 %v1285
  %1714 = vmatprep.subr.bf16.mxu0 0
  %1715 = vmatpush1.bf16.msra.mxu0 %v1286
  %1716 = vmatprep.subr.bf16.mxu0 0
  %1717 = vmatpush1.bf16.msra.mxu0 %v1287
  %1718 = vmatprep.subr.bf16.mxu0 0
  %1719 = vmatpush1.bf16.msra.mxu0 %v1288
  %1720 = vmatprep.subr.bf16.mxu0 0
  %1721 = vmatpush1.bf16.msra.mxu0 %v1289
  %1722 = vmatprep.subr.bf16.mxu0 0
  %1723 = vmatpush1.bf16.msra.mxu0 %v1290
  %1724 = vmatprep.subr.bf16.mxu0 0
  %1725 = vmatpush1.bf16.msra.mxu0 %v1291
  %1726 = vmatprep.subr.bf16.mxu0 0
  %1727 = vmatpush1.bf16.msra.mxu0 %v1292
  %1728 = vmatprep.subr.bf16.mxu0 0
  %1729 = vmatpush1.bf16.msra.mxu0 %v1293
  %1730 = vmatprep.subr.bf16.mxu0 0
  %1731 = vmatpush1.bf16.msra.mxu0 %v1294
  %1732 = vmatprep.subr.bf16.mxu0 0
  %1733 = vmatpush1.bf16.msra.mxu0 %v1295
  %1734 = vmatprep.subr.bf16.mxu0 0
  %1735 = vmatpush1.bf16.msra.mxu0 %v1296
  %1736 = vmatprep.subr.bf16.mxu0 0
  %1737 = vmatpush1.bf16.msra.mxu0 %v1297
  %1738 = vmatprep.mubr.bf16.mxu0 %v569
  %1739 = vmatmul.mubr.bf16.gmra.mrb[0].mxu0 %v568
  %v1740 = vpop.f32.mrb[0].mxu0
  %v1741 = vadd.f32 %v1669, %v1740
  %v1742 = vpop.f32.mrb[0].mxu0
  %v1743 = vpop.f32.mrb[0].mxu0
  %v1744 = vadd.f32 %v1672, %v1743
  %v1745 = vpop.f32.mrb[0].mxu0
  %1746 = vmatprep.mubr.bf16.mxu0 %v585
  %1747 = vmatmul.mubr.bf16.gmra.mrb[0].mxu0 %v584
  %v1748 = vpop.f32.mrb[0].mxu0
  %v1749 = vadd.f32 %v1677, %v1748
  %v1750 = vpop.f32.mrb[0].mxu0
  %v1751 = vpop.f32.mrb[0].mxu0
  %v1752 = vadd.f32 %v1680, %v1751
  %v1753 = vpop.f32.mrb[0].mxu0
  %1754 = vmatprep.mubr.bf16.mxu0 %v601
  %1755 = vmatmul.mubr.bf16.gmra.mrb[0].mxu0 %v600
  %v1756 = vpop.f32.mrb[0].mxu0
  %v1757 = vadd.f32 %v1685, %v1756
  %v1758 = vpop.f32.mrb[0].mxu0
  %v1759 = vpop.f32.mrb[0].mxu0
  %v1760 = vadd.f32 %v1688, %v1759
  %v1761 = vpop.f32.mrb[0].mxu0
  %1762 = vmatprep.mubr.bf16.mxu0 %v617
  %1763 = vmatmul.mubr.bf16.gmra.mrb[0].mxu0 %v616
  %v1764 = vpop.f32.mrb[0].mxu0
  %v1765 = vadd.f32 %v1693, %v1764
  %v1766 = vpop.f32.mrb[0].mxu0
  %v1767 = vpop.f32.mrb[0].mxu0
  %v1768 = vadd.f32 %v1696, %v1767
  %v1769 = vpop.f32.mrb[0].mxu0
  %1770 = vmatprep.mubr.bf16.mxu0 %v633
  %1771 = vmatmul.mubr.bf16.gmra.mrb[0].mxu0 %v632
  %v1772 = vpop.f32.mrb[0].mxu0
  %v1773 = vadd.f32 %v1701, %v1772
  %v1774 = vpop.f32.mrb[0].mxu0
  %v1775 = vpop.f32.mrb[0].mxu0
  %v1776 = vpop.f32.mrb[0].mxu0
  %1777 = vdwg.mxu0
  %1778 = vmatprep.subr.bf16.mxu0 0
  %1779 = vmatpush1.bf16.msra.mxu0 %v1298
  %1780 = vmatprep.subr.bf16.mxu0 0
  %1781 = vmatpush1.bf16.msra.mxu0 %v1299
  %1782 = vmatprep.subr.bf16.mxu0 0
  %1783 = vmatpush1.bf16.msra.mxu0 %v1300
  %1784 = vmatprep.subr.bf16.mxu0 0
  %1785 = vmatpush1.bf16.msra.mxu0 %v1301
  %1786 = vmatprep.subr.bf16.mxu0 0
  %1787 = vmatpush1.bf16.msra.mxu0 %v1302
  %1788 = vmatprep.subr.bf16.mxu0 0
  %1789 = vmatpush1.bf16.msra.mxu0 %v1303
  %1790 = vmatprep.subr.bf16.mxu0 0
  %1791 = vmatpush1.bf16.msra.mxu0 %v1304
  %1792 = vmatprep.subr.bf16.mxu0 0
  %1793 = vmatpush1.bf16.msra.mxu0 %v1305
  %1794 = vmatprep.subr.bf16.mxu0 0
  %1795 = vmatpush1.bf16.msra.mxu0 %v1306
  %1796 = vmatprep.subr.bf16.mxu0 0
  %1797 = vmatpush1.bf16.msra.mxu0 %v1307
  %1798 = vmatprep.subr.bf16.mxu0 0
  %1799 = vmatpush1.bf16.msra.mxu0 %v1308
  %1800 = vmatprep.subr.bf16.mxu0 0
  %1801 = vmatpush1.bf16.msra.mxu0 %v1309
  %1802 = vmatprep.subr.bf16.mxu0 0
  %1803 = vmatpush1.bf16.msra.mxu0 %v1310
  %1804 = vmatprep.subr.bf16.mxu0 0
  %1805 = vmatpush1.bf16.msra.mxu0 %v1311
  %1806 = vmatprep.subr.bf16.mxu0 0
  %1807 = vmatpush1.bf16.msra.mxu0 %v1312
  %1808 = vmatprep.subr.bf16.mxu0 0
  %1809 = vmatpush1.bf16.msra.mxu0 %v1313
  %1810 = vmatprep.mubr.bf16.mxu0 %v571
  %1811 = vmatmul.mubr.bf16.gmra.mrb[0].mxu0 %v570
  %v1812 = vpop.f32.mrb[0].mxu0
  %v1813 = vadd.f32 %v1741, %v1812
  %v1814 = vpop.f32.mrb[0].mxu0
  %v1815 = vpop.f32.mrb[0].mxu0
  %v1816 = vadd.f32 %v1744, %v1815
  %v1817 = vpop.f32.mrb[0].mxu0
  %1818 = vmatprep.mubr.bf16.mxu0 %v587
  %1819 = vmatmul.mubr.bf16.gmra.mrb[0].mxu0 %v586
  %v1820 = vpop.f32.mrb[0].mxu0
  %v1821 = vadd.f32 %v1749, %v1820
  %v1822 = vpop.f32.mrb[0].mxu0
  %v1823 = vpop.f32.mrb[0].mxu0
  %v1824 = vadd.f32 %v1752, %v1823
  %v1825 = vpop.f32.mrb[0].mxu0
  %1826 = vmatprep.mubr.bf16.mxu0 %v603
  %1827 = vmatmul.mubr.bf16.gmra.mrb[0].mxu0 %v602
  %v1828 = vpop.f32.mrb[0].mxu0
  %v1829 = vadd.f32 %v1757, %v1828
  %v1830 = vpop.f32.mrb[0].mxu0
  %v1831 = vpop.f32.mrb[0].mxu0
  %v1832 = vadd.f32 %v1760, %v1831
  %v1833 = vpop.f32.mrb[0].mxu0
  %1834 = vmatprep.mubr.bf16.mxu0 %v619
  %1835 = vmatmul.mubr.bf16.gmra.mrb[0].mxu0 %v618
  %v1836 = vpop.f32.mrb[0].mxu0
  %v1837 = vadd.f32 %v1765, %v1836
  %v1838 = vpop.f32.mrb[0].mxu0
  %v1839 = vpop.f32.mrb[0].mxu0
  %v1840 = vadd.f32 %v1768, %v1839
  %v1841 = vpop.f32.mrb[0].mxu0
  %1842 = vmatprep.mubr.bf16.mxu0 %v635
  %1843 = vmatmul.mubr.bf16.gmra.mrb[0].mxu0 %v634
  %v1844 = vpop.f32.mrb[0].mxu0
  %v1845 = vadd.f32 %v1773, %v1844
  %v1846 = vpop.f32.mrb[0].mxu0
  %v1847 = vpop.f32.mrb[0].mxu0
  %v1848 = vpop.f32.mrb[0].mxu0
  %1849 = vdwg.mxu0
  %1850 = vmatprep.subr.bf16.mxu0 0
  %1851 = vmatpush1.bf16.msra.mxu0 %v1314
  %1852 = vmatprep.subr.bf16.mxu0 0
  %1853 = vmatpush1.bf16.msra.mxu0 %v1315
  %1854 = vmatprep.subr.bf16.mxu0 0
  %1855 = vmatpush1.bf16.msra.mxu0 %v1316
  %1856 = vmatprep.subr.bf16.mxu0 0
  %1857 = vmatpush1.bf16.msra.mxu0 %v1317
  %1858 = vmatprep.subr.bf16.mxu0 0
  %1859 = vmatpush1.bf16.msra.mxu0 %v1318
  %1860 = vmatprep.subr.bf16.mxu0 0
  %1861 = vmatpush1.bf16.msra.mxu0 %v1319
  %1862 = vmatprep.subr.bf16.mxu0 0
  %1863 = vmatpush1.bf16.msra.mxu0 %v1320
  %1864 = vmatprep.subr.bf16.mxu0 0
  %1865 = vmatpush1.bf16.msra.mxu0 %v1321
  %1866 = vmatprep.subr.bf16.mxu0 0
  %1867 = vmatpush1.bf16.msra.mxu0 %v1322
  %1868 = vmatprep.subr.bf16.mxu0 0
  %1869 = vmatpush1.bf16.msra.mxu0 %v1323
  %1870 = vmatprep.subr.bf16.mxu0 0
  %1871 = vmatpush1.bf16.msra.mxu0 %v1324
  %1872 = vmatprep.subr.bf16.mxu0 0
  %1873 = vmatpush1.bf16.msra.mxu0 %v1325
  %1874 = vmatprep.subr.bf16.mxu0 0
  %1875 = vmatpush1.bf16.msra.mxu0 %v1326
  %1876 = vmatprep.subr.bf16.mxu0 0
  %1877 = vmatpush1.bf16.msra.mxu0 %v1327
  %1878 = vmatprep.subr.bf16.mxu0 0
  %1879 = vmatpush1.bf16.msra.mxu0 %v1328
  %1880 = vmatprep.subr.bf16.mxu0 0
  %1881 = vmatpush1.bf16.msra.mxu0 %v1329
  %1882 = vmatprep.mubr.bf16.mxu0 %v573
  %1883 = vmatmul.mubr.bf16.gmra.mrb[0].mxu0 %v572
  %v1884 = vpop.f32.mrb[0].mxu0
  %v1885 = vadd.f32 %v1813, %v1884
  %v1886 = vpop.f32.mrb[0].mxu0
  %v1887 = vpop.f32.mrb[0].mxu0
  %v1888 = vadd.f32 %v1816, %v1887
  %v1889 = vpop.f32.mrb[0].mxu0
  %1890 = vmatprep.mubr.bf16.mxu0 %v589
  %1891 = vmatmul.mubr.bf16.gmra.mrb[0].mxu0 %v588
  %v1892 = vpop.f32.mrb[0].mxu0
  %v1893 = vadd.f32 %v1821, %v1892
  %v1894 = vpop.f32.mrb[0].mxu0
  %v1895 = vpop.f32.mrb[0].mxu0
  %v1896 = vadd.f32 %v1824, %v1895
  %v1897 = vpop.f32.mrb[0].mxu0
  %1898 = vmatprep.mubr.bf16.mxu0 %v605
  %1899 = vmatmul.mubr.bf16.gmra.mrb[0].mxu0 %v604
  %v1900 = vpop.f32.mrb[0].mxu0
  %v1901 = vadd.f32 %v1829, %v1900
  %v1902 = vpop.f32.mrb[0].mxu0
  %v1903 = vpop.f32.mrb[0].mxu0
  %v1904 = vadd.f32 %v1832, %v1903
  %v1905 = vpop.f32.mrb[0].mxu0
  %1906 = vmatprep.mubr.bf16.mxu0 %v621
  %1907 = vmatmul.mubr.bf16.gmra.mrb[0].mxu0 %v620
  %v1908 = vpop.f32.mrb[0].mxu0
  %v1909 = vadd.f32 %v1837, %v1908
  %v1910 = vpop.f32.mrb[0].mxu0
  %v1911 = vpop.f32.mrb[0].mxu0
  %v1912 = vadd.f32 %v1840, %v1911
  %v1913 = vpop.f32.mrb[0].mxu0
  %1914 = vmatprep.mubr.bf16.mxu0 %v637
  %1915 = vmatmul.mubr.bf16.gmra.mrb[0].mxu0 %v636
  %v1916 = vpop.f32.mrb[0].mxu0
  %v1917 = vadd.f32 %v1845, %v1916
  %v1918 = vpop.f32.mrb[0].mxu0
  %v1919 = vpop.f32.mrb[0].mxu0
  %v1920 = vpop.f32.mrb[0].mxu0
  %1921 = vdwg.mxu0
  %1922 = vmatprep.subr.bf16.mxu0 0
  %1923 = vmatpush1.bf16.msra.mxu0 %v1330
  %1924 = vmatprep.subr.bf16.mxu0 0
  %1925 = vmatpush1.bf16.msra.mxu0 %v1331
  %1926 = vmatprep.subr.bf16.mxu0 0
  %1927 = vmatpush1.bf16.msra.mxu0 %v1332
  %1928 = vmatprep.subr.bf16.mxu0 0
  %1929 = vmatpush1.bf16.msra.mxu0 %v1333
  %1930 = vmatprep.subr.bf16.mxu0 0
  %1931 = vmatpush1.bf16.msra.mxu0 %v1334
  %1932 = vmatprep.subr.bf16.mxu0 0
  %1933 = vmatpush1.bf16.msra.mxu0 %v1335
  %1934 = vmatprep.subr.bf16.mxu0 0
  %1935 = vmatpush1.bf16.msra.mxu0 %v1336
  %1936 = vmatprep.subr.bf16.mxu0 0
  %1937 = vmatpush1.bf16.msra.mxu0 %v1337
  %1938 = vmatprep.subr.bf16.mxu0 0
  %1939 = vmatpush1.bf16.msra.mxu0 %v1338
  %1940 = vmatprep.subr.bf16.mxu0 0
  %1941 = vmatpush1.bf16.msra.mxu0 %v1339
  %1942 = vmatprep.subr.bf16.mxu0 0
  %1943 = vmatpush1.bf16.msra.mxu0 %v1340
  %1944 = vmatprep.subr.bf16.mxu0 0
  %1945 = vmatpush1.bf16.msra.mxu0 %v1341
  %1946 = vmatprep.subr.bf16.mxu0 0
  %1947 = vmatpush1.bf16.msra.mxu0 %v1342
  %1948 = vmatprep.subr.bf16.mxu0 0
  %1949 = vmatpush1.bf16.msra.mxu0 %v1343
  %1950 = vmatprep.subr.bf16.mxu0 0
  %1951 = vmatpush1.bf16.msra.mxu0 %v1344
  %1952 = vmatprep.subr.bf16.mxu0 0
  %1953 = vmatpush1.bf16.msra.mxu0 %v1345
  %1954 = vmatprep.mubr.bf16.mxu0 %v575
  %1955 = vmatmul.mubr.bf16.gmra.mrb[0].mxu0 %v574
  %v1956 = vpop.f32.mrb[0].mxu0
  %v1957 = vadd.f32 %v1885, %v1956
  %v1958 = vpop.f32.mrb[0].mxu0
  %v1959 = vpop.f32.mrb[0].mxu0
  %v1960 = vadd.f32 %v1888, %v1959
  %v1961 = vpop.f32.mrb[0].mxu0
  %1962 = vmatprep.mubr.bf16.mxu0 %v591
  %1963 = vmatmul.mubr.bf16.gmra.mrb[0].mxu0 %v590
  %v1964 = vpop.f32.mrb[0].mxu0
  %v1965 = vadd.f32 %v1893, %v1964
  %v1966 = vpop.f32.mrb[0].mxu0
  %v1967 = vpop.f32.mrb[0].mxu0
  %v1968 = vadd.f32 %v1896, %v1967
  %v1969 = vpop.f32.mrb[0].mxu0
  %1970 = vmatprep.mubr.bf16.mxu0 %v607
  %1971 = vmatmul.mubr.bf16.gmra.mrb[0].mxu0 %v606
  %v1972 = vpop.f32.mrb[0].mxu0
  %v1973 = vadd.f32 %v1901, %v1972
  %v1974 = vpop.f32.mrb[0].mxu0
  %v1975 = vpop.f32.mrb[0].mxu0
  %v1976 = vadd.f32 %v1904, %v1975
  %v1977 = vpop.f32.mrb[0].mxu0
  %1978 = vmatprep.mubr.bf16.mxu0 %v623
  %1979 = vmatmul.mubr.bf16.gmra.mrb[0].mxu0 %v622
  %v1980 = vpop.f32.mrb[0].mxu0
  %v1981 = vadd.f32 %v1909, %v1980
  %v1982 = vpop.f32.mrb[0].mxu0
  %v1983 = vpop.f32.mrb[0].mxu0
  %v1984 = vadd.f32 %v1912, %v1983
  %v1985 = vpop.f32.mrb[0].mxu0
  %1986 = vmatprep.mubr.bf16.mxu0 %v639
  %1987 = vmatmul.mubr.bf16.gmra.mrb[0].mxu0 %v638
  %v1988 = vpop.f32.mrb[0].mxu0
  %v1989 = vadd.f32 %v1917, %v1988
  %v1990 = vpop.f32.mrb[0].mxu0
  %v1991 = vpop.f32.mrb[0].mxu0
  %v1992 = vpop.f32.mrb[0].mxu0
  %1993 = vdwg.mxu0
  %1994 = vmatprep.subr.bf16.mxu0 0
  %1995 = vmatpush1.bf16.msra.mxu0 %v1346
  %1996 = vmatprep.subr.bf16.mxu0 0
  %1997 = vmatpush1.bf16.msra.mxu0 %v1347
  %1998 = vmatprep.subr.bf16.mxu0 0
  %1999 = vmatpush1.bf16.msra.mxu0 %v1348
  %2000 = vmatprep.subr.bf16.mxu0 0
  %2001 = vmatpush1.bf16.msra.mxu0 %v1349
  %2002 = vmatprep.subr.bf16.mxu0 0
  %2003 = vmatpush1.bf16.msra.mxu0 %v1350
  %2004 = vmatprep.subr.bf16.mxu0 0
  %2005 = vmatpush1.bf16.msra.mxu0 %v1351
  %2006 = vmatprep.subr.bf16.mxu0 0
  %2007 = vmatpush1.bf16.msra.mxu0 %v1352
  %2008 = vmatprep.subr.bf16.mxu0 0
  %2009 = vmatpush1.bf16.msra.mxu0 %v1353
  %2010 = vmatprep.subr.bf16.mxu0 0
  %2011 = vmatpush1.bf16.msra.mxu0 %v1354
  %2012 = vmatprep.subr.bf16.mxu0 0
  %2013 = vmatpush1.bf16.msra.mxu0 %v1355
  %2014 = vmatprep.subr.bf16.mxu0 0
  %2015 = vmatpush1.bf16.msra.mxu0 %v1356
  %2016 = vmatprep.subr.bf16.mxu0 0
  %2017 = vmatpush1.bf16.msra.mxu0 %v1357
  %2018 = vmatprep.subr.bf16.mxu0 0
  %2019 = vmatpush1.bf16.msra.mxu0 %v1358
  %2020 = vmatprep.subr.bf16.mxu0 0
  %2021 = vmatpush1.bf16.msra.mxu0 %v1359
  %2022 = vmatprep.subr.bf16.mxu0 0
  %2023 = vmatpush1.bf16.msra.mxu0 %v1360
  %2024 = vmatprep.subr.bf16.mxu0 0
  %2025 = vmatpush1.bf16.msra.mxu0 %v1361
  %2026 = vmatprep.mubr.bf16.mxu0 %v577
  %2027 = vmatmul.mubr.bf16.gmra.mrb[0].mxu0 %v576
  %v2028 = vpop.f32.mrb[0].mxu0
  %v2029 = vadd.f32 %v1957, %v2028
  %v2030 = vpop.f32.mrb[0].mxu0
  %v2031 = vpop.f32.mrb[0].mxu0
  %v2032 = vadd.f32 %v1960, %v2031
  %v2033 = vpop.f32.mrb[0].mxu0
  %2034 = vmatprep.mubr.bf16.mxu0 %v593
  %2035 = vmatmul.mubr.bf16.gmra.mrb[0].mxu0 %v592
  %v2036 = vpop.f32.mrb[0].mxu0
  %v2037 = vadd.f32 %v1965, %v2036
  %v2038 = vpop.f32.mrb[0].mxu0
  %v2039 = vpop.f32.mrb[0].mxu0
  %v2040 = vadd.f32 %v1968, %v2039
  %v2041 = vpop.f32.mrb[0].mxu0
  %2042 = vmatprep.mubr.bf16.mxu0 %v609
  %2043 = vmatmul.mubr.bf16.gmra.mrb[0].mxu0 %v608
  %v2044 = vpop.f32.mrb[0].mxu0
  %v2045 = vadd.f32 %v1973, %v2044
  %v2046 = vpop.f32.mrb[0].mxu0
  %v2047 = vpop.f32.mrb[0].mxu0
  %v2048 = vadd.f32 %v1976, %v2047
  %v2049 = vpop.f32.mrb[0].mxu0
  %2050 = vmatprep.mubr.bf16.mxu0 %v625
  %2051 = vmatmul.mubr.bf16.gmra.mrb[0].mxu0 %v624
  %v2052 = vpop.f32.mrb[0].mxu0
  %v2053 = vadd.f32 %v1981, %v2052
  %v2054 = vpop.f32.mrb[0].mxu0
  %v2055 = vpop.f32.mrb[0].mxu0
  %v2056 = vadd.f32 %v1984, %v2055
  %v2057 = vpop.f32.mrb[0].mxu0
  %2058 = vmatprep.mubr.bf16.mxu0 %v641
  %2059 = vmatmul.mubr.bf16.gmra.mrb[0].mxu0 %v640
  %v2060 = vpop.f32.mrb[0].mxu0
  %v2061 = vadd.f32 %v1989, %v2060
  %v2062 = vpop.f32.mrb[0].mxu0
  %v2063 = vpop.f32.mrb[0].mxu0
  %v2064 = vpop.f32.mrb[0].mxu0
  %2065 = vdwg.mxu0
  %v2066 = vadd.f32 %v2029, %v2032
  %v2067 = vadd.f32 %v2066, %v2037
  %v2068 = vadd.f32 %v2067, %v2040
  %v2069 = vadd.f32 %v2068, %v2045
  %v2070 = vadd.f32 %v2069, %v2048
  %v2071 = vadd.f32 %v2070, %v2053
  %v2072 = vadd.f32 %v2071, %v2056
  %v2073 = vadd.f32 %v2072, %v2061
  %v2074 = vrot.slane %v2073, 4
  %v2075 = vadd.f32 %v2073, %v2074
  %v2076 = vrot.slane %v2075, 2
  %v2077 = vadd.f32 %v2075, %v2076
  %v2078 = vrot.slane %v2077, 1
  %v2079 = vadd.f32 %v2077, %v2078
  %v2080 = vrcp.pop 72.0
  %v2081 = vmul.f32 %v2079, %v2080
  %v2082 = vsub.f32 %v2029, %v2081
  %v2083 = vsub.f32 %v2032, %v2081
  %v2084 = vsub.f32 %v2037, %v2081
  %v2085 = vsub.f32 %v2040, %v2081
  %v2086 = vsub.f32 %v2045, %v2081
  %v2087 = vsub.f32 %v2048, %v2081
  %v2088 = vsub.f32 %v2053, %v2081
  %v2089 = vsub.f32 %v2056, %v2081
  %v2090 = vsub.f32 %v2061, %v2081
  %v2091 = vmul.f32 %v2082, %v2082
  %v2092 = vmul.f32 %v2083, %v2083
  %v2093 = vmul.f32 %v2084, %v2084
  %v2094 = vmul.f32 %v2085, %v2085
  %v2095 = vmul.f32 %v2086, %v2086
  %v2096 = vmul.f32 %v2087, %v2087
  %v2097 = vmul.f32 %v2088, %v2088
  %v2098 = vmul.f32 %v2089, %v2089
  %v2099 = vmul.f32 %v2090, %v2090
  %v2100 = vadd.f32 %v2091, %v2092
  %v2101 = vadd.f32 %v2100, %v2093
  %v2102 = vadd.f32 %v2101, %v2094
  %v2103 = vadd.f32 %v2102, %v2095
  %v2104 = vadd.f32 %v2103, %v2096
  %v2105 = vadd.f32 %v2104, %v2097
  %v2106 = vadd.f32 %v2105, %v2098
  %v2107 = vadd.f32 %v2106, %v2099
  %v2108 = vrot.slane %v2107, 4
  %v2109 = vadd.f32 %v2107, %v2108
  %v2110 = vrot.slane %v2109, 2
  %v2111 = vadd.f32 %v2109, %v2110
  %v2112 = vrot.slane %v2111, 1
  %v2113 = vadd.f32 %v2111, %v2112
  %v2114 = vmul.f32 %v2113, %v2080
  %v2115 = vadd.f32 %v2114, 1e-05
  %v2116 = vrsqrt.pop %v2115
  %v2117 = vmul.f32 %v2082, %v2116
  %v2118 = vmul.f32 %v2083, %v2116
  %v2119 = vmul.f32 %v2084, %v2116
  %v2120 = vmul.f32 %v2085, %v2116
  %v2121 = vmul.f32 %v2086, %v2116
  %v2122 = vmul.f32 %v2087, %v2116
  %v2123 = vmul.f32 %v2088, %v2116
  %v2124 = vmul.f32 %v2089, %v2116
  %v2125 = vmul.f32 %v2090, %v2116
  %v2126 = vld [vmem:[%s2] sm:$0x1]
  %v2128 = vlaneseq
  %v2129 = vshrl.u32 %v2128, 7
  %v2130 = vsub.s32 0, %v2129
  %v2131 = vrot.slane %v2126, %v2130
  %v2133 = vmul.f32 %v2117, %v2131
  %v2134 = vmul.f32 %v2118, %v2131
  %v2135 = vmul.f32 %v2119, %v2131
  %v2136 = vmul.f32 %v2120, %v2131
  %v2137 = vmul.f32 %v2121, %v2131
  %v2138 = vmul.f32 %v2122, %v2131
  %v2139 = vmul.f32 %v2123, %v2131
  %v2140 = vmul.f32 %v2124, %v2131
  %v2141 = vmul.f32 %v2125, %v2131
  %v2142 = vld [vmem:[%s3] sm:$0x1]
  %v2144 = vlaneseq
  %v2145 = vshrl.u32 %v2144, 7
  %v2146 = vsub.s32 0, %v2145
  %v2147 = vrot.slane %v2142, %v2146
  %v2149 = vadd.f32 %v2133, %v2147
  %v2150 = vadd.f32 %v2134, %v2147
  %v2151 = vadd.f32 %v2135, %v2147
  %v2152 = vadd.f32 %v2136, %v2147
  %v2153 = vadd.f32 %v2137, %v2147
  %v2154 = vadd.f32 %v2138, %v2147
  %v2155 = vadd.f32 %v2139, %v2147
  %v2156 = vadd.f32 %v2140, %v2147
  %v2157 = vadd.f32 %v2141, %v2147
  %vm2158 = vcmp.gt.f32.partialorder %v2149, 0.0
  %vm2159 = vcmp.gt.f32.partialorder %v2150, 0.0
  %vm2160 = vcmp.gt.f32.partialorder %v2151, 0.0
  %vm2161 = vcmp.gt.f32.partialorder %v2152, 0.0
  %vm2162 = vcmp.gt.f32.partialorder %v2153, 0.0
  %vm2163 = vcmp.gt.f32.partialorder %v2154, 0.0
  %vm2164 = vcmp.gt.f32.partialorder %v2155, 0.0
  %vm2165 = vcmp.gt.f32.partialorder %v2156, 0.0
  %vm2166 = vcmp.gt.f32.partialorder %v2157, 0.0
  %v2167 = vmul.f32 %v2149, 0.2
  %v2168 = vmul.f32 %v2150, 0.2
  %v2169 = vmul.f32 %v2151, 0.2
  %v2170 = vmul.f32 %v2152, 0.2
  %v2171 = vmul.f32 %v2153, 0.2
  %v2172 = vmul.f32 %v2154, 0.2
  %v2173 = vmul.f32 %v2155, 0.2
  %v2174 = vmul.f32 %v2156, 0.2
  %v2175 = vmul.f32 %v2157, 0.2
  %v2176 = vsel %vm2158, %v2149, %v2167
  %v2177 = vsel %vm2159, %v2150, %v2168
  %v2178 = vsel %vm2160, %v2151, %v2169
  %v2179 = vsel %vm2161, %v2152, %v2170
  %v2180 = vsel %vm2162, %v2153, %v2171
  %v2181 = vsel %vm2163, %v2154, %v2172
  %v2182 = vsel %vm2164, %v2155, %v2173
  %v2183 = vsel %vm2165, %v2156, %v2174
  %v2184 = vsel %vm2166, %v2157, %v2175
  %v2185 = vpack.c.bf16 %v2177, %v2176
  %v2186 = vpack.c.bf16 %v2179, %v2178
  %v2187 = vpack.c.bf16 %v2181, %v2180
  %v2188 = vpack.c.bf16 %v2183, %v2182
  %v2189 = vpack.c.bf16 %v2184, %v2184
  %v2195 = vunpack.c.l.b16 %v2185
  %v2196 = vunpack.c.h.b16 %v2185
  %v2197 = vunpack.c.l.b16 %v2186
  %v2198 = vunpack.c.h.b16 %v2186
  %v2199 = vunpack.c.l.b16 %v2187
  %v2200 = vunpack.c.h.b16 %v2187
  %v2201 = vunpack.c.l.b16 %v2188
  %v2202 = vunpack.c.h.b16 %v2188
  %v2203 = vunpack.c.l.b16 %v2189
  %v2204 = vpack.c.b16 %v2195, %v2195
  %v2205 = vpack.c.b16 %v2196, %v2196
  %v2206 = vpack.c.b16 %v2197, %v2197
  %v2207 = vpack.c.b16 %v2198, %v2198
  %v2208 = vpack.c.b16 %v2199, %v2199
  %v2209 = vpack.c.b16 %v2200, %v2200
  %v2210 = vpack.c.b16 %v2201, %v2201
  %v2211 = vpack.c.b16 %v2202, %v2202
  %v2212 = vpack.c.b16 %v2203, %v2203
  %2222 = vst [vmem:[%s4] sm:$0xf] %v2204
  %2223 = vst [vmem:[%s4 + $0x4] sm:$0xf] %v2205
  %2224 = vst [vmem:[%s4 + $0x8] sm:$0xf] %v2206
  %2225 = vst [vmem:[%s4 + $0xc] sm:$0xf] %v2207
  %2226 = vst [vmem:[%s4 + $0x10] sm:$0xf] %v2208
  %2227 = vst [vmem:[%s4 + $0x14] sm:$0xf] %v2209
  %2228 = vst [vmem:[%s4 + $0x18] sm:$0xf] %v2210
  %2229 = vst [vmem:[%s4 + $0x1c] sm:$0xf] %v2211
  %2230 = vst [vmem:[%s4 + $0x20] sm:$0xf] %v2212
  // Predicated region
  $region18: #{patch_discriminator_forward.4} parent=0 // pred_check
    _
  $region19: #{patch_discriminator_forward.4} parent=0 // pred_check_branch
    %2232 = sbr.rel (0) target = $region21
  $region20: #{patch_discriminator_forward.4} parent=0 // pred_region
    _
  $region21: #{patch_discriminator_forward.4} parent=0 // pred_fallthru
    _
  // Predicated region
  $region22: #{patch_discriminator_forward.4} parent=0 // pred_check
    _
  $region23: #{patch_discriminator_forward.4} parent=0 // pred_check_branch
    %2234 = sbr.rel (0) target = $region25
  $region24: #{patch_discriminator_forward.4} parent=0 // pred_region
    _
  $region25: #{patch_discriminator_forward.4} parent=0 // pred_fallthru
    _

// kernel: patch_discriminator_forward.5
$region0: #{patch_discriminator_forward.5}
  #allocation0 [shape = 'u32[]', space=smem, size = 0x4, offset = 0x4, fixed_abs, tag = 'smem constant byte address 0x4 - core index']
  #allocation1 [shape = 'u32[144,128]{1,0:T(1,128)}', space=vmem, size = 0x12000, scoped, tag = 'internal scratch']
  %s0 = inlined_call_operand.vmem [shape: bf16[8,2048], index: 0, kind: input, shape index: {}]
  %s1 = inlined_call_operand.vmem [shape: bf16[2048,256], index: 1, kind: input, shape index: {}]
  %s2 = inlined_call_operand.vmem [shape: f32[1,256], index: 2, kind: input, shape index: {}]
  %s3 = inlined_call_operand.vmem [shape: f32[8,256], index: 3, kind: output, shape index: {}]
  %s4 = sld [smem:[#allocation0]]
  $region22: #{patch_discriminator_forward.5} parent=0
    _
  %s6 = ssub.s32 1, %s4
  %s7 = scalar_select 0, %s6, %s4
  // Predicated region
  $region2: #{patch_discriminator_forward.5} parent=0 // pred_check
    _
  $region3: #{patch_discriminator_forward.5} parent=0 // pred_check_branch
    %9 = sbr.rel (0) target = $region5
  $region4: #{patch_discriminator_forward.5} parent=0 // pred_region
    _
  $region5: #{patch_discriminator_forward.5} parent=0 // pred_fallthru
    _
  // Predicated region
  $region6: #{patch_discriminator_forward.5} parent=0 // pred_check
    _
  $region7: #{patch_discriminator_forward.5} parent=0 // pred_check_branch
    %11 = sbr.rel (0) target = $region9
  $region8: #{patch_discriminator_forward.5} parent=0 // pred_region
    _
  $region9: #{patch_discriminator_forward.5} parent=0 // pred_fallthru
    _
  // Predicated region
  $region10: #{patch_discriminator_forward.5} parent=0 // pred_check
    _
  $region11: #{patch_discriminator_forward.5} parent=0 // pred_check_branch
    %13 = sbr.rel (0) target = $region13
  $region12: #{patch_discriminator_forward.5} parent=0 // pred_region
    _
  $region13: #{patch_discriminator_forward.5} parent=0 // pred_fallthru
    _
  %v14 = vld [vmem:[%s0] sm:$0xff]
  %v15 = vld [vmem:[%s0 + $0x8] sm:$0xff]
  %v16 = vld [vmem:[%s0 + $0x10] sm:$0xff]
  %v17 = vld [vmem:[%s0 + $0x18] sm:$0xff]
  %v18 = vld [vmem:[%s0 + $0x20] sm:$0xff]
  %v19 = vld [vmem:[%s0 + $0x28] sm:$0xff]
  %v20 = vld [vmem:[%s0 + $0x30] sm:$0xff]
  %v21 = vld [vmem:[%s0 + $0x38] sm:$0xff]
  %v22 = vld [vmem:[%s1] sm:$0xff]
  %v23 = vld [vmem:[%s1 + $0x8] sm:$0xff]
  %v24 = vld [vmem:[%s1 + $0x10] sm:$0xff]
  %v25 = vld [vmem:[%s1 + $0x18] sm:$0xff]
  %v26 = vld [vmem:[%s1 + $0x20] sm:$0xff]
  %v27 = vld [vmem:[%s1 + $0x28] sm:$0xff]
  %v28 = vld [vmem:[%s1 + $0x30] sm:$0xff]
  %v29 = vld [vmem:[%s1 + $0x38] sm:$0xff]
  %v30 = vld [vmem:[%s1 + $0x40] sm:$0xff]
  %v31 = vld [vmem:[%s1 + $0x48] sm:$0xff]
  %v32 = vld [vmem:[%s1 + $0x50] sm:$0xff]
  %v33 = vld [vmem:[%s1 + $0x58] sm:$0xff]
  %v34 = vld [vmem:[%s1 + $0x60] sm:$0xff]
  %v35 = vld [vmem:[%s1 + $0x68] sm:$0xff]
  %v36 = vld [vmem:[%s1 + $0x70] sm:$0xff]
  %v37 = vld [vmem:[%s1 + $0x78] sm:$0xff]
  %v38 = vld [vmem:[%s1 + $0x80] sm:$0xff]
  %v39 = vld [vmem:[%s1 + $0x88] sm:$0xff]
  %v40 = vld [vmem:[%s1 + $0x90] sm:$0xff]
  %v41 = vld [vmem:[%s1 + $0x98] sm:$0xff]
  %v42 = vld [vmem:[%s1 + $0xa0] sm:$0xff]
  %v43 = vld [vmem:[%s1 + $0xa8] sm:$0xff]
  %v44 = vld [vmem:[%s1 + $0xb0] sm:$0xff]
  %v45 = vld [vmem:[%s1 + $0xb8] sm:$0xff]
  %v46 = vld [vmem:[%s1 + $0xc0] sm:$0xff]
  %v47 = vld [vmem:[%s1 + $0xc8] sm:$0xff]
  %v48 = vld [vmem:[%s1 + $0xd0] sm:$0xff]
  %v49 = vld [vmem:[%s1 + $0xd8] sm:$0xff]
  %v50 = vld [vmem:[%s1 + $0xe0] sm:$0xff]
  %v51 = vld [vmem:[%s1 + $0xe8] sm:$0xff]
  %v52 = vld [vmem:[%s1 + $0xf0] sm:$0xff]
  %v53 = vld [vmem:[%s1 + $0xf8] sm:$0xff]
  %v54 = vld [vmem:[%s1 + $0x100] sm:$0xff]
  %v55 = vld [vmem:[%s1 + $0x108] sm:$0xff]
  %v56 = vld [vmem:[%s1 + $0x110] sm:$0xff]
  %v57 = vld [vmem:[%s1 + $0x118] sm:$0xff]
  %v58 = vld [vmem:[%s1 + $0x120] sm:$0xff]
  %v59 = vld [vmem:[%s1 + $0x128] sm:$0xff]
  %v60 = vld [vmem:[%s1 + $0x130] sm:$0xff]
  %v61 = vld [vmem:[%s1 + $0x138] sm:$0xff]
  %v62 = vld [vmem:[%s1 + $0x140] sm:$0xff]
  %v63 = vld [vmem:[%s1 + $0x148] sm:$0xff]
  %v64 = vld [vmem:[%s1 + $0x150] sm:$0xff]
  %v65 = vld [vmem:[%s1 + $0x158] sm:$0xff]
  %v66 = vld [vmem:[%s1 + $0x160] sm:$0xff]
  %v67 = vld [vmem:[%s1 + $0x168] sm:$0xff]
  %v68 = vld [vmem:[%s1 + $0x170] sm:$0xff]
  %v69 = vld [vmem:[%s1 + $0x178] sm:$0xff]
  %v70 = vld [vmem:[%s1 + $0x180] sm:$0xff]
  %v71 = vld [vmem:[%s1 + $0x188] sm:$0xff]
  %v72 = vld [vmem:[%s1 + $0x190] sm:$0xff]
  %v73 = vld [vmem:[%s1 + $0x198] sm:$0xff]
  %v74 = vld [vmem:[%s1 + $0x1a0] sm:$0xff]
  %v75 = vld [vmem:[%s1 + $0x1a8] sm:$0xff]
  %v76 = vld [vmem:[%s1 + $0x1b0] sm:$0xff]
  %v77 = vld [vmem:[%s1 + $0x1b8] sm:$0xff]
  %v78 = vld [vmem:[%s1 + $0x1c0] sm:$0xff]
  %v79 = vld [vmem:[%s1 + $0x1c8] sm:$0xff]
  %v80 = vld [vmem:[%s1 + $0x1d0] sm:$0xff]
  %v81 = vld [vmem:[%s1 + $0x1d8] sm:$0xff]
  %v82 = vld [vmem:[%s1 + $0x1e0] sm:$0xff]
  %v83 = vld [vmem:[%s1 + $0x1e8] sm:$0xff]
  %v84 = vld [vmem:[%s1 + $0x1f0] sm:$0xff]
  %v85 = vld [vmem:[%s1 + $0x1f8] sm:$0xff]
  %v86 = vld [vmem:[%s1 + $0x200] sm:$0xff]
  %v87 = vld [vmem:[%s1 + $0x208] sm:$0xff]
  %v88 = vld [vmem:[%s1 + $0x210] sm:$0xff]
  %v89 = vld [vmem:[%s1 + $0x218] sm:$0xff]
  %v90 = vld [vmem:[%s1 + $0x220] sm:$0xff]
  %v91 = vld [vmem:[%s1 + $0x228] sm:$0xff]
  %v92 = vld [vmem:[%s1 + $0x230] sm:$0xff]
  %v93 = vld [vmem:[%s1 + $0x238] sm:$0xff]
  %v94 = vld [vmem:[%s1 + $0x240] sm:$0xff]
  %v95 = vld [vmem:[%s1 + $0x248] sm:$0xff]
  %v96 = vld [vmem:[%s1 + $0x250] sm:$0xff]
  %v97 = vld [vmem:[%s1 + $0x258] sm:$0xff]
  %v98 = vld [vmem:[%s1 + $0x260] sm:$0xff]
  %v99 = vld [vmem:[%s1 + $0x268] sm:$0xff]
  %v100 = vld [vmem:[%s1 + $0x270] sm:$0xff]
  %v101 = vld [vmem:[%s1 + $0x278] sm:$0xff]
  %v102 = vld [vmem:[%s1 + $0x280] sm:$0xff]
  %v103 = vld [vmem:[%s1 + $0x288] sm:$0xff]
  %v104 = vld [vmem:[%s1 + $0x290] sm:$0xff]
  %v105 = vld [vmem:[%s1 + $0x298] sm:$0xff]
  %v106 = vld [vmem:[%s1 + $0x2a0] sm:$0xff]
  %v107 = vld [vmem:[%s1 + $0x2a8] sm:$0xff]
  %v108 = vld [vmem:[%s1 + $0x2b0] sm:$0xff]
  %v109 = vld [vmem:[%s1 + $0x2b8] sm:$0xff]
  %v110 = vld [vmem:[%s1 + $0x2c0] sm:$0xff]
  %v111 = vld [vmem:[%s1 + $0x2c8] sm:$0xff]
  %v112 = vld [vmem:[%s1 + $0x2d0] sm:$0xff]
  %v113 = vld [vmem:[%s1 + $0x2d8] sm:$0xff]
  %v114 = vld [vmem:[%s1 + $0x2e0] sm:$0xff]
  %v115 = vld [vmem:[%s1 + $0x2e8] sm:$0xff]
  %v116 = vld [vmem:[%s1 + $0x2f0] sm:$0xff]
  %v117 = vld [vmem:[%s1 + $0x2f8] sm:$0xff]
  %v118 = vld [vmem:[%s1 + $0x300] sm:$0xff]
  %v119 = vld [vmem:[%s1 + $0x308] sm:$0xff]
  %v120 = vld [vmem:[%s1 + $0x310] sm:$0xff]
  %v121 = vld [vmem:[%s1 + $0x318] sm:$0xff]
  %v122 = vld [vmem:[%s1 + $0x320] sm:$0xff]
  %v123 = vld [vmem:[%s1 + $0x328] sm:$0xff]
  %v124 = vld [vmem:[%s1 + $0x330] sm:$0xff]
  %v125 = vld [vmem:[%s1 + $0x338] sm:$0xff]
  %v126 = vld [vmem:[%s1 + $0x340] sm:$0xff]
  %v127 = vld [vmem:[%s1 + $0x348] sm:$0xff]
  %v128 = vld [vmem:[%s1 + $0x350] sm:$0xff]
  %v129 = vld [vmem:[%s1 + $0x358] sm:$0xff]
  %v130 = vld [vmem:[%s1 + $0x360] sm:$0xff]
  %v131 = vld [vmem:[%s1 + $0x368] sm:$0xff]
  %v132 = vld [vmem:[%s1 + $0x370] sm:$0xff]
  %v133 = vld [vmem:[%s1 + $0x378] sm:$0xff]
  %v134 = vld [vmem:[%s1 + $0x380] sm:$0xff]
  %v135 = vld [vmem:[%s1 + $0x388] sm:$0xff]
  %v136 = vld [vmem:[%s1 + $0x390] sm:$0xff]
  %v137 = vld [vmem:[%s1 + $0x398] sm:$0xff]
  %v138 = vld [vmem:[%s1 + $0x3a0] sm:$0xff]
  %v139 = vld [vmem:[%s1 + $0x3a8] sm:$0xff]
  %v140 = vld [vmem:[%s1 + $0x3b0] sm:$0xff]
  %v141 = vld [vmem:[%s1 + $0x3b8] sm:$0xff]
  %v142 = vld [vmem:[%s1 + $0x3c0] sm:$0xff]
  %v143 = vld [vmem:[%s1 + $0x3c8] sm:$0xff]
  %v144 = vld [vmem:[%s1 + $0x3d0] sm:$0xff]
  %v145 = vld [vmem:[%s1 + $0x3d8] sm:$0xff]
  %v146 = vld [vmem:[%s1 + $0x3e0] sm:$0xff]
  %v147 = vld [vmem:[%s1 + $0x3e8] sm:$0xff]
  %v148 = vld [vmem:[%s1 + $0x3f0] sm:$0xff]
  %v149 = vld [vmem:[%s1 + $0x3f8] sm:$0xff]
  %v150 = vld [vmem:[%s1 + $0x400] sm:$0xff]
  %v151 = vld [vmem:[%s1 + $0x408] sm:$0xff]
  %v152 = vld [vmem:[%s1 + $0x410] sm:$0xff]
  %v153 = vld [vmem:[%s1 + $0x418] sm:$0xff]
  %v154 = vld [vmem:[%s1 + $0x420] sm:$0xff]
  %v155 = vld [vmem:[%s1 + $0x428] sm:$0xff]
  %v156 = vld [vmem:[%s1 + $0x430] sm:$0xff]
  %v157 = vld [vmem:[%s1 + $0x438] sm:$0xff]
  %v158 = vld [vmem:[%s1 + $0x440] sm:$0xff]
  %v159 = vld [vmem:[%s1 + $0x448] sm:$0xff]
  %v160 = vld [vmem:[%s1 + $0x450] sm:$0xff]
  %v161 = vld [vmem:[%s1 + $0x458] sm:$0xff]
  %v162 = vld [vmem:[%s1 + $0x460] sm:$0xff]
  %v163 = vld [vmem:[%s1 + $0x468] sm:$0xff]
  %v164 = vld [vmem:[%s1 + $0x470] sm:$0xff]
  %v165 = vld [vmem:[%s1 + $0x478] sm:$0xff]
  %v166 = vld [vmem:[%s1 + $0x480] sm:$0xff]
  %v167 = vld [vmem:[%s1 + $0x488] sm:$0xff]
  %v168 = vld [vmem:[%s1 + $0x490] sm:$0xff]
  %v169 = vld [vmem:[%s1 + $0x498] sm:$0xff]
  %v170 = vld [vmem:[%s1 + $0x4a0] sm:$0xff]
  %v171 = vld [vmem:[%s1 + $0x4a8] sm:$0xff]
  %v172 = vld [vmem:[%s1 + $0x4b0] sm:$0xff]
  %v173 = vld [vmem:[%s1 + $0x4b8] sm:$0xff]
  %v174 = vld [vmem:[%s1 + $0x4c0] sm:$0xff]
  %v175 = vld [vmem:[%s1 + $0x4c8] sm:$0xff]
  %v176 = vld [vmem:[%s1 + $0x4d0] sm:$0xff]
  %v177 = vld [vmem:[%s1 + $0x4d8] sm:$0xff]
  %v178 = vld [vmem:[%s1 + $0x4e0] sm:$0xff]
  %v179 = vld [vmem:[%s1 + $0x4e8] sm:$0xff]
  %v180 = vld [vmem:[%s1 + $0x4f0] sm:$0xff]
  %v181 = vld [vmem:[%s1 + $0x4f8] sm:$0xff]
  %v182 = vld [vmem:[%s1 + $0x500] sm:$0xff]
  %v183 = vld [vmem:[%s1 + $0x508] sm:$0xff]
  %v184 = vld [vmem:[%s1 + $0x510] sm:$0xff]
  %v185 = vld [vmem:[%s1 + $0x518] sm:$0xff]
  %v186 = vld [vmem:[%s1 + $0x520] sm:$0xff]
  %v187 = vld [vmem:[%s1 + $0x528] sm:$0xff]
  %v188 = vld [vmem:[%s1 + $0x530] sm:$0xff]
  %v189 = vld [vmem:[%s1 + $0x538] sm:$0xff]
  %v190 = vld [vmem:[%s1 + $0x540] sm:$0xff]
  %v191 = vld [vmem:[%s1 + $0x548] sm:$0xff]
  %v192 = vld [vmem:[%s1 + $0x550] sm:$0xff]
  %v193 = vld [vmem:[%s1 + $0x558] sm:$0xff]
  %v194 = vld [vmem:[%s1 + $0x560] sm:$0xff]
  %v195 = vld [vmem:[%s1 + $0x568] sm:$0xff]
  %v196 = vld [vmem:[%s1 + $0x570] sm:$0xff]
  %v197 = vld [vmem:[%s1 + $0x578] sm:$0xff]
  %v198 = vld [vmem:[%s1 + $0x580] sm:$0xff]
  %v199 = vld [vmem:[%s1 + $0x588] sm:$0xff]
  %v200 = vld [vmem:[%s1 + $0x590] sm:$0xff]
  %v201 = vld [vmem:[%s1 + $0x598] sm:$0xff]
  %v202 = vld [vmem:[%s1 + $0x5a0] sm:$0xff]
  %v203 = vld [vmem:[%s1 + $0x5a8] sm:$0xff]
  %v204 = vld [vmem:[%s1 + $0x5b0] sm:$0xff]
  %v205 = vld [vmem:[%s1 + $0x5b8] sm:$0xff]
  %v206 = vld [vmem:[%s1 + $0x5c0] sm:$0xff]
  %v207 = vld [vmem:[%s1 + $0x5c8] sm:$0xff]
  %v208 = vld [vmem:[%s1 + $0x5d0] sm:$0xff]
  %v209 = vld [vmem:[%s1 + $0x5d8] sm:$0xff]
  %v210 = vld [vmem:[%s1 + $0x5e0] sm:$0xff]
  %v211 = vld [vmem:[%s1 + $0x5e8] sm:$0xff]
  %v212 = vld [vmem:[%s1 + $0x5f0] sm:$0xff]
  %v213 = vld [vmem:[%s1 + $0x5f8] sm:$0xff]
  %v214 = vld [vmem:[%s1 + $0x600] sm:$0xff]
  %v215 = vld [vmem:[%s1 + $0x608] sm:$0xff]
  %v216 = vld [vmem:[%s1 + $0x610] sm:$0xff]
  %v217 = vld [vmem:[%s1 + $0x618] sm:$0xff]
  %v218 = vld [vmem:[%s1 + $0x620] sm:$0xff]
  %v219 = vld [vmem:[%s1 + $0x628] sm:$0xff]
  %v220 = vld [vmem:[%s1 + $0x630] sm:$0xff]
  %v221 = vld [vmem:[%s1 + $0x638] sm:$0xff]
  %v222 = vld [vmem:[%s1 + $0x640] sm:$0xff]
  %v223 = vld [vmem:[%s1 + $0x648] sm:$0xff]
  %v224 = vld [vmem:[%s1 + $0x650] sm:$0xff]
  %v225 = vld [vmem:[%s1 + $0x658] sm:$0xff]
  %v226 = vld [vmem:[%s1 + $0x660] sm:$0xff]
  %v227 = vld [vmem:[%s1 + $0x668] sm:$0xff]
  %v228 = vld [vmem:[%s1 + $0x670] sm:$0xff]
  %v229 = vld [vmem:[%s1 + $0x678] sm:$0xff]
  %v230 = vld [vmem:[%s1 + $0x680] sm:$0xff]
  %v231 = vld [vmem:[%s1 + $0x688] sm:$0xff]
  %v232 = vld [vmem:[%s1 + $0x690] sm:$0xff]
  %v233 = vld [vmem:[%s1 + $0x698] sm:$0xff]
  %v234 = vld [vmem:[%s1 + $0x6a0] sm:$0xff]
  %v235 = vld [vmem:[%s1 + $0x6a8] sm:$0xff]
  %v236 = vld [vmem:[%s1 + $0x6b0] sm:$0xff]
  %v237 = vld [vmem:[%s1 + $0x6b8] sm:$0xff]
  %v238 = vld [vmem:[%s1 + $0x6c0] sm:$0xff]
  %v239 = vld [vmem:[%s1 + $0x6c8] sm:$0xff]
  %v240 = vld [vmem:[%s1 + $0x6d0] sm:$0xff]
  %v241 = vld [vmem:[%s1 + $0x6d8] sm:$0xff]
  %v242 = vld [vmem:[%s1 + $0x6e0] sm:$0xff]
  %v243 = vld [vmem:[%s1 + $0x6e8] sm:$0xff]
  %v244 = vld [vmem:[%s1 + $0x6f0] sm:$0xff]
  %v245 = vld [vmem:[%s1 + $0x6f8] sm:$0xff]
  %v246 = vld [vmem:[%s1 + $0x700] sm:$0xff]
  %v247 = vld [vmem:[%s1 + $0x708] sm:$0xff]
  %v248 = vld [vmem:[%s1 + $0x710] sm:$0xff]
  %v249 = vld [vmem:[%s1 + $0x718] sm:$0xff]
  %v250 = vld [vmem:[%s1 + $0x720] sm:$0xff]
  %v251 = vld [vmem:[%s1 + $0x728] sm:$0xff]
  %v252 = vld [vmem:[%s1 + $0x730] sm:$0xff]
  %v253 = vld [vmem:[%s1 + $0x738] sm:$0xff]
  %v254 = vld [vmem:[%s1 + $0x740] sm:$0xff]
  %v255 = vld [vmem:[%s1 + $0x748] sm:$0xff]
  %v256 = vld [vmem:[%s1 + $0x750] sm:$0xff]
  %v257 = vld [vmem:[%s1 + $0x758] sm:$0xff]
  %v258 = vld [vmem:[%s1 + $0x760] sm:$0xff]
  %v259 = vld [vmem:[%s1 + $0x768] sm:$0xff]
  %v260 = vld [vmem:[%s1 + $0x770] sm:$0xff]
  %v261 = vld [vmem:[%s1 + $0x778] sm:$0xff]
  %v262 = vld [vmem:[%s1 + $0x780] sm:$0xff]
  %v263 = vld [vmem:[%s1 + $0x788] sm:$0xff]
  %v264 = vld [vmem:[%s1 + $0x790] sm:$0xff]
  %v265 = vld [vmem:[%s1 + $0x798] sm:$0xff]
  %v266 = vld [vmem:[%s1 + $0x7a0] sm:$0xff]
  %v267 = vld [vmem:[%s1 + $0x7a8] sm:$0xff]
  %v268 = vld [vmem:[%s1 + $0x7b0] sm:$0xff]
  %v269 = vld [vmem:[%s1 + $0x7b8] sm:$0xff]
  %v270 = vld [vmem:[%s1 + $0x7c0] sm:$0xff]
  %v271 = vld [vmem:[%s1 + $0x7c8] sm:$0xff]
  %v272 = vld [vmem:[%s1 + $0x7d0] sm:$0xff]
  %v273 = vld [vmem:[%s1 + $0x7d8] sm:$0xff]
  %v274 = vld [vmem:[%s1 + $0x7e0] sm:$0xff]
  %v275 = vld [vmem:[%s1 + $0x7e8] sm:$0xff]
  %v276 = vld [vmem:[%s1 + $0x7f0] sm:$0xff]
  %v277 = vld [vmem:[%s1 + $0x7f8] sm:$0xff]
  %v278 = vld [vmem:[%s2] sm:$0x3]
  %v280 = vlaneseq
  %v281 = vshrl.u32 %v280, 7
  %v282 = vsub.s32 0, %v281
  %v283 = vrot.slane %v278, %v282
  %v284 = vlaneseq
  %v285 = vshrl.u32 %v284, 7
  %v286 = vsub.s32 1, %v285
  %v287 = vrot.slane %v278, %v286
  %v298 = vunpack.c.l.b16 %v14
  %v299 = vunpack.c.h.b16 %v14
  %v300 = vunpack.c.l.b16 %v15
  %v301 = vunpack.c.h.b16 %v15
  %v302 = vunpack.c.l.b16 %v16
  %v303 = vunpack.c.h.b16 %v16
  %v304 = vunpack.c.l.b16 %v17
  %v305 = vunpack.c.h.b16 %v17
  %v306 = vunpack.c.l.b16 %v18
  %v307 = vunpack.c.h.b16 %v18
  %v308 = vunpack.c.l.b16 %v19
  %v309 = vunpack.c.h.b16 %v19
  %v310 = vunpack.c.l.b16 %v20
  %v311 = vunpack.c.h.b16 %v20
  %v312 = vunpack.c.l.b16 %v21
  %v313 = vunpack.c.h.b16 %v21
  %v314 = vpack.c.b16 %v298, %v298
  %v315 = vpack.c.b16 %v299, %v299
  %v316 = vpack.c.b16 %v300, %v300
  %v317 = vpack.c.b16 %v301, %v301
  %v318 = vpack.c.b16 %v302, %v302
  %v319 = vpack.c.b16 %v303, %v303
  %v320 = vpack.c.b16 %v304, %v304
  %v321 = vpack.c.b16 %v305, %v305
  %v322 = vpack.c.b16 %v306, %v306
  %v323 = vpack.c.b16 %v307, %v307
  %v324 = vpack.c.b16 %v308, %v308
  %v325 = vpack.c.b16 %v309, %v309
  %v326 = vpack.c.b16 %v310, %v310
  %v327 = vpack.c.b16 %v311, %v311
  %v328 = vpack.c.b16 %v312, %v312
  %v329 = vpack.c.b16 %v313, %v313
  %v602 = vunpack.c.l.b16 %v22
  %v603 = vunpack.c.h.b16 %v22
  %v604 = vunpack.c.l.b16 %v23
  %v605 = vunpack.c.h.b16 %v23
  %v606 = vunpack.c.l.b16 %v24
  %v607 = vunpack.c.h.b16 %v24
  %v608 = vunpack.c.l.b16 %v25
  %v609 = vunpack.c.h.b16 %v25
  %v610 = vunpack.c.l.b16 %v26
  %v611 = vunpack.c.h.b16 %v26
  %v612 = vunpack.c.l.b16 %v27
  %v613 = vunpack.c.h.b16 %v27
  %v614 = vunpack.c.l.b16 %v28
  %v615 = vunpack.c.h.b16 %v28
  %v616 = vunpack.c.l.b16 %v29
  %v617 = vunpack.c.h.b16 %v29
  %v618 = vunpack.c.l.b16 %v30
  %v619 = vunpack.c.h.b16 %v30
  %v620 = vunpack.c.l.b16 %v31
  %v621 = vunpack.c.h.b16 %v31
  %v622 = vunpack.c.l.b16 %v32
  %v623 = vunpack.c.h.b16 %v32
  %v624 = vunpack.c.l.b16 %v33
  %v625 = vunpack.c.h.b16 %v33
  %v626 = vunpack.c.l.b16 %v34
  %v627 = vunpack.c.h.b16 %v34
  %v628 = vunpack.c.l.b16 %v35
  %v629 = vunpack.c.h.b16 %v35
  %v630 = vunpack.c.l.b16 %v36
  %v631 = vunpack.c.h.b16 %v36
  %v632 = vunpack.c.l.b16 %v37
  %v633 = vunpack.c.h.b16 %v37
  %v634 = vunpack.c.l.b16 %v38
  %v635 = vunpack.c.h.b16 %v38
  %v636 = vunpack.c.l.b16 %v39
  %v637 = vunpack.c.h.b16 %v39
  %v638 = vunpack.c.l.b16 %v40
  %v639 = vunpack.c.h.b16 %v40
  %v640 = vunpack.c.l.b16 %v41
  %v641 = vunpack.c.h.b16 %v41
  %v642 = vunpack.c.l.b16 %v42
  %v643 = vunpack.c.h.b16 %v42
  %v644 = vunpack.c.l.b16 %v43
  %v645 = vunpack.c.h.b16 %v43
  %v646 = vunpack.c.l.b16 %v44
  %v647 = vunpack.c.h.b16 %v44
  %v648 = vunpack.c.l.b16 %v45
  %v649 = vunpack.c.h.b16 %v45
  %v650 = vunpack.c.l.b16 %v46
  %v651 = vunpack.c.h.b16 %v46
  %v652 = vunpack.c.l.b16 %v47
  %v653 = vunpack.c.h.b16 %v47
  %v654 = vunpack.c.l.b16 %v48
  %v655 = vunpack.c.h.b16 %v48
  %v656 = vunpack.c.l.b16 %v49
  %v657 = vunpack.c.h.b16 %v49
  %v658 = vunpack.c.l.b16 %v50
  %v659 = vunpack.c.h.b16 %v50
  %v660 = vunpack.c.l.b16 %v51
  %v661 = vunpack.c.h.b16 %v51
  %v662 = vunpack.c.l.b16 %v52
  %v663 = vunpack.c.h.b16 %v52
  %v664 = vunpack.c.l.b16 %v53
  %v665 = vunpack.c.h.b16 %v53
  %v666 = vunpack.c.l.b16 %v54
  %v667 = vunpack.c.h.b16 %v54
  %v668 = vunpack.c.l.b16 %v55
  %v669 = vunpack.c.h.b16 %v55
  %v670 = vunpack.c.l.b16 %v56
  %v671 = vunpack.c.h.b16 %v56
  %v672 = vunpack.c.l.b16 %v57
  %v673 = vunpack.c.h.b16 %v57
  %v674 = vunpack.c.l.b16 %v58
  %v675 = vunpack.c.h.b16 %v58
  %v676 = vunpack.c.l.b16 %v59
  %v677 = vunpack.c.h.b16 %v59
  %v678 = vunpack.c.l.b16 %v60
  %v679 = vunpack.c.h.b16 %v60
  %v680 = vunpack.c.l.b16 %v61
  %v681 = vunpack.c.h.b16 %v61
  %v682 = vunpack.c.l.b16 %v62
  %v683 = vunpack.c.h.b16 %v62
  %v684 = vunpack.c.l.b16 %v63
  %v685 = vunpack.c.h.b16 %v63
  %v686 = vunpack.c.l.b16 %v64
  %v687 = vunpack.c.h.b16 %v64
  %v688 = vunpack.c.l.b16 %v65
  %v689 = vunpack.c.h.b16 %v65
  %v690 = vunpack.c.l.b16 %v66
  %v691 = vunpack.c.h.b16 %v66
  %v692 = vunpack.c.l.b16 %v67
  %v693 = vunpack.c.h.b16 %v67
  %v694 = vunpack.c.l.b16 %v68
  %v695 = vunpack.c.h.b16 %v68
  %v696 = vunpack.c.l.b16 %v69
  %v697 = vunpack.c.h.b16 %v69
  %v698 = vunpack.c.l.b16 %v70
  %v699 = vunpack.c.h.b16 %v70
  %v700 = vunpack.c.l.b16 %v71
  %v701 = vunpack.c.h.b16 %v71
  %v702 = vunpack.c.l.b16 %v72
  %v703 = vunpack.c.h.b16 %v72
  %v704 = vunpack.c.l.b16 %v73
  %v705 = vunpack.c.h.b16 %v73
  %v706 = vunpack.c.l.b16 %v74
  %v707 = vunpack.c.h.b16 %v74
  %v708 = vunpack.c.l.b16 %v75
  %v709 = vunpack.c.h.b16 %v75
  %v710 = vunpack.c.l.b16 %v76
  %v711 = vunpack.c.h.b16 %v76
  %v712 = vunpack.c.l.b16 %v77
  %v713 = vunpack.c.h.b16 %v77
  %v714 = vunpack.c.l.b16 %v78
  %v715 = vunpack.c.h.b16 %v78
  %v716 = vunpack.c.l.b16 %v79
  %v717 = vunpack.c.h.b16 %v79
  %v718 = vunpack.c.l.b16 %v80
  %v719 = vunpack.c.h.b16 %v80
  %v720 = vunpack.c.l.b16 %v81
  %v721 = vunpack.c.h.b16 %v81
  %v722 = vunpack.c.l.b16 %v82
  %v723 = vunpack.c.h.b16 %v82
  %v724 = vunpack.c.l.b16 %v83
  %v725 = vunpack.c.h.b16 %v83
  %v726 = vunpack.c.l.b16 %v84
  %v727 = vunpack.c.h.b16 %v84
  %v728 = vunpack.c.l.b16 %v85
  %v729 = vunpack.c.h.b16 %v85
  %v730 = vunpack.c.l.b16 %v86
  %v731 = vunpack.c.h.b16 %v86
  %v732 = vunpack.c.l.b16 %v87
  %v733 = vunpack.c.h.b16 %v87
  %v734 = vunpack.c.l.b16 %v88
  %v735 = vunpack.c.h.b16 %v88
  %v736 = vunpack.c.l.b16 %v89
  %v737 = vunpack.c.h.b16 %v89
  %v738 = vunpack.c.l.b16 %v90
  %v739 = vunpack.c.h.b16 %v90
  %v740 = vunpack.c.l.b16 %v91
  %v741 = vunpack.c.h.b16 %v91
  %v742 = vunpack.c.l.b16 %v92
  %v743 = vunpack.c.h.b16 %v92
  %v744 = vunpack.c.l.b16 %v93
  %v745 = vunpack.c.h.b16 %v93
  %v746 = vunpack.c.l.b16 %v94
  %v747 = vunpack.c.h.b16 %v94
  %v748 = vunpack.c.l.b16 %v95
  %v749 = vunpack.c.h.b16 %v95
  %v750 = vunpack.c.l.b16 %v96
  %v751 = vunpack.c.h.b16 %v96
  %v752 = vunpack.c.l.b16 %v97
  %v753 = vunpack.c.h.b16 %v97
  %v754 = vunpack.c.l.b16 %v98
  %v755 = vunpack.c.h.b16 %v98
  %v756 = vunpack.c.l.b16 %v99
  %v757 = vunpack.c.h.b16 %v99
  %v758 = vunpack.c.l.b16 %v100
  %v759 = vunpack.c.h.b16 %v100
  %v760 = vunpack.c.l.b16 %v101
  %v761 = vunpack.c.h.b16 %v101
  %v762 = vunpack.c.l.b16 %v102
  %v763 = vunpack.c.h.b16 %v102
  %v764 = vunpack.c.l.b16 %v103
  %v765 = vunpack.c.h.b16 %v103
  %v766 = vunpack.c.l.b16 %v104
  %v767 = vunpack.c.h.b16 %v104
  %v768 = vunpack.c.l.b16 %v105
  %v769 = vunpack.c.h.b16 %v105
  %v770 = vunpack.c.l.b16 %v106
  %v771 = vunpack.c.h.b16 %v106
  %v772 = vunpack.c.l.b16 %v107
  %v773 = vunpack.c.h.b16 %v107
  %v774 = vunpack.c.l.b16 %v108
  %v775 = vunpack.c.h.b16 %v108
  %v776 = vunpack.c.l.b16 %v109
  %v777 = vunpack.c.h.b16 %v109
  %v778 = vunpack.c.l.b16 %v110
  %v779 = vunpack.c.h.b16 %v110
  %v780 = vunpack.c.l.b16 %v111
  %v781 = vunpack.c.h.b16 %v111
  %v782 = vunpack.c.l.b16 %v112
  %v783 = vunpack.c.h.b16 %v112
  %v784 = vunpack.c.l.b16 %v113
  %v785 = vunpack.c.h.b16 %v113
  %v786 = vunpack.c.l.b16 %v114
  %v787 = vunpack.c.h.b16 %v114
  %v788 = vunpack.c.l.b16 %v115
  %v789 = vunpack.c.h.b16 %v115
  %v790 = vunpack.c.l.b16 %v116
  %v791 = vunpack.c.h.b16 %v116
  %v792 = vunpack.c.l.b16 %v117
  %v793 = vunpack.c.h.b16 %v117
  %v794 = vunpack.c.l.b16 %v118
  %v795 = vunpack.c.h.b16 %v118
  %v796 = vunpack.c.l.b16 %v119
  %v797 = vunpack.c.h.b16 %v119
  %v798 = vunpack.c.l.b16 %v120
  %v799 = vunpack.c.h.b16 %v120
  %v800 = vunpack.c.l.b16 %v121
  %v801 = vunpack.c.h.b16 %v121
  %v802 = vunpack.c.l.b16 %v122
  %v803 = vunpack.c.h.b16 %v122
  %v804 = vunpack.c.l.b16 %v123
  %v805 = vunpack.c.h.b16 %v123
  %v806 = vunpack.c.l.b16 %v124
  %v807 = vunpack.c.h.b16 %v124
  %v808 = vunpack.c.l.b16 %v125
  %v809 = vunpack.c.h.b16 %v125
  %v810 = vunpack.c.l.b16 %v126
  %v811 = vunpack.c.h.b16 %v126
  %v812 = vunpack.c.l.b16 %v127
  %v813 = vunpack.c.h.b16 %v127
  %v814 = vunpack.c.l.b16 %v128
  %v815 = vunpack.c.h.b16 %v128
  %v816 = vunpack.c.l.b16 %v129
  %v817 = vunpack.c.h.b16 %v129
  %v818 = vunpack.c.l.b16 %v130
  %v819 = vunpack.c.h.b16 %v130
  %v820 = vunpack.c.l.b16 %v131
  %v821 = vunpack.c.h.b16 %v131
  %v822 = vunpack.c.l.b16 %v132
  %v823 = vunpack.c.h.b16 %v132
  %v824 = vunpack.c.l.b16 %v133
  %v825 = vunpack.c.h.b16 %v133
  %v826 = vunpack.c.l.b16 %v134
  %v827 = vunpack.c.h.b16 %v134
  %v828 = vunpack.c.l.b16 %v135
  %v829 = vunpack.c.h.b16 %v135
  %v830 = vunpack.c.l.b16 %v136
  %v831 = vunpack.c.h.b16 %v136
  %v832 = vunpack.c.l.b16 %v137
  %v833 = vunpack.c.h.b16 %v137
  %v834 = vunpack.c.l.b16 %v138
  %v835 = vunpack.c.h.b16 %v138
  %v836 = vunpack.c.l.b16 %v139
  %v837 = vunpack.c.h.b16 %v139
  %v838 = vunpack.c.l.b16 %v140
  %v839 = vunpack.c.h.b16 %v140
  %v840 = vunpack.c.l.b16 %v141
  %v841 = vunpack.c.h.b16 %v141
  %v842 = vunpack.c.l.b16 %v142
  %v843 = vunpack.c.h.b16 %v142
  %v844 = vunpack.c.l.b16 %v143
  %v845 = vunpack.c.h.b16 %v143
  %v846 = vunpack.c.l.b16 %v144
  %v847 = vunpack.c.h.b16 %v144
  %v848 = vunpack.c.l.b16 %v145
  %v849 = vunpack.c.h.b16 %v145
  %v850 = vunpack.c.l.b16 %v146
  %v851 = vunpack.c.h.b16 %v146
  %v852 = vunpack.c.l.b16 %v147
  %v853 = vunpack.c.h.b16 %v147
  %v854 = vunpack.c.l.b16 %v148
  %v855 = vunpack.c.h.b16 %v148
  %v856 = vunpack.c.l.b16 %v149
  %v857 = vunpack.c.h.b16 %v149
  %v858 = vunpack.c.l.b16 %v150
  %v859 = vunpack.c.h.b16 %v150
  %v860 = vunpack.c.l.b16 %v151
  %v861 = vunpack.c.h.b16 %v151
  %v862 = vunpack.c.l.b16 %v152
  %v863 = vunpack.c.h.b16 %v152
  %v864 = vunpack.c.l.b16 %v153
  %v865 = vunpack.c.h.b16 %v153
  %v866 = vunpack.c.l.b16 %v154
  %v867 = vunpack.c.h.b16 %v154
  %v868 = vunpack.c.l.b16 %v155
  %v869 = vunpack.c.h.b16 %v155
  %v870 = vunpack.c.l.b16 %v156
  %v871 = vunpack.c.h.b16 %v156
  %v872 = vunpack.c.l.b16 %v157
  %v873 = vunpack.c.h.b16 %v157
  %v874 = vunpack.c.l.b16 %v158
  %v875 = vunpack.c.h.b16 %v158
  %v876 = vunpack.c.l.b16 %v159
  %v877 = vunpack.c.h.b16 %v159
  %v878 = vunpack.c.l.b16 %v160
  %v879 = vunpack.c.h.b16 %v160
  %v880 = vunpack.c.l.b16 %v161
  %v881 = vunpack.c.h.b16 %v161
  %v882 = vunpack.c.l.b16 %v162
  %v883 = vunpack.c.h.b16 %v162
  %v884 = vunpack.c.l.b16 %v163
  %v885 = vunpack.c.h.b16 %v163
  %v886 = vunpack.c.l.b16 %v164
  %v887 = vunpack.c.h.b16 %v164
  %v888 = vunpack.c.l.b16 %v165
  %v889 = vunpack.c.h.b16 %v165
  %v890 = vunpack.c.l.b16 %v166
  %v891 = vunpack.c.h.b16 %v166
  %v892 = vunpack.c.l.b16 %v167
  %v893 = vunpack.c.h.b16 %v167
  %v894 = vunpack.c.l.b16 %v168
  %v895 = vunpack.c.h.b16 %v168
  %v896 = vunpack.c.l.b16 %v169
  %v897 = vunpack.c.h.b16 %v169
  %v898 = vunpack.c.l.b16 %v170
  %v899 = vunpack.c.h.b16 %v170
  %v900 = vunpack.c.l.b16 %v171
  %v901 = vunpack.c.h.b16 %v171
  %v902 = vunpack.c.l.b16 %v172
  %v903 = vunpack.c.h.b16 %v172
  %v904 = vunpack.c.l.b16 %v173
  %v905 = vunpack.c.h.b16 %v173
  %v906 = vunpack.c.l.b16 %v174
  %v907 = vunpack.c.h.b16 %v174
  %v908 = vunpack.c.l.b16 %v175
  %v909 = vunpack.c.h.b16 %v175
  %v910 = vunpack.c.l.b16 %v176
  %v911 = vunpack.c.h.b16 %v176
  %v912 = vunpack.c.l.b16 %v177
  %v913 = vunpack.c.h.b16 %v177
  %v914 = vunpack.c.l.b16 %v178
  %v915 = vunpack.c.h.b16 %v178
  %v916 = vunpack.c.l.b16 %v179
  %v917 = vunpack.c.h.b16 %v179
  %v918 = vunpack.c.l.b16 %v180
  %v919 = vunpack.c.h.b16 %v180
  %v920 = vunpack.c.l.b16 %v181
  %v921 = vunpack.c.h.b16 %v181
  %v922 = vunpack.c.l.b16 %v182
  %v923 = vunpack.c.h.b16 %v182
  %v924 = vunpack.c.l.b16 %v183
  %v925 = vunpack.c.h.b16 %v183
  %v926 = vunpack.c.l.b16 %v184
  %v927 = vunpack.c.h.b16 %v184
  %v928 = vunpack.c.l.b16 %v185
  %v929 = vunpack.c.h.b16 %v185
  %v930 = vunpack.c.l.b16 %v186
  %v931 = vunpack.c.h.b16 %v186
  %v932 = vunpack.c.l.b16 %v187
  %v933 = vunpack.c.h.b16 %v187
  %v934 = vunpack.c.l.b16 %v188
  %v935 = vunpack.c.h.b16 %v188
  %v936 = vunpack.c.l.b16 %v189
  %v937 = vunpack.c.h.b16 %v189
  %v938 = vunpack.c.l.b16 %v190
  %v939 = vunpack.c.h.b16 %v190
  %v940 = vunpack.c.l.b16 %v191
  %v941 = vunpack.c.h.b16 %v191
  %v942 = vunpack.c.l.b16 %v192
  %v943 = vunpack.c.h.b16 %v192
  %v944 = vunpack.c.l.b16 %v193
  %v945 = vunpack.c.h.b16 %v193
  %v946 = vunpack.c.l.b16 %v194
  %v947 = vunpack.c.h.b16 %v194
  %v948 = vunpack.c.l.b16 %v195
  %v949 = vunpack.c.h.b16 %v195
  %v950 = vunpack.c.l.b16 %v196
  %v951 = vunpack.c.h.b16 %v196
  %v952 = vunpack.c.l.b16 %v197
  %v953 = vunpack.c.h.b16 %v197
  %v954 = vunpack.c.l.b16 %v198
  %v955 = vunpack.c.h.b16 %v198
  %v956 = vunpack.c.l.b16 %v199
  %v957 = vunpack.c.h.b16 %v199
  %v958 = vunpack.c.l.b16 %v200
  %v959 = vunpack.c.h.b16 %v200
  %v960 = vunpack.c.l.b16 %v201
  %v961 = vunpack.c.h.b16 %v201
  %v962 = vunpack.c.l.b16 %v202
  %v963 = vunpack.c.h.b16 %v202
  %v964 = vunpack.c.l.b16 %v203
  %v965 = vunpack.c.h.b16 %v203
  %v966 = vunpack.c.l.b16 %v204
  %v967 = vunpack.c.h.b16 %v204
  %v968 = vunpack.c.l.b16 %v205
  %v969 = vunpack.c.h.b16 %v205
  %v970 = vunpack.c.l.b16 %v206
  %v971 = vunpack.c.h.b16 %v206
  %v972 = vunpack.c.l.b16 %v207
  %v973 = vunpack.c.h.b16 %v207
  %v974 = vunpack.c.l.b16 %v208
  %v975 = vunpack.c.h.b16 %v208
  %v976 = vunpack.c.l.b16 %v209
  %v977 = vunpack.c.h.b16 %v209
  %v978 = vunpack.c.l.b16 %v210
  %v979 = vunpack.c.h.b16 %v210
  %v980 = vunpack.c.l.b16 %v211
  %v981 = vunpack.c.h.b16 %v211
  %v982 = vunpack.c.l.b16 %v212
  %v983 = vunpack.c.h.b16 %v212
  %v984 = vunpack.c.l.b16 %v213
  %v985 = vunpack.c.h.b16 %v213
  %v986 = vunpack.c.l.b16 %v214
  %v987 = vunpack.c.h.b16 %v214
  %v988 = vunpack.c.l.b16 %v215
  %v989 = vunpack.c.h.b16 %v215
  %v990 = vunpack.c.l.b16 %v216
  %v991 = vunpack.c.h.b16 %v216
  %v992 = vunpack.c.l.b16 %v217
  %v993 = vunpack.c.h.b16 %v217
  %v994 = vunpack.c.l.b16 %v218
  %v995 = vunpack.c.h.b16 %v218
  %v996 = vunpack.c.l.b16 %v219
  %v997 = vunpack.c.h.b16 %v219
  %v998 = vunpack.c.l.b16 %v220
  %v999 = vunpack.c.h.b16 %v220
  %v1000 = vunpack.c.l.b16 %v221
  %v1001 = vunpack.c.h.b16 %v221
  %v1002 = vunpack.c.l.b16 %v222
  %v1003 = vunpack.c.h.b16 %v222
  %v1004 = vunpack.c.l.b16 %v223
  %v1005 = vunpack.c.h.b16 %v223
  %v1006 = vunpack.c.l.b16 %v224
  %v1007 = vunpack.c.h.b16 %v224
  %v1008 = vunpack.c.l.b16 %v225
  %v1009 = vunpack.c.h.b16 %v225
  %v1010 = vunpack.c.l.b16 %v226
  %v1011 = vunpack.c.h.b16 %v226
  %v1012 = vunpack.c.l.b16 %v227
  %v1013 = vunpack.c.h.b16 %v227
  %v1014 = vunpack.c.l.b16 %v228
  %v1015 = vunpack.c.h.b16 %v228
  %v1016 = vunpack.c.l.b16 %v229
  %v1017 = vunpack.c.h.b16 %v229
  %v1018 = vunpack.c.l.b16 %v230
  %v1019 = vunpack.c.h.b16 %v230
  %v1020 = vunpack.c.l.b16 %v231
  %v1021 = vunpack.c.h.b16 %v231
  %v1022 = vunpack.c.l.b16 %v232
  %v1023 = vunpack.c.h.b16 %v232
  %v1024 = vunpack.c.l.b16 %v233
  %v1025 = vunpack.c.h.b16 %v233
  %v1026 = vunpack.c.l.b16 %v234
  %v1027 = vunpack.c.h.b16 %v234
  %v1028 = vunpack.c.l.b16 %v235
  %v1029 = vunpack.c.h.b16 %v235
  %v1030 = vunpack.c.l.b16 %v236
  %v1031 = vunpack.c.h.b16 %v236
  %v1032 = vunpack.c.l.b16 %v237
  %v1033 = vunpack.c.h.b16 %v237
  %v1034 = vunpack.c.l.b16 %v238
  %v1035 = vunpack.c.h.b16 %v238
  %v1036 = vunpack.c.l.b16 %v239
  %v1037 = vunpack.c.h.b16 %v239
  %v1038 = vunpack.c.l.b16 %v240
  %v1039 = vunpack.c.h.b16 %v240
  %v1040 = vunpack.c.l.b16 %v241
  %v1041 = vunpack.c.h.b16 %v241
  %v1042 = vunpack.c.l.b16 %v242
  %v1043 = vunpack.c.h.b16 %v242
  %v1044 = vunpack.c.l.b16 %v243
  %v1045 = vunpack.c.h.b16 %v243
  %v1046 = vunpack.c.l.b16 %v244
  %v1047 = vunpack.c.h.b16 %v244
  %v1048 = vunpack.c.l.b16 %v245
  %v1049 = vunpack.c.h.b16 %v245
  %v1050 = vunpack.c.l.b16 %v246
  %v1051 = vunpack.c.h.b16 %v246
  %v1052 = vunpack.c.l.b16 %v247
  %v1053 = vunpack.c.h.b16 %v247
  %v1054 = vunpack.c.l.b16 %v248
  %v1055 = vunpack.c.h.b16 %v248
  %v1056 = vunpack.c.l.b16 %v249
  %v1057 = vunpack.c.h.b16 %v249
  %v1058 = vunpack.c.l.b16 %v250
  %v1059 = vunpack.c.h.b16 %v250
  %v1060 = vunpack.c.l.b16 %v251
  %v1061 = vunpack.c.h.b16 %v251
  %v1062 = vunpack.c.l.b16 %v252
  %v1063 = vunpack.c.h.b16 %v252
  %v1064 = vunpack.c.l.b16 %v253
  %v1065 = vunpack.c.h.b16 %v253
  %v1066 = vunpack.c.l.b16 %v254
  %v1067 = vunpack.c.h.b16 %v254
  %v1068 = vunpack.c.l.b16 %v255
  %v1069 = vunpack.c.h.b16 %v255
  %v1070 = vunpack.c.l.b16 %v256
  %v1071 = vunpack.c.h.b16 %v256
  %v1072 = vunpack.c.l.b16 %v257
  %v1073 = vunpack.c.h.b16 %v257
  %v1074 = vunpack.c.l.b16 %v258
  %v1075 = vunpack.c.h.b16 %v258
  %v1076 = vunpack.c.l.b16 %v259
  %v1077 = vunpack.c.h.b16 %v259
  %v1078 = vunpack.c.l.b16 %v260
  %v1079 = vunpack.c.h.b16 %v260
  %v1080 = vunpack.c.l.b16 %v261
  %v1081 = vunpack.c.h.b16 %v261
  %v1082 = vunpack.c.l.b16 %v262
  %v1083 = vunpack.c.h.b16 %v262
  %v1084 = vunpack.c.l.b16 %v263
  %v1085 = vunpack.c.h.b16 %v263
  %v1086 = vunpack.c.l.b16 %v264
  %v1087 = vunpack.c.h.b16 %v264
  %v1088 = vunpack.c.l.b16 %v265
  %v1089 = vunpack.c.h.b16 %v265
  %v1090 = vunpack.c.l.b16 %v266
  %v1091 = vunpack.c.h.b16 %v266
  %v1092 = vunpack.c.l.b16 %v267
  %v1093 = vunpack.c.h.b16 %v267
  %v1094 = vunpack.c.l.b16 %v268
  %v1095 = vunpack.c.h.b16 %v268
  %v1096 = vunpack.c.l.b16 %v269
  %v1097 = vunpack.c.h.b16 %v269
  %v1098 = vunpack.c.l.b16 %v270
  %v1099 = vunpack.c.h.b16 %v270
  %v1100 = vunpack.c.l.b16 %v271
  %v1101 = vunpack.c.h.b16 %v271
  %v1102 = vunpack.c.l.b16 %v272
  %v1103 = vunpack.c.h.b16 %v272
  %v1104 = vunpack.c.l.b16 %v273
  %v1105 = vunpack.c.h.b16 %v273
  %v1106 = vunpack.c.l.b16 %v274
  %v1107 = vunpack.c.h.b16 %v274
  %v1108 = vunpack.c.l.b16 %v275
  %v1109 = vunpack.c.h.b16 %v275
  %v1110 = vunpack.c.l.b16 %v276
  %v1111 = vunpack.c.h.b16 %v276
  %v1112 = vunpack.c.l.b16 %v277
  %v1113 = vunpack.c.h.b16 %v277
  %v1114 = vpack.c.b16 %v604, %v602
  %v1115 = vpack.c.b16 %v605, %v603
  %v1116 = vpack.c.b16 %v608, %v606
  %v1117 = vpack.c.b16 %v609, %v607
  %v1118 = vpack.c.b16 %v612, %v610
  %v1119 = vpack.c.b16 %v613, %v611
  %v1120 = vpack.c.b16 %v616, %v614
  %v1121 = vpack.c.b16 %v617, %v615
  %v1122 = vpack.c.b16 %v620, %v618
  %v1123 = vpack.c.b16 %v621, %v619
  %v1124 = vpack.c.b16 %v624, %v622
  %v1125 = vpack.c.b16 %v625, %v623
  %v1126 = vpack.c.b16 %v628, %v626
  %v1127 = vpack.c.b16 %v629, %v627
  %v1128 = vpack.c.b16 %v632, %v630
  %v1129 = vpack.c.b16 %v633, %v631
  %v1130 = vpack.c.b16 %v636, %v634
  %v1131 = vpack.c.b16 %v637, %v635
  %v1132 = vpack.c.b16 %v640, %v638
  %v1133 = vpack.c.b16 %v641, %v639
  %v1134 = vpack.c.b16 %v644, %v642
  %v1135 = vpack.c.b16 %v645, %v643
  %v1136 = vpack.c.b16 %v648, %v646
  %v1137 = vpack.c.b16 %v649, %v647
  %v1138 = vpack.c.b16 %v652, %v650
  %v1139 = vpack.c.b16 %v653, %v651
  %v1140 = vpack.c.b16 %v656, %v654
  %v1141 = vpack.c.b16 %v657, %v655
  %v1142 = vpack.c.b16 %v660, %v658
  %v1143 = vpack.c.b16 %v661, %v659
  %v1144 = vpack.c.b16 %v664, %v662
  %v1145 = vpack.c.b16 %v665, %v663
  %v1146 = vpack.c.b16 %v668, %v666
  %v1147 = vpack.c.b16 %v669, %v667
  %v1148 = vpack.c.b16 %v672, %v670
  %v1149 = vpack.c.b16 %v673, %v671
  %v1150 = vpack.c.b16 %v676, %v674
  %v1151 = vpack.c.b16 %v677, %v675
  %v1152 = vpack.c.b16 %v680, %v678
  %v1153 = vpack.c.b16 %v681, %v679
  %v1154 = vpack.c.b16 %v684, %v682
  %v1155 = vpack.c.b16 %v685, %v683
  %v1156 = vpack.c.b16 %v688, %v686
  %v1157 = vpack.c.b16 %v689, %v687
  %v1158 = vpack.c.b16 %v692, %v690
  %v1159 = vpack.c.b16 %v693, %v691
  %v1160 = vpack.c.b16 %v696, %v694
  %v1161 = vpack.c.b16 %v697, %v695
  %v1162 = vpack.c.b16 %v700, %v698
  %v1163 = vpack.c.b16 %v701, %v699
  %v1164 = vpack.c.b16 %v704, %v702
  %v1165 = vpack.c.b16 %v705, %v703
  %v1166 = vpack.c.b16 %v708, %v706
  %v1167 = vpack.c.b16 %v709, %v707
  %v1168 = vpack.c.b16 %v712, %v710
  %v1169 = vpack.c.b16 %v713, %v711
  %v1170 = vpack.c.b16 %v716, %v714
  %v1171 = vpack.c.b16 %v717, %v715
  %v1172 = vpack.c.b16 %v720, %v718
  %v1173 = vpack.c.b16 %v721, %v719
  %v1174 = vpack.c.b16 %v724, %v722
  %v1175 = vpack.c.b16 %v725, %v723
  %v1176 = vpack.c.b16 %v728, %v726
  %v1177 = vpack.c.b16 %v729, %v727
  %v1178 = vpack.c.b16 %v732, %v730
  %v1179 = vpack.c.b16 %v733, %v731
  %v1180 = vpack.c.b16 %v736, %v734
  %v1181 = vpack.c.b16 %v737, %v735
  %v1182 = vpack.c.b16 %v740, %v738
  %v1183 = vpack.c.b16 %v741, %v739
  %v1184 = vpack.c.b16 %v744, %v742
  %v1185 = vpack.c.b16 %v745, %v743
  %v1186 = vpack.c.b16 %v748, %v746
  %v1187 = vpack.c.b16 %v749, %v747
  %v1188 = vpack.c.b16 %v752, %v750
  %v1189 = vpack.c.b16 %v753, %v751
  %v1190 = vpack.c.b16 %v756, %v754
  %v1191 = vpack.c.b16 %v757, %v755
  %v1192 = vpack.c.b16 %v760, %v758
  %v1193 = vpack.c.b16 %v761, %v759
  %v1194 = vpack.c.b16 %v764, %v762
  %v1195 = vpack.c.b16 %v765, %v763
  %v1196 = vpack.c.b16 %v768, %v766
  %v1197 = vpack.c.b16 %v769, %v767
  %v1198 = vpack.c.b16 %v772, %v770
  %v1199 = vpack.c.b16 %v773, %v771
  %v1200 = vpack.c.b16 %v776, %v774
  %v1201 = vpack.c.b16 %v777, %v775
  %v1202 = vpack.c.b16 %v780, %v778
  %v1203 = vpack.c.b16 %v781, %v779
  %v1204 = vpack.c.b16 %v784, %v782
  %v1205 = vpack.c.b16 %v785, %v783
  %v1206 = vpack.c.b16 %v788, %v786
  %v1207 = vpack.c.b16 %v789, %v787
  %v1208 = vpack.c.b16 %v792, %v790
  %v1209 = vpack.c.b16 %v793, %v791
  %v1210 = vpack.c.b16 %v796, %v794
  %v1211 = vpack.c.b16 %v797, %v795
  %v1212 = vpack.c.b16 %v800, %v798
  %v1213 = vpack.c.b16 %v801, %v799
  %v1214 = vpack.c.b16 %v804, %v802
  %v1215 = vpack.c.b16 %v805, %v803
  %v1216 = vpack.c.b16 %v808, %v806
  %v1217 = vpack.c.b16 %v809, %v807
  %v1218 = vpack.c.b16 %v812, %v810
  %v1219 = vpack.c.b16 %v813, %v811
  %v1220 = vpack.c.b16 %v816, %v814
  %v1221 = vpack.c.b16 %v817, %v815
  %v1222 = vpack.c.b16 %v820, %v818
  %v1223 = vpack.c.b16 %v821, %v819
  %v1224 = vpack.c.b16 %v824, %v822
  %v1225 = vpack.c.b16 %v825, %v823
  %v1226 = vpack.c.b16 %v828, %v826
  %v1227 = vpack.c.b16 %v829, %v827
  %v1228 = vpack.c.b16 %v832, %v830
  %v1229 = vpack.c.b16 %v833, %v831
  %v1230 = vpack.c.b16 %v836, %v834
  %v1231 = vpack.c.b16 %v837, %v835
  %v1232 = vpack.c.b16 %v840, %v838
  %v1233 = vpack.c.b16 %v841, %v839
  %v1234 = vpack.c.b16 %v844, %v842
  %v1235 = vpack.c.b16 %v845, %v843
  %v1236 = vpack.c.b16 %v848, %v846
  %v1237 = vpack.c.b16 %v849, %v847
  %v1238 = vpack.c.b16 %v852, %v850
  %v1239 = vpack.c.b16 %v853, %v851
  %v1240 = vpack.c.b16 %v856, %v854
  %v1241 = vpack.c.b16 %v857, %v855
  %v1242 = vpack.c.b16 %v860, %v858
  %v1243 = vpack.c.b16 %v861, %v859
  %v1244 = vpack.c.b16 %v864, %v862
  %v1245 = vpack.c.b16 %v865, %v863
  %v1246 = vpack.c.b16 %v868, %v866
  %v1247 = vpack.c.b16 %v869, %v867
  %v1248 = vpack.c.b16 %v872, %v870
  %v1249 = vpack.c.b16 %v873, %v871
  %v1250 = vpack.c.b16 %v876, %v874
  %v1251 = vpack.c.b16 %v877, %v875
  %v1252 = vpack.c.b16 %v880, %v878
  %v1253 = vpack.c.b16 %v881, %v879
  %v1254 = vpack.c.b16 %v884, %v882
  %v1255 = vpack.c.b16 %v885, %v883
  %v1256 = vpack.c.b16 %v888, %v886
  %v1257 = vpack.c.b16 %v889, %v887
  %v1258 = vpack.c.b16 %v892, %v890
  %v1259 = vpack.c.b16 %v893, %v891
  %v1260 = vpack.c.b16 %v896, %v894
  %v1261 = vpack.c.b16 %v897, %v895
  %v1262 = vpack.c.b16 %v900, %v898
  %v1263 = vpack.c.b16 %v901, %v899
  %v1264 = vpack.c.b16 %v904, %v902
  %v1265 = vpack.c.b16 %v905, %v903
  %v1266 = vpack.c.b16 %v908, %v906
  %v1267 = vpack.c.b16 %v909, %v907
  %v1268 = vpack.c.b16 %v912, %v910
  %v1269 = vpack.c.b16 %v913, %v911
  %v1270 = vpack.c.b16 %v916, %v914
  %v1271 = vpack.c.b16 %v917, %v915
  %v1272 = vpack.c.b16 %v920, %v918
  %v1273 = vpack.c.b16 %v921, %v919
  %v1274 = vpack.c.b16 %v924, %v922
  %v1275 = vpack.c.b16 %v925, %v923
  %v1276 = vpack.c.b16 %v928, %v926
  %v1277 = vpack.c.b16 %v929, %v927
  %v1278 = vpack.c.b16 %v932, %v930
  %v1279 = vpack.c.b16 %v933, %v931
  %v1280 = vpack.c.b16 %v936, %v934
  %v1281 = vpack.c.b16 %v937, %v935
  %v1282 = vpack.c.b16 %v940, %v938
  %v1283 = vpack.c.b16 %v941, %v939
  %v1284 = vpack.c.b16 %v944, %v942
  %v1285 = vpack.c.b16 %v945, %v943
  %v1286 = vpack.c.b16 %v948, %v946
  %v1287 = vpack.c.b16 %v949, %v947
  %v1288 = vpack.c.b16 %v952, %v950
  %v1289 = vpack.c.b16 %v953, %v951
  %v1290 = vpack.c.b16 %v956, %v954
  %v1291 = vpack.c.b16 %v957, %v955
  %v1292 = vpack.c.b16 %v960, %v958
  %v1293 = vpack.c.b16 %v961, %v959
  %v1294 = vpack.c.b16 %v964, %v962
  %v1295 = vpack.c.b16 %v965, %v963
  %v1296 = vpack.c.b16 %v968, %v966
  %v1297 = vpack.c.b16 %v969, %v967
  %v1298 = vpack.c.b16 %v972, %v970
  %v1299 = vpack.c.b16 %v973, %v971
  %v1300 = vpack.c.b16 %v976, %v974
  %v1301 = vpack.c.b16 %v977, %v975
  %v1302 = vpack.c.b16 %v980, %v978
  %v1303 = vpack.c.b16 %v981, %v979
  %v1304 = vpack.c.b16 %v984, %v982
  %v1305 = vpack.c.b16 %v985, %v983
  %v1306 = vpack.c.b16 %v988, %v986
  %v1307 = vpack.c.b16 %v989, %v987
  %v1308 = vpack.c.b16 %v992, %v990
  %v1309 = vpack.c.b16 %v993, %v991
  %v1310 = vpack.c.b16 %v996, %v994
  %v1311 = vpack.c.b16 %v997, %v995
  %v1312 = vpack.c.b16 %v1000, %v998
  %v1313 = vpack.c.b16 %v1001, %v999
  %v1314 = vpack.c.b16 %v1004, %v1002
  %v1315 = vpack.c.b16 %v1005, %v1003
  %v1316 = vpack.c.b16 %v1008, %v1006
  %v1317 = vpack.c.b16 %v1009, %v1007
  %v1318 = vpack.c.b16 %v1012, %v1010
  %v1319 = vpack.c.b16 %v1013, %v1011
  %v1320 = vpack.c.b16 %v1016, %v1014
  %v1321 = vpack.c.b16 %v1017, %v1015
  %v1322 = vpack.c.b16 %v1020, %v1018
  %v1323 = vpack.c.b16 %v1021, %v1019
  %v1324 = vpack.c.b16 %v1024, %v1022
  %v1325 = vpack.c.b16 %v1025, %v1023
  %v1326 = vpack.c.b16 %v1028, %v1026
  %v1327 = vpack.c.b16 %v1029, %v1027
  %v1328 = vpack.c.b16 %v1032, %v1030
  %v1329 = vpack.c.b16 %v1033, %v1031
  %v1330 = vpack.c.b16 %v1036, %v1034
  %v1331 = vpack.c.b16 %v1037, %v1035
  %v1332 = vpack.c.b16 %v1040, %v1038
  %v1333 = vpack.c.b16 %v1041, %v1039
  %v1334 = vpack.c.b16 %v1044, %v1042
  %v1335 = vpack.c.b16 %v1045, %v1043
  %v1336 = vpack.c.b16 %v1048, %v1046
  %v1337 = vpack.c.b16 %v1049, %v1047
  %v1338 = vpack.c.b16 %v1052, %v1050
  %v1339 = vpack.c.b16 %v1053, %v1051
  %v1340 = vpack.c.b16 %v1056, %v1054
  %v1341 = vpack.c.b16 %v1057, %v1055
  %v1342 = vpack.c.b16 %v1060, %v1058
  %v1343 = vpack.c.b16 %v1061, %v1059
  %v1344 = vpack.c.b16 %v1064, %v1062
  %v1345 = vpack.c.b16 %v1065, %v1063
  %v1346 = vpack.c.b16 %v1068, %v1066
  %v1347 = vpack.c.b16 %v1069, %v1067
  %v1348 = vpack.c.b16 %v1072, %v1070
  %v1349 = vpack.c.b16 %v1073, %v1071
  %v1350 = vpack.c.b16 %v1076, %v1074
  %v1351 = vpack.c.b16 %v1077, %v1075
  %v1352 = vpack.c.b16 %v1080, %v1078
  %v1353 = vpack.c.b16 %v1081, %v1079
  %v1354 = vpack.c.b16 %v1084, %v1082
  %v1355 = vpack.c.b16 %v1085, %v1083
  %v1356 = vpack.c.b16 %v1088, %v1086
  %v1357 = vpack.c.b16 %v1089, %v1087
  %v1358 = vpack.c.b16 %v1092, %v1090
  %v1359 = vpack.c.b16 %v1093, %v1091
  %v1360 = vpack.c.b16 %v1096, %v1094
  %v1361 = vpack.c.b16 %v1097, %v1095
  %v1362 = vpack.c.b16 %v1100, %v1098
  %v1363 = vpack.c.b16 %v1101, %v1099
  %v1364 = vpack.c.b16 %v1104, %v1102
  %v1365 = vpack.c.b16 %v1105, %v1103
  %v1366 = vpack.c.b16 %v1108, %v1106
  %v1367 = vpack.c.b16 %v1109, %v1107
  %v1368 = vpack.c.b16 %v1112, %v1110
  %v1369 = vpack.c.b16 %v1113, %v1111
  %1626 = vmatprep.subr.bf16.mxu0 %v1115
  %1627 = vmatpush1.bf16.msra.mxu0 %v1114
  %1628 = vmatprep.subr.bf16.mxu0 %v1117
  %1629 = vmatpush1.bf16.msra.mxu0 %v1116
  %1630 = vmatprep.subr.bf16.mxu0 %v1119
  %1631 = vmatpush1.bf16.msra.mxu0 %v1118
  %1632 = vmatprep.subr.bf16.mxu0 %v1121
  %1633 = vmatpush1.bf16.msra.mxu0 %v1120
  %1634 = vmatprep.subr.bf16.mxu0 %v1123
  %1635 = vmatpush1.bf16.msra.mxu0 %v1122
  %1636 = vmatprep.subr.bf16.mxu0 %v1125
  %1637 = vmatpush1.bf16.msra.mxu0 %v1124
  %1638 = vmatprep.subr.bf16.mxu0 %v1127
  %1639 = vmatpush1.bf16.msra.mxu0 %v1126
  %1640 = vmatprep.subr.bf16.mxu0 %v1129
  %1641 = vmatpush1.bf16.msra.mxu0 %v1128
  %1642 = vmatprep.subr.bf16.mxu0 %v1131
  %1643 = vmatpush1.bf16.msra.mxu0 %v1130
  %1644 = vmatprep.subr.bf16.mxu0 %v1133
  %1645 = vmatpush1.bf16.msra.mxu0 %v1132
  %1646 = vmatprep.subr.bf16.mxu0 %v1135
  %1647 = vmatpush1.bf16.msra.mxu0 %v1134
  %1648 = vmatprep.subr.bf16.mxu0 %v1137
  %1649 = vmatpush1.bf16.msra.mxu0 %v1136
  %1650 = vmatprep.subr.bf16.mxu0 %v1139
  %1651 = vmatpush1.bf16.msra.mxu0 %v1138
  %1652 = vmatprep.subr.bf16.mxu0 %v1141
  %1653 = vmatpush1.bf16.msra.mxu0 %v1140
  %1654 = vmatprep.subr.bf16.mxu0 %v1143
  %1655 = vmatpush1.bf16.msra.mxu0 %v1142
  %1656 = vmatprep.subr.bf16.mxu0 %v1145
  %1657 = vmatpush1.bf16.msra.mxu0 %v1144
  %1658 = vmatprep.mubr.bf16.mxu0 %v315
  %1659 = vmatmul.mubr.bf16.gmra.mrb[0].mxu0 %v314
  %v1660 = vpop.f32.mrb[0].mxu0
  %v1661 = vadd.f32 %v283, %v1660
  %v1662 = vpop.f32.mrb[0].mxu0
  %v1663 = vadd.f32 %v287, %v1662
  %v1664 = vpop.f32.mrb[0].mxu0
  %v1665 = vpop.f32.mrb[0].mxu0
  %1666 = vdwg.mxu0
  %1667 = vmatprep.subr.bf16.mxu0 %v1147
  %1668 = vmatpush1.bf16.msra.mxu0 %v1146
  %1669 = vmatprep.subr.bf16.mxu0 %v1149
  %1670 = vmatpush1.bf16.msra.mxu0 %v1148
  %1671 = vmatprep.subr.bf16.mxu0 %v1151
  %1672 = vmatpush1.bf16.msra.mxu0 %v1150
  %1673 = vmatprep.subr.bf16.mxu0 %v1153
  %1674 = vmatpush1.bf16.msra.mxu0 %v1152
  %1675 = vmatprep.subr.bf16.mxu0 %v1155
  %1676 = vmatpush1.bf16.msra.mxu0 %v1154
  %1677 = vmatprep.subr.bf16.mxu0 %v1157
  %1678 = vmatpush1.bf16.msra.mxu0 %v1156
  %1679 = vmatprep.subr.bf16.mxu0 %v1159
  %1680 = vmatpush1.bf16.msra.mxu0 %v1158
  %1681 = vmatprep.subr.bf16.mxu0 %v1161
  %1682 = vmatpush1.bf16.msra.mxu0 %v1160
  %1683 = vmatprep.subr.bf16.mxu0 %v1163
  %1684 = vmatpush1.bf16.msra.mxu0 %v1162
  %1685 = vmatprep.subr.bf16.mxu0 %v1165
  %1686 = vmatpush1.bf16.msra.mxu0 %v1164
  %1687 = vmatprep.subr.bf16.mxu0 %v1167
  %1688 = vmatpush1.bf16.msra.mxu0 %v1166
  %1689 = vmatprep.subr.bf16.mxu0 %v1169
  %1690 = vmatpush1.bf16.msra.mxu0 %v1168
  %1691 = vmatprep.subr.bf16.mxu0 %v1171
  %1692 = vmatpush1.bf16.msra.mxu0 %v1170
  %1693 = vmatprep.subr.bf16.mxu0 %v1173
  %1694 = vmatpush1.bf16.msra.mxu0 %v1172
  %1695 = vmatprep.subr.bf16.mxu0 %v1175
  %1696 = vmatpush1.bf16.msra.mxu0 %v1174
  %1697 = vmatprep.subr.bf16.mxu0 %v1177
  %1698 = vmatpush1.bf16.msra.mxu0 %v1176
  %1699 = vmatprep.mubr.bf16.mxu0 %v317
  %1700 = vmatmul.mubr.bf16.gmra.mrb[0].mxu0 %v316
  %v1701 = vpop.f32.mrb[0].mxu0
  %v1702 = vadd.f32 %v1661, %v1701
  %v1703 = vpop.f32.mrb[0].mxu0
  %v1704 = vadd.f32 %v1663, %v1703
  %v1705 = vpop.f32.mrb[0].mxu0
  %v1706 = vpop.f32.mrb[0].mxu0
  %1707 = vdwg.mxu0
  %1708 = vmatprep.subr.bf16.mxu0 %v1179
  %1709 = vmatpush1.bf16.msra.mxu0 %v1178
  %1710 = vmatprep.subr.bf16.mxu0 %v1181
  %1711 = vmatpush1.bf16.msra.mxu0 %v1180
  %1712 = vmatprep.subr.bf16.mxu0 %v1183
  %1713 = vmatpush1.bf16.msra.mxu0 %v1182
  %1714 = vmatprep.subr.bf16.mxu0 %v1185
  %1715 = vmatpush1.bf16.msra.mxu0 %v1184
  %1716 = vmatprep.subr.bf16.mxu0 %v1187
  %1717 = vmatpush1.bf16.msra.mxu0 %v1186
  %1718 = vmatprep.subr.bf16.mxu0 %v1189
  %1719 = vmatpush1.bf16.msra.mxu0 %v1188
  %1720 = vmatprep.subr.bf16.mxu0 %v1191
  %1721 = vmatpush1.bf16.msra.mxu0 %v1190
  %1722 = vmatprep.subr.bf16.mxu0 %v1193
  %1723 = vmatpush1.bf16.msra.mxu0 %v1192
  %1724 = vmatprep.subr.bf16.mxu0 %v1195
  %1725 = vmatpush1.bf16.msra.mxu0 %v1194
  %1726 = vmatprep.subr.bf16.mxu0 %v1197
  %1727 = vmatpush1.bf16.msra.mxu0 %v1196
  %1728 = vmatprep.subr.bf16.mxu0 %v1199
  %1729 = vmatpush1.bf16.msra.mxu0 %v1198
  %1730 = vmatprep.subr.bf16.mxu0 %v1201
  %1731 = vmatpush1.bf16.msra.mxu0 %v1200
  %1732 = vmatprep.subr.bf16.mxu0 %v1203
  %1733 = vmatpush1.bf16.msra.mxu0 %v1202
  %1734 = vmatprep.subr.bf16.mxu0 %v1205
  %1735 = vmatpush1.bf16.msra.mxu0 %v1204
  %1736 = vmatprep.subr.bf16.mxu0 %v1207
  %1737 = vmatpush1.bf16.msra.mxu0 %v1206
  %1738 = vmatprep.subr.bf16.mxu0 %v1209
  %1739 = vmatpush1.bf16.msra.mxu0 %v1208
  %1740 = vmatprep.mubr.bf16.mxu0 %v319
  %1741 = vmatmul.mubr.bf16.gmra.mrb[0].mxu0 %v318
  %v1742 = vpop.f32.mrb[0].mxu0
  %v1743 = vadd.f32 %v1702, %v1742
  %v1744 = vpop.f32.mrb[0].mxu0
  %v1745 = vadd.f32 %v1704, %v1744
  %v1746 = vpop.f32.mrb[0].mxu0
  %v1747 = vpop.f32.mrb[0].mxu0
  %1748 = vdwg.mxu0
  %1749 = vmatprep.subr.bf16.mxu0 %v1211
  %1750 = vmatpush1.bf16.msra.mxu0 %v1210
  %1751 = vmatprep.subr.bf16.mxu0 %v1213
  %1752 = vmatpush1.bf16.msra.mxu0 %v1212
  %1753 = vmatprep.subr.bf16.mxu0 %v1215
  %1754 = vmatpush1.bf16.msra.mxu0 %v1214
  %1755 = vmatprep.subr.bf16.mxu0 %v1217
  %1756 = vmatpush1.bf16.msra.mxu0 %v1216
  %1757 = vmatprep.subr.bf16.mxu0 %v1219
  %1758 = vmatpush1.bf16.msra.mxu0 %v1218
  %1759 = vmatprep.subr.bf16.mxu0 %v1221
  %1760 = vmatpush1.bf16.msra.mxu0 %v1220
  %1761 = vmatprep.subr.bf16.mxu0 %v1223
  %1762 = vmatpush1.bf16.msra.mxu0 %v1222
  %1763 = vmatprep.subr.bf16.mxu0 %v1225
  %1764 = vmatpush1.bf16.msra.mxu0 %v1224
  %1765 = vmatprep.subr.bf16.mxu0 %v1227
  %1766 = vmatpush1.bf16.msra.mxu0 %v1226
  %1767 = vmatprep.subr.bf16.mxu0 %v1229
  %1768 = vmatpush1.bf16.msra.mxu0 %v1228
  %1769 = vmatprep.subr.bf16.mxu0 %v1231
  %1770 = vmatpush1.bf16.msra.mxu0 %v1230
  %1771 = vmatprep.subr.bf16.mxu0 %v1233
  %1772 = vmatpush1.bf16.msra.mxu0 %v1232
  %1773 = vmatprep.subr.bf16.mxu0 %v1235
  %1774 = vmatpush1.bf16.msra.mxu0 %v1234
  %1775 = vmatprep.subr.bf16.mxu0 %v1237
  %1776 = vmatpush1.bf16.msra.mxu0 %v1236
  %1777 = vmatprep.subr.bf16.mxu0 %v1239
  %1778 = vmatpush1.bf16.msra.mxu0 %v1238
  %1779 = vmatprep.subr.bf16.mxu0 %v1241
  %1780 = vmatpush1.bf16.msra.mxu0 %v1240
  %1781 = vmatprep.mubr.bf16.mxu0 %v321
  %1782 = vmatmul.mubr.bf16.gmra.mrb[0].mxu0 %v320
  %v1783 = vpop.f32.mrb[0].mxu0
  %v1784 = vadd.f32 %v1743, %v1783
  %v1785 = vpop.f32.mrb[0].mxu0
  %v1786 = vadd.f32 %v1745, %v1785
  %v1787 = vpop.f32.mrb[0].mxu0
  %v1788 = vpop.f32.mrb[0].mxu0
  %1789 = vdwg.mxu0
  %1790 = vmatprep.subr.bf16.mxu0 %v1243
  %1791 = vmatpush1.bf16.msra.mxu0 %v1242
  %1792 = vmatprep.subr.bf16.mxu0 %v1245
  %1793 = vmatpush1.bf16.msra.mxu0 %v1244
  %1794 = vmatprep.subr.bf16.mxu0 %v1247
  %1795 = vmatpush1.bf16.msra.mxu0 %v1246
  %1796 = vmatprep.subr.bf16.mxu0 %v1249
  %1797 = vmatpush1.bf16.msra.mxu0 %v1248
  %1798 = vmatprep.subr.bf16.mxu0 %v1251
  %1799 = vmatpush1.bf16.msra.mxu0 %v1250
  %1800 = vmatprep.subr.bf16.mxu0 %v1253
  %1801 = vmatpush1.bf16.msra.mxu0 %v1252
  %1802 = vmatprep.subr.bf16.mxu0 %v1255
  %1803 = vmatpush1.bf16.msra.mxu0 %v1254
  %1804 = vmatprep.subr.bf16.mxu0 %v1257
  %1805 = vmatpush1.bf16.msra.mxu0 %v1256
  %1806 = vmatprep.subr.bf16.mxu0 %v1259
  %1807 = vmatpush1.bf16.msra.mxu0 %v1258
  %1808 = vmatprep.subr.bf16.mxu0 %v1261
  %1809 = vmatpush1.bf16.msra.mxu0 %v1260
  %1810 = vmatprep.subr.bf16.mxu0 %v1263
  %1811 = vmatpush1.bf16.msra.mxu0 %v1262
  %1812 = vmatprep.subr.bf16.mxu0 %v1265
  %1813 = vmatpush1.bf16.msra.mxu0 %v1264
  %1814 = vmatprep.subr.bf16.mxu0 %v1267
  %1815 = vmatpush1.bf16.msra.mxu0 %v1266
  %1816 = vmatprep.subr.bf16.mxu0 %v1269
  %1817 = vmatpush1.bf16.msra.mxu0 %v1268
  %1818 = vmatprep.subr.bf16.mxu0 %v1271
  %1819 = vmatpush1.bf16.msra.mxu0 %v1270
  %1820 = vmatprep.subr.bf16.mxu0 %v1273
  %1821 = vmatpush1.bf16.msra.mxu0 %v1272
  %1822 = vmatprep.mubr.bf16.mxu0 %v323
  %1823 = vmatmul.mubr.bf16.gmra.mrb[0].mxu0 %v322
  %v1824 = vpop.f32.mrb[0].mxu0
  %v1825 = vadd.f32 %v1784, %v1824
  %v1826 = vpop.f32.mrb[0].mxu0
  %v1827 = vadd.f32 %v1786, %v1826
  %v1828 = vpop.f32.mrb[0].mxu0
  %v1829 = vpop.f32.mrb[0].mxu0
  %1830 = vdwg.mxu0
  %1831 = vmatprep.subr.bf16.mxu0 %v1275
  %1832 = vmatpush1.bf16.msra.mxu0 %v1274
  %1833 = vmatprep.subr.bf16.mxu0 %v1277
  %1834 = vmatpush1.bf16.msra.mxu0 %v1276
  %1835 = vmatprep.subr.bf16.mxu0 %v1279
  %1836 = vmatpush1.bf16.msra.mxu0 %v1278
  %1837 = vmatprep.subr.bf16.mxu0 %v1281
  %1838 = vmatpush1.bf16.msra.mxu0 %v1280
  %1839 = vmatprep.subr.bf16.mxu0 %v1283
  %1840 = vmatpush1.bf16.msra.mxu0 %v1282
  %1841 = vmatprep.subr.bf16.mxu0 %v1285
  %1842 = vmatpush1.bf16.msra.mxu0 %v1284
  %1843 = vmatprep.subr.bf16.mxu0 %v1287
  %1844 = vmatpush1.bf16.msra.mxu0 %v1286
  %1845 = vmatprep.subr.bf16.mxu0 %v1289
  %1846 = vmatpush1.bf16.msra.mxu0 %v1288
  %1847 = vmatprep.subr.bf16.mxu0 %v1291
  %1848 = vmatpush1.bf16.msra.mxu0 %v1290
  %1849 = vmatprep.subr.bf16.mxu0 %v1293
  %1850 = vmatpush1.bf16.msra.mxu0 %v1292
  %1851 = vmatprep.subr.bf16.mxu0 %v1295
  %1852 = vmatpush1.bf16.msra.mxu0 %v1294
  %1853 = vmatprep.subr.bf16.mxu0 %v1297
  %1854 = vmatpush1.bf16.msra.mxu0 %v1296
  %1855 = vmatprep.subr.bf16.mxu0 %v1299
  %1856 = vmatpush1.bf16.msra.mxu0 %v1298
  %1857 = vmatprep.subr.bf16.mxu0 %v1301
  %1858 = vmatpush1.bf16.msra.mxu0 %v1300
  %1859 = vmatprep.subr.bf16.mxu0 %v1303
  %1860 = vmatpush1.bf16.msra.mxu0 %v1302
  %1861 = vmatprep.subr.bf16.mxu0 %v1305
  %1862 = vmatpush1.bf16.msra.mxu0 %v1304
  %1863 = vmatprep.mubr.bf16.mxu0 %v325
  %1864 = vmatmul.mubr.bf16.gmra.mrb[0].mxu0 %v324
  %v1865 = vpop.f32.mrb[0].mxu0
  %v1866 = vadd.f32 %v1825, %v1865
  %v1867 = vpop.f32.mrb[0].mxu0
  %v1868 = vadd.f32 %v1827, %v1867
  %v1869 = vpop.f32.mrb[0].mxu0
  %v1870 = vpop.f32.mrb[0].mxu0
  %1871 = vdwg.mxu0
  %1872 = vmatprep.subr.bf16.mxu0 %v1307
  %1873 = vmatpush1.bf16.msra.mxu0 %v1306
  %1874 = vmatprep.subr.bf16.mxu0 %v1309
  %1875 = vmatpush1.bf16.msra.mxu0 %v1308
  %1876 = vmatprep.subr.bf16.mxu0 %v1311
  %1877 = vmatpush1.bf16.msra.mxu0 %v1310
  %1878 = vmatprep.subr.bf16.mxu0 %v1313
  %1879 = vmatpush1.bf16.msra.mxu0 %v1312
  %1880 = vmatprep.subr.bf16.mxu0 %v1315
  %1881 = vmatpush1.bf16.msra.mxu0 %v1314
  %1882 = vmatprep.subr.bf16.mxu0 %v1317
  %1883 = vmatpush1.bf16.msra.mxu0 %v1316
  %1884 = vmatprep.subr.bf16.mxu0 %v1319
  %1885 = vmatpush1.bf16.msra.mxu0 %v1318
  %1886 = vmatprep.subr.bf16.mxu0 %v1321
  %1887 = vmatpush1.bf16.msra.mxu0 %v1320
  %1888 = vmatprep.subr.bf16.mxu0 %v1323
  %1889 = vmatpush1.bf16.msra.mxu0 %v1322
  %1890 = vmatprep.subr.bf16.mxu0 %v1325
  %1891 = vmatpush1.bf16.msra.mxu0 %v1324
  %1892 = vmatprep.subr.bf16.mxu0 %v1327
  %1893 = vmatpush1.bf16.msra.mxu0 %v1326
  %1894 = vmatprep.subr.bf16.mxu0 %v1329
  %1895 = vmatpush1.bf16.msra.mxu0 %v1328
  %1896 = vmatprep.subr.bf16.mxu0 %v1331
  %1897 = vmatpush1.bf16.msra.mxu0 %v1330
  %1898 = vmatprep.subr.bf16.mxu0 %v1333
  %1899 = vmatpush1.bf16.msra.mxu0 %v1332
  %1900 = vmatprep.subr.bf16.mxu0 %v1335
  %1901 = vmatpush1.bf16.msra.mxu0 %v1334
  %1902 = vmatprep.subr.bf16.mxu0 %v1337
  %1903 = vmatpush1.bf16.msra.mxu0 %v1336
  %1904 = vmatprep.mubr.bf16.mxu0 %v327
  %1905 = vmatmul.mubr.bf16.gmra.mrb[0].mxu0 %v326
  %v1906 = vpop.f32.mrb[0].mxu0
  %v1907 = vadd.f32 %v1866, %v1906
  %v1908 = vpop.f32.mrb[0].mxu0
  %v1909 = vadd.f32 %v1868, %v1908
  %v1910 = vpop.f32.mrb[0].mxu0
  %v1911 = vpop.f32.mrb[0].mxu0
  %1912 = vdwg.mxu0
  %1913 = vmatprep.subr.bf16.mxu0 %v1339
  %1914 = vmatpush1.bf16.msra.mxu0 %v1338
  %1915 = vmatprep.subr.bf16.mxu0 %v1341
  %1916 = vmatpush1.bf16.msra.mxu0 %v1340
  %1917 = vmatprep.subr.bf16.mxu0 %v1343
  %1918 = vmatpush1.bf16.msra.mxu0 %v1342
  %1919 = vmatprep.subr.bf16.mxu0 %v1345
  %1920 = vmatpush1.bf16.msra.mxu0 %v1344
  %1921 = vmatprep.subr.bf16.mxu0 %v1347
  %1922 = vmatpush1.bf16.msra.mxu0 %v1346
  %1923 = vmatprep.subr.bf16.mxu0 %v1349
  %1924 = vmatpush1.bf16.msra.mxu0 %v1348
  %1925 = vmatprep.subr.bf16.mxu0 %v1351
  %1926 = vmatpush1.bf16.msra.mxu0 %v1350
  %1927 = vmatprep.subr.bf16.mxu0 %v1353
  %1928 = vmatpush1.bf16.msra.mxu0 %v1352
  %1929 = vmatprep.subr.bf16.mxu0 %v1355
  %1930 = vmatpush1.bf16.msra.mxu0 %v1354
  %1931 = vmatprep.subr.bf16.mxu0 %v1357
  %1932 = vmatpush1.bf16.msra.mxu0 %v1356
  %1933 = vmatprep.subr.bf16.mxu0 %v1359
  %1934 = vmatpush1.bf16.msra.mxu0 %v1358
  %1935 = vmatprep.subr.bf16.mxu0 %v1361
  %1936 = vmatpush1.bf16.msra.mxu0 %v1360
  %1937 = vmatprep.subr.bf16.mxu0 %v1363
  %1938 = vmatpush1.bf16.msra.mxu0 %v1362
  %1939 = vmatprep.subr.bf16.mxu0 %v1365
  %1940 = vmatpush1.bf16.msra.mxu0 %v1364
  %1941 = vmatprep.subr.bf16.mxu0 %v1367
  %1942 = vmatpush1.bf16.msra.mxu0 %v1366
  %1943 = vmatprep.subr.bf16.mxu0 %v1369
  %1944 = vmatpush1.bf16.msra.mxu0 %v1368
  %1945 = vmatprep.mubr.bf16.mxu0 %v329
  %1946 = vmatmul.mubr.bf16.gmra.mrb[0].mxu0 %v328
  %v1947 = vpop.f32.mrb[0].mxu0
  %v1948 = vadd.f32 %v1907, %v1947
  %v1949 = vpop.f32.mrb[0].mxu0
  %v1950 = vadd.f32 %v1909, %v1949
  %v1951 = vpop.f32.mrb[0].mxu0
  %v1952 = vpop.f32.mrb[0].mxu0
  %1953 = vdwg.mxu0
  %1954 = vst [vmem:[%s3] sm:$0xff] %v1948
  %1955 = vst [vmem:[%s3 + $0x8] sm:$0xff] %v1950
  // Predicated region
  $region14: #{patch_discriminator_forward.5} parent=0 // pred_check
    _
  $region15: #{patch_discriminator_forward.5} parent=0 // pred_check_branch
    %1957 = sbr.rel (0) target = $region17
  $region16: #{patch_discriminator_forward.5} parent=0 // pred_region
    _
  $region17: #{patch_discriminator_forward.5} parent=0 // pred_fallthru
    _
  // Predicated region
  $region18: #{patch_discriminator_forward.5} parent=0 // pred_check
    _
  $region19: #{patch_discriminator_forward.5} parent=0 // pred_check_branch
    %1959 = sbr.rel (0) target = $region21
  $region20: #{patch_discriminator_forward.5} parent=0 // pred_region
    _
  $region21: #{patch_discriminator_forward.5} parent=0 // pred_fallthru
    _

</llo_original>
